<compile_context>
chip_gen: v5e
topology: v5e:2x2
jax: 0.10.0
libtpu: 0.0.40
codegen_flags: <defaults>
</compile_context>

<pallas_src>
import functools

import jax
import jax.numpy as jnp
from jax import lax
from jax.experimental import pallas as pl
from jax.experimental.pallas import tpu as pltpu


def _detect_vmem_limit():
    # ~48 MiB on v7x (64 MiB physical), capped at ~96-100 MiB on v5e/v6e (128 MiB).
    try:
        cap = int(pltpu.get_tpu_info().vmem_capacity_bytes)
    except Exception:
        cap = 64 * 1024 * 1024
    return int(min(cap * 3 // 4, 100 * 1024 * 1024))


_VMEM_LIMIT = _detect_vmem_limit()


# ----------------------------- small helpers -----------------------------

def _round_up(n, m):
    return -(-n // m) * m


def _pad_lane(x3, s_pad):
    """Zero-pad the last (spatial/lane) axis of a (B, C, S) tensor to s_pad."""
    s = x3.shape[-1]
    if s == s_pad:
        return x3
    return jnp.pad(x3, ((0, 0), (0, 0), (0, s_pad - s)))


def _spatial_tile(s_pad, cin, cout):
    """Largest 128-multiple tile dividing s_pad that fits a VMEM budget.

    bytes ~= 2 (double-buffer) * (cin + cout) * ts * 4 ; budget capped at 16 MiB.
    """
    budget = min(_VMEM_LIMIT // 4, 16 * 1024 * 1024)
    per_col = 8 * (cin + cout)                      # f32 in + out, double-buffered
    max_tile = max(128, (budget // per_col) // 128 * 128)
    t = min(s_pad, max_tile)
    for cand in range(t // 128, 0, -1):
        ts = cand * 128
        if s_pad % ts == 0:
            return ts
    return 128


def _apply_act(y, act):
    if act == "lrelu":            # nn.LeakyReLU(negative_slope=0.2)
        return jnp.where(y >= 0, y, 0.2 * y)
    if act == "relu":
        return jnp.maximum(y, 0.0)
    if act == "sigmoid":
        return 1.0 / (1.0 + jnp.exp(-y))
    return y


# ----------------------------- Pallas kernels -----------------------------

def _conv1x1_cf_kernel(x_ref, w_ref, b_ref, o_ref, *, act):
    # x_ref: (Cin, Ts)   w_ref: (Cout, Cin)   b_ref: (Cout, 1)   o_ref: (Cout, Ts)
    y = jnp.dot(w_ref[...], x_ref[...], preferred_element_type=jnp.float32) + b_ref[...]
    o_ref[...] = _apply_act(y, act).astype(o_ref.dtype)


def _conv1x1_cf_res_kernel(xa_ref, xb_ref, w_ref, b_ref, o_ref, *, act):
    # Fused residual add: conv(xa + xb).  Saves one full HBM pass of the activation.
    x = xa_ref[...] + xb_ref[...]
    y = jnp.dot(w_ref[...], x, preferred_element_type=jnp.float32) + b_ref[...]
    o_ref[...] = _apply_act(y, act).astype(o_ref.dtype)


def _dual_conv1x1_kernel(x_ref, wa_ref, ba_ref, wb_ref, bb_ref, oa_ref, ob_ref, *, act):
    # One read of x, two 1x1 convs (wavelet-branch conv1 and fft-branch conv1).
    x = x_ref[...]
    ya = jnp.dot(wa_ref[...], x, preferred_element_type=jnp.float32) + ba_ref[...]
    yb = jnp.dot(wb_ref[...], x, preferred_element_type=jnp.float32) + bb_ref[...]
    oa_ref[...] = _apply_act(ya, act).astype(oa_ref.dtype)
    ob_ref[...] = _apply_act(yb, act).astype(ob_ref.dtype)


def _fu_conv_kernel(re_ref, im_ref, wrr_ref, wri_ref, wir_ref, wii_ref,
                    br_ref, bi_ref, ore_ref, oim_ref):
    # FourierUnit 1x1 conv on de-interleaved real/imag planes (PyTorch channel order
    # is 2*c + {0=real, 1=imag}; the weight was de-interleaved on the host).
    re = re_ref[...]
    im = im_ref[...]
    yr = (jnp.dot(wrr_ref[...], re, preferred_element_type=jnp.float32)
          + jnp.dot(wri_ref[...], im, preferred_element_type=jnp.float32) + br_ref[...])
    yi = (jnp.dot(wir_ref[...], re, preferred_element_type=jnp.float32)
          + jnp.dot(wii_ref[...], im, preferred_element_type=jnp.float32) + bi_ref[...])
    ore_ref[...] = jnp.where(yr >= 0, yr, 0.2 * yr).astype(ore_ref.dtype)
    oim_ref[...] = jnp.where(yi >= 0, yi, 0.2 * yi).astype(oim_ref.dtype)


def _last_ca_kernel(wav_ref, fft_ref, wla_ref, wlb_ref, bl_ref,
                    w1_ref, b1_ref, w2_ref, b2_ref, o_ref,
                    sum_ref, gate_ref, *, s_valid, ts):
    """Fused concat + last 1x1 conv (2C->C) + CALayer, HW-tiled in two phases.

    Grid = (B, phase, tiles).  phase 0: accumulate global per-channel sums of y (masked
    for lane padding) and compute the sigmoid gate on the last tile.  phase 1: recompute
    y per tile (cheap, mem-bound) and apply the gate.
    """
    ph = pl.program_id(1)
    t = pl.program_id(2)
    nt = pl.num_programs(2)

    def compute_y():
        return (jnp.dot(wla_ref[...], wav_ref[...], preferred_element_type=jnp.float32)
                + jnp.dot(wlb_ref[...], fft_ref[...], preferred_element_type=jnp.float32)
                + bl_ref[...])

    @pl.when((ph == 0) & (t == 0))
    def _():
        sum_ref[...] = jnp.zeros_like(sum_ref)

    @pl.when(ph == 0)
    def _():
        y = compute_y()
        col = t * ts + lax.broadcasted_iota(jnp.int32, y.shape, 1)
        y = jnp.where(col < s_valid, y, 0.0)             # mask lane padding
        sum_ref[...] += jnp.sum(y, axis=-1, keepdims=True)

    @pl.when((ph == 0) & (t == nt - 1))
    def _():
        pooled = sum_ref[...] * (1.0 / float(s_valid))    # global average pool
        h = jnp.dot(w1_ref[...], pooled, preferred_element_type=jnp.float32) + b1_ref[...]
        h = jnp.maximum(h, 0.0)                           # ReLU
        g = jnp.dot(w2_ref[...], h, preferred_element_type=jnp.float32) + b2_ref[...]
        gate_ref[...] = 1.0 / (1.0 + jnp.exp(-g))         # Sigmoid gate (C, 1)

    @pl.when(ph == 1)
    def _():
        y = compute_y()
        o_ref[...] = (y * gate_ref[...]).astype(o_ref.dtype)


# ----------------------------- Pallas wrappers -----------------------------

def _cparams(semantics):
    return pltpu.CompilerParams(dimension_semantics=semantics,
                                vmem_limit_bytes=_VMEM_LIMIT)


def conv1x1_cf(x3, w, b, act="none"):
    """Channels-first 1x1 conv.  x3: (B, Cin, S); w: (Cout, Cin); b: (Cout,)."""
    B, cin, S = x3.shape
    cout = w.shape[0]
    S_pad = _round_up(S, 128)
    xp = _pad_lane(x3, S_pad)
    ts = _spatial_tile(S_pad, cin, cout)
    kern = functools.partial(_conv1x1_cf_kernel, act=act)
    out = pl.pallas_call(
        kern,
        grid=(B, S_pad // ts),
        out_shape=jax.ShapeDtypeStruct((B, cout, S_pad), x3.dtype),
        in_specs=[
            pl.BlockSpec((None, cin, ts), lambda bi, si: (bi, 0, si)),
            pl.BlockSpec((cout, cin), lambda bi, si: (0, 0)),
            pl.BlockSpec((cout, 1), lambda bi, si: (0, 0)),
        ],
        out_specs=pl.BlockSpec((None, cout, ts), lambda bi, si: (bi, 0, si)),
        compiler_params=_cparams(("parallel", "parallel")),
    )(xp, w, b.reshape(cout, 1))
    return out if S_pad == S else out[:, :, :S]


def conv1x1_cf_residual(xa3, xb3, w, b, act="none"):
    """Fused (xa + xb) followed by channels-first 1x1 conv."""
    B, cin, S = xa3.shape
    cout = w.shape[0]
    S_pad = _round_up(S, 128)
    xap = _pad_lane(xa3, S_pad)
    xbp = _pad_lane(xb3, S_pad)
    ts = _spatial_tile(S_pad, 2 * cin, cout)
    kern = functools.partial(_conv1x1_cf_res_kernel, act=act)
    out = pl.pallas_call(
        kern,
        grid=(B, S_pad // ts),
        out_shape=jax.ShapeDtypeStruct((B, cout, S_pad), xa3.dtype),
        in_specs=[
            pl.BlockSpec((None, cin, ts), lambda bi, si: (bi, 0, si)),
            pl.BlockSpec((None, cin, ts), lambda bi, si: (bi, 0, si)),
            pl.BlockSpec((cout, cin), lambda bi, si: (0, 0)),
            pl.BlockSpec((cout, 1), lambda bi, si: (0, 0)),
        ],
        out_specs=pl.BlockSpec((None, cout, ts), lambda bi, si: (bi, 0, si)),
        compiler_params=_cparams(("parallel", "parallel")),
    )(xap, xbp, w, b.reshape(cout, 1))
    return out if S_pad == S else out[:, :, :S]


def dual_conv1x1_cf(x3, w_a, b_a, w_b, b_b, act="none"):
    """One read of x, two 1x1 convs -> (B, Ca, S), (B, Cb, S)."""
    B, cin, S = x3.shape
    ca, cb = w_a.shape[0], w_b.shape[0]
    S_pad = _round_up(S, 128)
    xp = _pad_lane(x3, S_pad)
    ts = _spatial_tile(S_pad, cin, ca + cb)
    kern = functools.partial(_dual_conv1x1_kernel, act=act)
    oa, ob = pl.pallas_call(
        kern,
        grid=(B, S_pad // ts),
        out_shape=(jax.ShapeDtypeStruct((B, ca, S_pad), x3.dtype),
                   jax.ShapeDtypeStruct((B, cb, S_pad), x3.dtype)),
        in_specs=[
            pl.BlockSpec((None, cin, ts), lambda bi, si: (bi, 0, si)),
            pl.BlockSpec((ca, cin), lambda bi, si: (0, 0)),
            pl.BlockSpec((ca, 1), lambda bi, si: (0, 0)),
            pl.BlockSpec((cb, cin), lambda bi, si: (0, 0)),
            pl.BlockSpec((cb, 1), lambda bi, si: (0, 0)),
        ],
        out_specs=(pl.BlockSpec((None, ca, ts), lambda bi, si: (bi, 0, si)),
                   pl.BlockSpec((None, cb, ts), lambda bi, si: (bi, 0, si))),
        compiler_params=_cparams(("parallel", "parallel")),
    )(xp, w_a, b_a.reshape(ca, 1), w_b, b_b.reshape(cb, 1))
    if S_pad != S:
        oa, ob = oa[:, :, :S], ob[:, :, :S]
    return oa, ob


def fu_conv(re3, im3, w, b):
    """FourierUnit conv + LeakyReLU on de-interleaved real/imag (B, C2, S) planes."""
    B, C2, S = re3.shape
    # PyTorch channel order into/out of conv_layer is 2*c + {0=real, 1=imag}.
    wrr = w[0::2, 0::2]; wri = w[0::2, 1::2]
    wir = w[1::2, 0::2]; wii = w[1::2, 1::2]
    br = b[0::2].reshape(C2, 1); bi_ = b[1::2].reshape(C2, 1)
    S_pad = _round_up(S, 128)
    rep = _pad_lane(re3, S_pad)
    imp = _pad_lane(im3, S_pad)
    ts = _spatial_tile(S_pad, 2 * C2, 2 * C2)
    ore, oim = pl.pallas_call(
        _fu_conv_kernel,
        grid=(B, S_pad // ts),
        out_shape=(jax.ShapeDtypeStruct((B, C2, S_pad), re3.dtype),
                   jax.ShapeDtypeStruct((B, C2, S_pad), re3.dtype)),
        in_specs=[
            pl.BlockSpec((None, C2, ts), lambda bi, si: (bi, 0, si)),
            pl.BlockSpec((None, C2, ts), lambda bi, si: (bi, 0, si)),
            pl.BlockSpec((C2, C2), lambda bi, si: (0, 0)),
            pl.BlockSpec((C2, C2), lambda bi, si: (0, 0)),
            pl.BlockSpec((C2, C2), lambda bi, si: (0, 0)),
            pl.BlockSpec((C2, C2), lambda bi, si: (0, 0)),
            pl.BlockSpec((C2, 1), lambda bi, si: (0, 0)),
            pl.BlockSpec((C2, 1), lambda bi, si: (0, 0)),
        ],
        out_specs=(pl.BlockSpec((None, C2, ts), lambda bi, si: (bi, 0, si)),
                   pl.BlockSpec((None, C2, ts), lambda bi, si: (bi, 0, si))),
        compiler_params=_cparams(("parallel", "parallel")),
    )(rep, imp, wrr, wri, wir, wii, br, bi_)
    if S_pad != S:
        ore, oim = ore[:, :, :S], oim[:, :, :S]
    return ore, oim


def last_conv_ca(wav3, fft3, wl, bl, w1, b1, w2, b2):
    """Fused concat + last 1x1 conv + channel attention.  (B,C,S)x2 -> (B,C,S)."""
    B, C, S = wav3.shape
    wla = wl[:, :C]        # multiplies the wavelet half of the concat
    wlb = wl[:, C:]        # multiplies the fft half
    S_pad = _round_up(S, 128)
    wavp = _pad_lane(wav3, S_pad)
    fftp = _pad_lane(fft3, S_pad)
    ts = _spatial_tile(S_pad, 2 * C, C)
    nt = S_pad // ts
    kern = functools.partial(_last_ca_kernel, s_valid=S, ts=ts)
    out = pl.pallas_call(
        kern,
        grid=(B, 2, nt),
        out_shape=jax.ShapeDtypeStruct((B, C, S_pad), wav3.dtype),
        in_specs=[
            pl.BlockSpec((None, C, ts), lambda bi, ph, si: (bi, 0, si)),
            pl.BlockSpec((None, C, ts), lambda bi, ph, si: (bi, 0, si)),
            pl.BlockSpec((C, C), lambda bi, ph, si: (0, 0)),
            pl.BlockSpec((C, C), lambda bi, ph, si: (0, 0)),
            pl.BlockSpec((C, 1), lambda bi, ph, si: (0, 0)),
            pl.BlockSpec((C, C), lambda bi, ph, si: (0, 0)),
            pl.BlockSpec((C, 1), lambda bi, ph, si: (0, 0)),
            pl.BlockSpec((C, C), lambda bi, ph, si: (0, 0)),
            pl.BlockSpec((C, 1), lambda bi, ph, si: (0, 0)),
        ],
        # Output only written in phase 1; pin the out block during phase 0 so no
        # garbage blocks are ever written back.
        out_specs=pl.BlockSpec((None, C, ts), lambda bi, ph, si: (bi, 0, si * ph)),
        scratch_shapes=[pltpu.VMEM((C, 1), jnp.float32),    # channel-sum accumulator
                        pltpu.VMEM((C, 1), jnp.float32)],   # sigmoid gate
        compiler_params=_cparams(("parallel", "arbitrary", "arbitrary")),
    )(wavp, fftp, wla, wlb, bl.reshape(C, 1),
      w1, b1.reshape(C, 1), w2, b2.reshape(C, 1))
    return out if S_pad == S else out[:, :, :S]


def conv1x1_nchw(x, w, b, act="none"):
    """1x1 Conv2d on an NCHW tensor (reshape (B,C,H,W)->(B,C,HW) is free)."""
    B, C, H, W = x.shape
    y = conv1x1_cf(x.reshape(B, C, H * W), w, b, act)
    return y.reshape(B, w.shape[0], H, W)


# ------------------- db4 DWT / IDWT (pytorch_wavelets, mode='symmetric') -------------------
# TODO(synk): DWT/IDWT filter banks have no clean Pallas equivalent; implemented in plain
#             JAX with lax.conv_general_dilated (matches pytorch_wavelets afb1d/sfb1d).

_DB4_DEC_LO = jnp.array(
    [-0.010597401784997278, 0.032883011666982945, 0.030841381835986965,
     -0.18703481171888114, -0.02798376941698385, 0.6308807679295904,
     0.7148465705525415, 0.23037781330885523], dtype=jnp.float32)
_ALT_ODD = jnp.array([-1, 1, -1, 1, -1, 1, -1, 1], jnp.float32)   # (-1)^(k+1)
_ALT_EVEN = jnp.array([1, -1, 1, -1, 1, -1, 1, -1], jnp.float32)  # (-1)^k
_DB4_DEC_HI = _DB4_DEC_LO[::-1] * _ALT_ODD
_DB4_REC_LO = _DB4_DEC_LO[::-1]
_DB4_REC_HI = _DB4_DEC_LO * _ALT_EVEN

_DN = ("NCHW", "OIHW", "NCHW")


def _afb1d(x, h0r, h1r, axis):
    """Analysis filter bank along `axis` (2=height, 3=width), stride 2, symmetric pad."""
    L = h0r.shape[0]
    N = x.shape[axis]
    outsize = (N + L - 1) // 2                   # pywt.dwt_coeff_len, symmetric mode
    p = 2 * (outsize - 1) - N + L
    pad = [(0, 0)] * 4
    pad[axis] = (p // 2, (p + 1) // 2)
    xp = jnp.pad(x, pad, mode="symmetric")
    B, C = x.shape[0], x.shape[1]
    xr = xp.reshape((B * C, 1) + xp.shape[2:])
    if axis == 3:
        k0 = h0r.reshape(1, 1, 1, L); k1 = h1r.reshape(1, 1, 1, L); strides = (1, 2)
    else:
        k0 = h0r.reshape(1, 1, L, 1); k1 = h1r.reshape(1, 1, L, 1); strides = (2, 1)
    lo = lax.conv_general_dilated(xr, k0, strides, "VALID", dimension_numbers=_DN)
    hi = lax.conv_general_dilated(xr, k1, strides, "VALID", dimension_numbers=_DN)
    return (lo.reshape((B, C) + lo.shape[2:]),
            hi.reshape((B, C) + hi.shape[2:]))


def _sfb1d(lo, hi, g0, g1, axis):
    """Synthesis filter bank along `axis` (== conv_transpose2d(stride=2, padding=L-2))."""
    L = g0.shape[0]
    B, C = lo.shape[0], lo.shape[1]
    lo_r = lo.reshape((B * C, 1) + lo.shape[2:])
    hi_r = hi.reshape((B * C, 1) + hi.shape[2:])
    if axis == 3:
        k0 = g0[::-1].reshape(1, 1, 1, L); k1 = g1[::-1].reshape(1, 1, 1, L)
        lhs_dil = (1, 2); padding = [(0, 0), (1, 1)]
    else:
        k0 = g0[::-1].reshape(1, 1, L, 1); k1 = g1[::-1].reshape(1, 1, L, 1)
        lhs_dil = (2, 1); padding = [(1, 1), (0, 0)]
    y = (lax.conv_general_dilated(lo_r, k0, (1, 1), padding,
                                  lhs_dilation=lhs_dil, dimension_numbers=_DN)
         + lax.conv_general_dilated(hi_r, k1, (1, 1), padding,
                                    lhs_dilation=lhs_dil, dimension_numbers=_DN))
    return y.reshape((B, C) + y.shape[2:])


def dwt_forward(x, J):
    h0r = _DB4_DEC_LO[::-1]
    h1r = _DB4_DEC_HI[::-1]
    highs = []
    ll = x
    for _ in range(J):
        lo_w, hi_w = _afb1d(ll, h0r, h1r, axis=3)       # rows (width) first
        ll, d_hl = _afb1d(lo_w, h0r, h1r, axis=2)       # LL, high-H/low-W
        d_lh, d_hh = _afb1d(hi_w, h0r, h1r, axis=2)     # low-H/high-W, high-H/high-W
        highs.append(jnp.stack([d_hl, d_lh, d_hh], axis=2))  # (B, C, 3, h, w)
    return ll, highs


def dwt_inverse(ll, highs):
    g0, g1 = _DB4_REC_LO, _DB4_REC_HI
    for h in highs[::-1]:
        if ll.shape[-2] > h.shape[-2]:
            ll = ll[..., :-1, :]
        if ll.shape[-1] > h.shape[-1]:
            ll = ll[..., :-1]
        d0, d1, d2 = h[:, :, 0], h[:, :, 1], h[:, :, 2]
        lo_w = _sfb1d(ll, d0, g0, g1, axis=2)
        hi_w = _sfb1d(d1, d2, g0, g1, axis=2)
        ll = _sfb1d(lo_w, hi_w, g0, g1, axis=3)
    return ll


# ----------------------------- module forward passes -----------------------------

def wave_transform_tail(x1, p):
    """WaveletUnit + residual + conv2, starting from x1 = conv1(x).  Returns (B, C, HW)."""
    cA, subbands = dwt_forward(x1, J=4)
    cA_conv = conv1x1_nchw(cA, p["wt_ll_w"], p["wt_ll_b"], "lrelu")
    sub_list = []
    for sb in subbands:                                   # per-level 1x1 conv (lane-dense)
        b_, c_, k_, h_, w_ = sb.shape
        flat = sb.reshape(b_, c_ * k_, h_ * w_)           # channel order c*3 + k (PyTorch)
        conv = conv1x1_cf(flat, p["wt_sub_w"], p["wt_sub_b"], "lrelu")
        sub_list.append(conv.reshape(b_, c_, k_, h_, w_))
    wave_out = dwt_inverse(cA_conv, sub_list)
    B, C3, H, W = x1.shape
    # Fused residual add + conv2 (single kernel, one HBM pass).
    return conv1x1_cf_residual(x1.reshape(B, C3, H * W), wave_out.reshape(B, C3, H * W),
                               p["wt_conv2_w"], p["wt_conv2_b"], "none")


def fourier_transform_tail(x1, p):
    """FourierUnit + residual + conv2, starting from x1 = conv1(x).  Returns (B, C, HW)."""
    B, C2, H, W = x1.shape
    # TODO(synk): rfft2/irfft2 have no Pallas equivalent; done with jnp.fft (ortho norm).
    ff = jnp.fft.rfft2(x1, norm="ortho")                  # (B, C2, H, Wf) complex64
    Wf = ff.shape[-1]
    Sf = H * Wf
    re = jnp.real(ff).reshape(B, C2, Sf)
    im = jnp.imag(ff).reshape(B, C2, Sf)
    ore, oim = fu_conv(re, im, p["ft_fu_w"], p["ft_fu_b"])
    z = lax.complex(ore.reshape(B, C2, H, Wf), oim.reshape(B, C2, H, Wf))
    fu_out = jnp.fft.irfft2(z, s=(H, W), norm="ortho")
    # Fused residual add + conv2.
    return conv1x1_cf_residual(x1.reshape(B, C2, H * W), fu_out.reshape(B, C2, H * W),
                               p["ft_conv2_w"], p["ft_conv2_b"], "none")


def transform_attention(x, p):
    B, C, H, W = x.shape
    S = H * W
    # Fused conv1 of both branches: x read from HBM once.
    x1w3, x1f3 = dual_conv1x1_cf(x.reshape(B, C, S),
                                 p["wt_conv1_w"], p["wt_conv1_b"],
                                 p["ft_conv1_w"], p["ft_conv1_b"], "lrelu")
    c3 = p["wt_conv1_w"].shape[0]
    c2 = p["ft_conv1_w"].shape[0]
    wavelet3 = wave_transform_tail(x1w3.reshape(B, c3, H, W), p)   # (B, C, S)
    fft3 = fourier_transform_tail(x1f3.reshape(B, c2, H, W), p)    # (B, C, S)
    # Fused concat + last conv + channel attention (no (B, 2C, HW) intermediate in HBM).
    out3 = last_conv_ca(wavelet3, fft3, p["last_w"], p["last_b"],
                        p["ca1_w"], p["ca1_b"], p["ca2_w"], p["ca2_b"])
    return out3.reshape(B, C, H, W)


# ----------------------------- deterministic parameters -----------------------------

def make_params(key, embed_dim):
    c3 = embed_dim // 3
    c2 = embed_dim // 2
    dims = {
        "wt_conv1": (embed_dim, c3),
        "wt_ll": (c3, c3),
        "wt_sub": (3 * c3, 3 * c3),
        "wt_conv2": (c3, embed_dim),
        "ft_conv1": (embed_dim, c2),
        "ft_fu": (2 * c2, 2 * c2),
        "ft_conv2": (c2, embed_dim),
        "last": (2 * embed_dim, embed_dim),
        "ca1": (embed_dim, embed_dim),
        "ca2": (embed_dim, embed_dim),
    }
    params = {}
    keys = jax.random.split(key, 2 * len(dims))
    for i, (name, (cin, cout)) in enumerate(dims.items()):
        kw, kb = keys[2 * i], keys[2 * i + 1]
        # PyTorch Conv2d weight (Cout, Cin, 1, 1) stored as (Cout, Cin) — matmul LHS.
        params[name + "_w"] = (jax.random.normal(kw, (cout, cin), jnp.float32)
                               / jnp.sqrt(jnp.float32(cin)))
        params[name + "_b"] = jax.random.normal(kb, (cout,), jnp.float32) * 0.01
    return params


if __name__ == "__main__":
    embed_dim = 12                       # divisible by 2 and 3 (matches // reductions)
    key = jax.random.PRNGKey(0)
    kx, kp = jax.random.split(key)
    x = jax.random.normal(kx, (2, embed_dim, 16, 16), jnp.float32)
    params = make_params(kp, embed_dim)

    fwd = jax.jit(transform_attention)
    out = fwd(x, params)
    out = jax.block_until_ready(out)
    assert out.shape == (2, embed_dim, 16, 16)
    assert out.dtype == jnp.float32
    assert bool(jnp.all(jnp.isfinite(out)))
    print("KERNEL_OK")
</pallas_src>

<mosaic_0001>
module attributes {stable_mosaic.version = 11 : i64} {
  func.func @_dual_conv1x1_kernel(%arg0: i32, %arg1: i32, %arg2: memref<1x12x256xf32, #tpu.memory_space<vmem>>, %arg3: memref<4x12xf32, #tpu.memory_space<vmem>>, %arg4: memref<4x1xf32, #tpu.memory_space<vmem>>, %arg5: memref<6x12xf32, #tpu.memory_space<vmem>>, %arg6: memref<6x1xf32, #tpu.memory_space<vmem>>, %arg7: memref<1x4x256xf32, #tpu.memory_space<vmem>>, %arg8: memref<1x6x256xf32, #tpu.memory_space<vmem>>) attributes {dimension_semantics = [#tpu.dimension_semantics<parallel>, #tpu.dimension_semantics<parallel>], iteration_bounds = array<i64: 2, 1>, scalar_prefetch = 0 : i64, scratch_operands = 0 : i64, tpu.core_type = #tpu.core_type<tc>, window_params = [{transform_indices = @transform_0, window_bounds = array<i64: 1, 12, 256>}, {pipeline_mode = #tpu.pipeline_mode<synchronous>, transform_indices = @transform_1, window_bounds = array<i64: 4, 12>}, {pipeline_mode = #tpu.pipeline_mode<synchronous>, transform_indices = @transform_2, window_bounds = array<i64: 4, 1>}, {pipeline_mode = #tpu.pipeline_mode<synchronous>, transform_indices = @transform_3, window_bounds = array<i64: 6, 12>}, {pipeline_mode = #tpu.pipeline_mode<synchronous>, transform_indices = @transform_4, window_bounds = array<i64: 6, 1>}, {transform_indices = @transform_5, window_bounds = array<i64: 1, 4, 256>}, {transform_indices = @transform_6, window_bounds = array<i64: 1, 6, 256>}]} {
    %c0 = arith.constant 0 : index
    %c0_0 = arith.constant 0 : index
    %c0_1 = arith.constant 0 : index
    %0 = vector.load %arg2[%c0, %c0_0, %c0_1] : memref<1x12x256xf32, #tpu.memory_space<vmem>>, vector<1x12x256xf32>
    %1 = vector.shape_cast %0 : vector<1x12x256xf32> to vector<12x256xf32>
    %c0_2 = arith.constant 0 : index
    %c0_3 = arith.constant 0 : index
    %2 = vector.load %arg3[%c0_2, %c0_3] : memref<4x12xf32, #tpu.memory_space<vmem>>, vector<4x12xf32>
    %cst = arith.constant dense<0.000000e+00> : vector<4x256xf32>
    %3 = tpu.matmul %2, %1, %cst {dimension_numbers = #tpu.dot_dimension_numbers<[1], [0], [0], [1], [0, 0, 1, 1], [], []>} : vector<4x12xf32>, vector<12x256xf32>, vector<4x256xf32> -> vector<4x256xf32>
    %c0_4 = arith.constant 0 : index
    %c0_5 = arith.constant 0 : index
    %4 = vector.load %arg4[%c0_4, %c0_5] : memref<4x1xf32, #tpu.memory_space<vmem>>, vector<4x1xf32>
    %5 = vector.broadcast %4 : vector<4x1xf32> to vector<4x256xf32>
    %6 = arith.addf %3, %5 : vector<4x256xf32>
    %c0_6 = arith.constant 0 : index
    %c0_7 = arith.constant 0 : index
    %7 = vector.load %arg5[%c0_6, %c0_7] : memref<6x12xf32, #tpu.memory_space<vmem>>, vector<6x12xf32>
    %cst_8 = arith.constant dense<0.000000e+00> : vector<6x256xf32>
    %8 = tpu.matmul %7, %1, %cst_8 {dimension_numbers = #tpu.dot_dimension_numbers<[1], [0], [0], [1], [0, 0, 1, 1], [], []>} : vector<6x12xf32>, vector<12x256xf32>, vector<6x256xf32> -> vector<6x256xf32>
    %c0_9 = arith.constant 0 : index
    %c0_10 = arith.constant 0 : index
    %9 = vector.load %arg6[%c0_9, %c0_10] : memref<6x1xf32, #tpu.memory_space<vmem>>, vector<6x1xf32>
    %10 = vector.broadcast %9 : vector<6x1xf32> to vector<6x256xf32>
    %11 = arith.addf %8, %10 : vector<6x256xf32>
    %cst_11 = arith.constant 0.000000e+00 : f32
    %12 = vector.broadcast %cst_11 : f32 to vector<4x256xf32>
    %13 = arith.cmpf oge, %6, %12 : vector<4x256xf32>
    %cst_12 = arith.constant 2.000000e-01 : f32
    %14 = vector.broadcast %cst_12 : f32 to vector<4x256xf32>
    %15 = arith.mulf %14, %6 : vector<4x256xf32>
    %16 = arith.select %13, %6, %15 : vector<4x256xi1>, vector<4x256xf32>
    %c0_13 = arith.constant 0 : index
    %c0_14 = arith.constant 0 : index
    %c0_15 = arith.constant 0 : index
    %17 = vector.load %arg7[%c0_13, %c0_14, %c0_15] : memref<1x4x256xf32, #tpu.memory_space<vmem>>, vector<1x4x256xf32>
    %18 = vector.shape_cast %17 : vector<1x4x256xf32> to vector<4x256xf32>
    %19 = vector.shape_cast %16 : vector<4x256xf32> to vector<1x4x256xf32>
    tpu.vector_store %arg7[%c0_13, %c0_14, %c0_15], %19 {strides = array<i32>} : memref<1x4x256xf32, #tpu.memory_space<vmem>>, vector<1x4x256xf32>,
    %cst_16 = arith.constant 0.000000e+00 : f32
    %20 = vector.broadcast %cst_16 : f32 to vector<6x256xf32>
    %21 = arith.cmpf oge, %11, %20 : vector<6x256xf32>
    %cst_17 = arith.constant 2.000000e-01 : f32
    %22 = vector.broadcast %cst_17 : f32 to vector<6x256xf32>
    %23 = arith.mulf %22, %11 : vector<6x256xf32>
    %24 = arith.select %21, %11, %23 : vector<6x256xi1>, vector<6x256xf32>
    %c0_18 = arith.constant 0 : index
    %c0_19 = arith.constant 0 : index
    %c0_20 = arith.constant 0 : index
    %25 = vector.load %arg8[%c0_18, %c0_19, %c0_20] : memref<1x6x256xf32, #tpu.memory_space<vmem>>, vector<1x6x256xf32>
    %26 = vector.shape_cast %25 : vector<1x6x256xf32> to vector<6x256xf32>
    %27 = vector.shape_cast %24 : vector<6x256xf32> to vector<1x6x256xf32>
    tpu.vector_store %arg8[%c0_18, %c0_19, %c0_20], %27 {strides = array<i32>} : memref<1x6x256xf32, #tpu.memory_space<vmem>>, vector<1x6x256xf32>,
    return
  }
  func.func @transform_0(%arg0: i32, %arg1: i32) -> (i32, i32, i32) {
    %c0_i32 = arith.constant 0 : i32
    %c0_i32_0 = arith.constant 0 : i32
    return %arg0, %c0_i32, %arg1 : i32, i32, i32
  }
  func.func @transform_1(%arg0: i32, %arg1: i32) -> (i32, i32) {
    %c0_i32 = arith.constant 0 : i32
    %c0_i32_0 = arith.constant 0 : i32
    %c0_i32_1 = arith.constant 0 : i32
    return %c0_i32, %c0_i32_0 : i32, i32
  }
  func.func @transform_2(%arg0: i32, %arg1: i32) -> (i32, i32) {
    %c0_i32 = arith.constant 0 : i32
    %c0_i32_0 = arith.constant 0 : i32
    %c0_i32_1 = arith.constant 0 : i32
    return %c0_i32, %c0_i32_0 : i32, i32
  }
  func.func @transform_3(%arg0: i32, %arg1: i32) -> (i32, i32) {
    %c0_i32 = arith.constant 0 : i32
    %c0_i32_0 = arith.constant 0 : i32
    %c0_i32_1 = arith.constant 0 : i32
    return %c0_i32, %c0_i32_0 : i32, i32
  }
  func.func @transform_4(%arg0: i32, %arg1: i32) -> (i32, i32) {
    %c0_i32 = arith.constant 0 : i32
    %c0_i32_0 = arith.constant 0 : i32
    %c0_i32_1 = arith.constant 0 : i32
    return %c0_i32, %c0_i32_0 : i32, i32
  }
  func.func @transform_5(%arg0: i32, %arg1: i32) -> (i32, i32, i32) {
    %c0_i32 = arith.constant 0 : i32
    %c0_i32_0 = arith.constant 0 : i32
    return %arg0, %c0_i32, %arg1 : i32, i32, i32
  }
  func.func @transform_6(%arg0: i32, %arg1: i32) -> (i32, i32, i32) {
    %c0_i32 = arith.constant 0 : i32
    %c0_i32_0 = arith.constant 0 : i32
    return %arg0, %c0_i32, %arg1 : i32, i32, i32
  }
}

module attributes {stable_mosaic.version = 11 : i64} {
  func.func @_fu_conv_kernel(%arg0: i32, %arg1: i32, %arg2: memref<1x6x256xf32, #tpu.memory_space<vmem>>, %arg3: memref<1x6x256xf32, #tpu.memory_space<vmem>>, %arg4: memref<6x6xf32, #tpu.memory_space<vmem>>, %arg5: memref<6x6xf32, #tpu.memory_space<vmem>>, %arg6: memref<6x6xf32, #tpu.memory_space<vmem>>, %arg7: memref<6x6xf32, #tpu.memory_space<vmem>>, %arg8: memref<6x1xf32, #tpu.memory_space<vmem>>, %arg9: memref<6x1xf32, #tpu.memory_space<vmem>>, %arg10: memref<1x6x256xf32, #tpu.memory_space<vmem>>, %arg11: memref<1x6x256xf32, #tpu.memory_space<vmem>>) attributes {dimension_semantics = [#tpu.dimension_semantics<parallel>, #tpu.dimension_semantics<parallel>], iteration_bounds = array<i64: 2, 1>, scalar_prefetch = 0 : i64, scratch_operands = 0 : i64, tpu.core_type = #tpu.core_type<tc>, window_params = [{transform_indices = @transform_0, window_bounds = array<i64: 1, 6, 256>}, {transform_indices = @transform_1, window_bounds = array<i64: 1, 6, 256>}, {pipeline_mode = #tpu.pipeline_mode<synchronous>, transform_indices = @transform_2, window_bounds = array<i64: 6, 6>}, {pipeline_mode = #tpu.pipeline_mode<synchronous>, transform_indices = @transform_3, window_bounds = array<i64: 6, 6>}, {pipeline_mode = #tpu.pipeline_mode<synchronous>, transform_indices = @transform_4, window_bounds = array<i64: 6, 6>}, {pipeline_mode = #tpu.pipeline_mode<synchronous>, transform_indices = @transform_5, window_bounds = array<i64: 6, 6>}, {pipeline_mode = #tpu.pipeline_mode<synchronous>, transform_indices = @transform_6, window_bounds = array<i64: 6, 1>}, {pipeline_mode = #tpu.pipeline_mode<synchronous>, transform_indices = @transform_7, window_bounds = array<i64: 6, 1>}, {transform_indices = @transform_8, window_bounds = array<i64: 1, 6, 256>}, {transform_indices = @transform_9, window_bounds = array<i64: 1, 6, 256>}]} {
    %c0 = arith.constant 0 : index
    %c0_0 = arith.constant 0 : index
    %c0_1 = arith.constant 0 : index
    %0 = vector.load %arg2[%c0, %c0_0, %c0_1] : memref<1x6x256xf32, #tpu.memory_space<vmem>>, vector<1x6x256xf32>
    %1 = vector.shape_cast %0 : vector<1x6x256xf32> to vector<6x256xf32>
    %c0_2 = arith.constant 0 : index
    %c0_3 = arith.constant 0 : index
    %c0_4 = arith.constant 0 : index
    %2 = vector.load %arg3[%c0_2, %c0_3, %c0_4] : memref<1x6x256xf32, #tpu.memory_space<vmem>>, vector<1x6x256xf32>
    %3 = vector.shape_cast %2 : vector<1x6x256xf32> to vector<6x256xf32>
    %c0_5 = arith.constant 0 : index
    %c0_6 = arith.constant 0 : index
    %4 = vector.load %arg4[%c0_5, %c0_6] : memref<6x6xf32, #tpu.memory_space<vmem>>, vector<6x6xf32>
    %cst = arith.constant dense<0.000000e+00> : vector<6x256xf32>
    %5 = tpu.matmul %4, %1, %cst {dimension_numbers = #tpu.dot_dimension_numbers<[1], [0], [0], [1], [0, 0, 1, 1], [], []>} : vector<6x6xf32>, vector<6x256xf32>, vector<6x256xf32> -> vector<6x256xf32>
    %c0_7 = arith.constant 0 : index
    %c0_8 = arith.constant 0 : index
    %6 = vector.load %arg5[%c0_7, %c0_8] : memref<6x6xf32, #tpu.memory_space<vmem>>, vector<6x6xf32>
    %cst_9 = arith.constant dense<0.000000e+00> : vector<6x256xf32>
    %7 = tpu.matmul %6, %3, %cst_9 {dimension_numbers = #tpu.dot_dimension_numbers<[1], [0], [0], [1], [0, 0, 1, 1], [], []>} : vector<6x6xf32>, vector<6x256xf32>, vector<6x256xf32> -> vector<6x256xf32>
    %8 = arith.addf %5, %7 : vector<6x256xf32>
    %c0_10 = arith.constant 0 : index
    %c0_11 = arith.constant 0 : index
    %9 = vector.load %arg8[%c0_10, %c0_11] : memref<6x1xf32, #tpu.memory_space<vmem>>, vector<6x1xf32>
    %10 = vector.broadcast %9 : vector<6x1xf32> to vector<6x256xf32>
    %11 = arith.addf %8, %10 : vector<6x256xf32>
    %c0_12 = arith.constant 0 : index
    %c0_13 = arith.constant 0 : index
    %12 = vector.load %arg6[%c0_12, %c0_13] : memref<6x6xf32, #tpu.memory_space<vmem>>, vector<6x6xf32>
    %cst_14 = arith.constant dense<0.000000e+00> : vector<6x256xf32>
    %13 = tpu.matmul %12, %1, %cst_14 {dimension_numbers = #tpu.dot_dimension_numbers<[1], [0], [0], [1], [0, 0, 1, 1], [], []>} : vector<6x6xf32>, vector<6x256xf32>, vector<6x256xf32> -> vector<6x256xf32>
    %c0_15 = arith.constant 0 : index
    %c0_16 = arith.constant 0 : index
    %14 = vector.load %arg7[%c0_15, %c0_16] : memref<6x6xf32, #tpu.memory_space<vmem>>, vector<6x6xf32>
    %cst_17 = arith.constant dense<0.000000e+00> : vector<6x256xf32>
    %15 = tpu.matmul %14, %3, %cst_17 {dimension_numbers = #tpu.dot_dimension_numbers<[1], [0], [0], [1], [0, 0, 1, 1], [], []>} : vector<6x6xf32>, vector<6x256xf32>, vector<6x256xf32> -> vector<6x256xf32>
    %16 = arith.addf %13, %15 : vector<6x256xf32>
    %c0_18 = arith.constant 0 : index
    %c0_19 = arith.constant 0 : index
    %17 = vector.load %arg9[%c0_18, %c0_19] : memref<6x1xf32, #tpu.memory_space<vmem>>, vector<6x1xf32>
    %18 = vector.broadcast %17 : vector<6x1xf32> to vector<6x256xf32>
    %19 = arith.addf %16, %18 : vector<6x256xf32>
    %cst_20 = arith.constant 0.000000e+00 : f32
    %20 = vector.broadcast %cst_20 : f32 to vector<6x256xf32>
    %21 = arith.cmpf oge, %11, %20 : vector<6x256xf32>
    %cst_21 = arith.constant 2.000000e-01 : f32
    %22 = vector.broadcast %cst_21 : f32 to vector<6x256xf32>
    %23 = arith.mulf %22, %11 : vector<6x256xf32>
    %24 = arith.select %21, %11, %23 : vector<6x256xi1>, vector<6x256xf32>
    %c0_22 = arith.constant 0 : index
    %c0_23 = arith.constant 0 : index
    %c0_24 = arith.constant 0 : index
    %25 = vector.load %arg10[%c0_22, %c0_23, %c0_24] : memref<1x6x256xf32, #tpu.memory_space<vmem>>, vector<1x6x256xf32>
    %26 = vector.shape_cast %25 : vector<1x6x256xf32> to vector<6x256xf32>
    %27 = vector.shape_cast %24 : vector<6x256xf32> to vector<1x6x256xf32>
    tpu.vector_store %arg10[%c0_22, %c0_23, %c0_24], %27 {strides = array<i32>} : memref<1x6x256xf32, #tpu.memory_space<vmem>>, vector<1x6x256xf32>,
    %cst_25 = arith.constant 0.000000e+00 : f32
    %28 = vector.broadcast %cst_25 : f32 to vector<6x256xf32>
    %29 = arith.cmpf oge, %19, %28 : vector<6x256xf32>
    %cst_26 = arith.constant 2.000000e-01 : f32
    %30 = vector.broadcast %cst_26 : f32 to vector<6x256xf32>
    %31 = arith.mulf %30, %19 : vector<6x256xf32>
    %32 = arith.select %29, %19, %31 : vector<6x256xi1>, vector<6x256xf32>
    %c0_27 = arith.constant 0 : index
    %c0_28 = arith.constant 0 : index
    %c0_29 = arith.constant 0 : index
    %33 = vector.load %arg11[%c0_27, %c0_28, %c0_29] : memref<1x6x256xf32, #tpu.memory_space<vmem>>, vector<1x6x256xf32>
    %34 = vector.shape_cast %33 : vector<1x6x256xf32> to vector<6x256xf32>
    %35 = vector.shape_cast %32 : vector<6x256xf32> to vector<1x6x256xf32>
    tpu.vector_store %arg11[%c0_27, %c0_28, %c0_29], %35 {strides = array<i32>} : memref<1x6x256xf32, #tpu.memory_space<vmem>>, vector<1x6x256xf32>,
    return
  }
  func.func @transform_0(%arg0: i32, %arg1: i32) -> (i32, i32, i32) {
    %c0_i32 = arith.constant 0 : i32
    %c0_i32_0 = arith.constant 0 : i32
    return %arg0, %c0_i32, %arg1 : i32, i32, i32
  }
  func.func @transform_1(%arg0: i32, %arg1: i32) -> (i32, i32, i32) {
    %c0_i32 = arith.constant 0 : i32
    %c0_i32_0 = arith.constant 0 : i32
    return %arg0, %c0_i32, %arg1 : i32, i32, i32
  }
  func.func @transform_2(%arg0: i32, %arg1: i32) -> (i32, i32) {
    %c0_i32 = arith.constant 0 : i32
    %c0_i32_0 = arith.constant 0 : i32
    %c0_i32_1 = arith.constant 0 : i32
    return %c0_i32, %c0_i32_0 : i32, i32
  }
  func.func @transform_3(%arg0: i32, %arg1: i32) -> (i32, i32) {
    %c0_i32 = arith.constant 0 : i32
    %c0_i32_0 = arith.constant 0 : i32
    %c0_i32_1 = arith.constant 0 : i32
    return %c0_i32, %c0_i32_0 : i32, i32
  }
  func.func @transform_4(%arg0: i32, %arg1: i32) -> (i32, i32) {
    %c0_i32 = arith.constant 0 : i32
    %c0_i32_0 = arith.constant 0 : i32
    %c0_i32_1 = arith.constant 0 : i32
    return %c0_i32, %c0_i32_0 : i32, i32
  }
  func.func @transform_5(%arg0: i32, %arg1: i32) -> (i32, i32) {
    %c0_i32 = arith.constant 0 : i32
    %c0_i32_0 = arith.constant 0 : i32
    %c0_i32_1 = arith.constant 0 : i32
    return %c0_i32, %c0_i32_0 : i32, i32
  }
  func.func @transform_6(%arg0: i32, %arg1: i32) -> (i32, i32) {
    %c0_i32 = arith.constant 0 : i32
    %c0_i32_0 = arith.constant 0 : i32
    %c0_i32_1 = arith.constant 0 : i32
    return %c0_i32, %c0_i32_0 : i32, i32
  }
  func.func @transform_7(%arg0: i32, %arg1: i32) -> (i32, i32) {
    %c0_i32 = arith.constant 0 : i32
    %c0_i32_0 = arith.constant 0 : i32
    %c0_i32_1 = arith.constant 0 : i32
    return %c0_i32, %c0_i32_0 : i32, i32
  }
  func.func @transform_8(%arg0: i32, %arg1: i32) -> (i32, i32, i32) {
    %c0_i32 = arith.constant 0 : i32
    %c0_i32_0 = arith.constant 0 : i32
    return %arg0, %c0_i32, %arg1 : i32, i32, i32
  }
  func.func @transform_9(%arg0: i32, %arg1: i32) -> (i32, i32, i32) {
    %c0_i32 = arith.constant 0 : i32
    %c0_i32_0 = arith.constant 0 : i32
    return %arg0, %c0_i32, %arg1 : i32, i32, i32
  }
}

module attributes {stable_mosaic.version = 11 : i64} {
  func.func @_conv1x1_cf_res_kernel(%arg0: i32, %arg1: i32, %arg2: memref<1x6x256xf32, #tpu.memory_space<vmem>>, %arg3: memref<1x6x256xf32, #tpu.memory_space<vmem>>, %arg4: memref<12x6xf32, #tpu.memory_space<vmem>>, %arg5: memref<12x1xf32, #tpu.memory_space<vmem>>, %arg6: memref<1x12x256xf32, #tpu.memory_space<vmem>>) attributes {dimension_semantics = [#tpu.dimension_semantics<parallel>, #tpu.dimension_semantics<parallel>], iteration_bounds = array<i64: 2, 1>, scalar_prefetch = 0 : i64, scratch_operands = 0 : i64, tpu.core_type = #tpu.core_type<tc>, window_params = [{transform_indices = @transform_0, window_bounds = array<i64: 1, 6, 256>}, {transform_indices = @transform_1, window_bounds = array<i64: 1, 6, 256>}, {pipeline_mode = #tpu.pipeline_mode<synchronous>, transform_indices = @transform_2, window_bounds = array<i64: 12, 6>}, {pipeline_mode = #tpu.pipeline_mode<synchronous>, transform_indices = @transform_3, window_bounds = array<i64: 12, 1>}, {transform_indices = @transform_4, window_bounds = array<i64: 1, 12, 256>}]} {
    %c0 = arith.constant 0 : index
    %c0_0 = arith.constant 0 : index
    %c0_1 = arith.constant 0 : index
    %0 = vector.load %arg2[%c0, %c0_0, %c0_1] : memref<1x6x256xf32, #tpu.memory_space<vmem>>, vector<1x6x256xf32>
    %1 = vector.shape_cast %0 : vector<1x6x256xf32> to vector<6x256xf32>
    %c0_2 = arith.constant 0 : index
    %c0_3 = arith.constant 0 : index
    %c0_4 = arith.constant 0 : index
    %2 = vector.load %arg3[%c0_2, %c0_3, %c0_4] : memref<1x6x256xf32, #tpu.memory_space<vmem>>, vector<1x6x256xf32>
    %3 = vector.shape_cast %2 : vector<1x6x256xf32> to vector<6x256xf32>
    %4 = arith.addf %1, %3 : vector<6x256xf32>
    %c0_5 = arith.constant 0 : index
    %c0_6 = arith.constant 0 : index
    %5 = vector.load %arg4[%c0_5, %c0_6] : memref<12x6xf32, #tpu.memory_space<vmem>>, vector<12x6xf32>
    %cst = arith.constant dense<0.000000e+00> : vector<12x256xf32>
    %6 = tpu.matmul %5, %4, %cst {dimension_numbers = #tpu.dot_dimension_numbers<[1], [0], [0], [1], [0, 0, 1, 1], [], []>} : vector<12x6xf32>, vector<6x256xf32>, vector<12x256xf32> -> vector<12x256xf32>
    %c0_7 = arith.constant 0 : index
    %c0_8 = arith.constant 0 : index
    %7 = vector.load %arg5[%c0_7, %c0_8] : memref<12x1xf32, #tpu.memory_space<vmem>>, vector<12x1xf32>
    %8 = vector.broadcast %7 : vector<12x1xf32> to vector<12x256xf32>
    %9 = arith.addf %6, %8 : vector<12x256xf32>
    %c0_9 = arith.constant 0 : index
    %c0_10 = arith.constant 0 : index
    %c0_11 = arith.constant 0 : index
    %10 = vector.load %arg6[%c0_9, %c0_10, %c0_11] : memref<1x12x256xf32, #tpu.memory_space<vmem>>, vector<1x12x256xf32>
    %11 = vector.shape_cast %10 : vector<1x12x256xf32> to vector<12x256xf32>
    %12 = vector.shape_cast %9 : vector<12x256xf32> to vector<1x12x256xf32>
    tpu.vector_store %arg6[%c0_9, %c0_10, %c0_11], %12 {strides = array<i32>} : memref<1x12x256xf32, #tpu.memory_space<vmem>>, vector<1x12x256xf32>,
    return
  }
  func.func @transform_0(%arg0: i32, %arg1: i32) -> (i32, i32, i32) {
    %c0_i32 = arith.constant 0 : i32
    %c0_i32_0 = arith.constant 0 : i32
    return %arg0, %c0_i32, %arg1 : i32, i32, i32
  }
  func.func @transform_1(%arg0: i32, %arg1: i32) -> (i32, i32, i32) {
    %c0_i32 = arith.constant 0 : i32
    %c0_i32_0 = arith.constant 0 : i32
    return %arg0, %c0_i32, %arg1 : i32, i32, i32
  }
  func.func @transform_2(%arg0: i32, %arg1: i32) -> (i32, i32) {
    %c0_i32 = arith.constant 0 : i32
    %c0_i32_0 = arith.constant 0 : i32
    %c0_i32_1 = arith.constant 0 : i32
    return %c0_i32, %c0_i32_0 : i32, i32
  }
  func.func @transform_3(%arg0: i32, %arg1: i32) -> (i32, i32) {
    %c0_i32 = arith.constant 0 : i32
    %c0_i32_0 = arith.constant 0 : i32
    %c0_i32_1 = arith.constant 0 : i32
    return %c0_i32, %c0_i32_0 : i32, i32
  }
  func.func @transform_4(%arg0: i32, %arg1: i32) -> (i32, i32, i32) {
    %c0_i32 = arith.constant 0 : i32
    %c0_i32_0 = arith.constant 0 : i32
    return %arg0, %c0_i32, %arg1 : i32, i32, i32
  }
}

module attributes {stable_mosaic.version = 11 : i64} {
  func.func @_conv1x1_cf_kernel(%arg0: i32, %arg1: i32, %arg2: memref<1x12x128xf32, #tpu.memory_space<vmem>>, %arg3: memref<12x12xf32, #tpu.memory_space<vmem>>, %arg4: memref<12x1xf32, #tpu.memory_space<vmem>>, %arg5: memref<1x12x128xf32, #tpu.memory_space<vmem>>) attributes {dimension_semantics = [#tpu.dimension_semantics<parallel>, #tpu.dimension_semantics<parallel>], iteration_bounds = array<i64: 2, 1>, scalar_prefetch = 0 : i64, scratch_operands = 0 : i64, tpu.core_type = #tpu.core_type<tc>, window_params = [{transform_indices = @transform_0, window_bounds = array<i64: 1, 12, 128>}, {pipeline_mode = #tpu.pipeline_mode<synchronous>, transform_indices = @transform_1, window_bounds = array<i64: 12, 12>}, {pipeline_mode = #tpu.pipeline_mode<synchronous>, transform_indices = @transform_2, window_bounds = array<i64: 12, 1>}, {transform_indices = @transform_3, window_bounds = array<i64: 1, 12, 128>}]} {
    %c0 = arith.constant 0 : index
    %c0_0 = arith.constant 0 : index
    %0 = vector.load %arg3[%c0, %c0_0] : memref<12x12xf32, #tpu.memory_space<vmem>>, vector<12x12xf32>
    %c0_1 = arith.constant 0 : index
    %c0_2 = arith.constant 0 : index
    %c0_3 = arith.constant 0 : index
    %1 = vector.load %arg2[%c0_1, %c0_2, %c0_3] : memref<1x12x128xf32, #tpu.memory_space<vmem>>, vector<1x12x128xf32>
    %2 = vector.shape_cast %1 : vector<1x12x128xf32> to vector<12x128xf32>
    %cst = arith.constant dense<0.000000e+00> : vector<12x128xf32>
    %3 = tpu.matmul %0, %2, %cst {dimension_numbers = #tpu.dot_dimension_numbers<[1], [0], [0], [1], [0, 0, 1, 1], [], []>} : vector<12x12xf32>, vector<12x128xf32>, vector<12x128xf32> -> vector<12x128xf32>
    %c0_4 = arith.constant 0 : index
    %c0_5 = arith.constant 0 : index
    %4 = vector.load %arg4[%c0_4, %c0_5] : memref<12x1xf32, #tpu.memory_space<vmem>>, vector<12x1xf32>
    %5 = vector.broadcast %4 : vector<12x1xf32> to vector<12x128xf32>
    %6 = arith.addf %3, %5 : vector<12x128xf32>
    %cst_6 = arith.constant 0.000000e+00 : f32
    %7 = vector.broadcast %cst_6 : f32 to vector<12x128xf32>
    %8 = arith.cmpf oge, %6, %7 : vector<12x128xf32>
    %cst_7 = arith.constant 2.000000e-01 : f32
    %9 = vector.broadcast %cst_7 : f32 to vector<12x128xf32>
    %10 = arith.mulf %9, %6 : vector<12x128xf32>
    %11 = arith.select %8, %6, %10 : vector<12x128xi1>, vector<12x128xf32>
    %c0_8 = arith.constant 0 : index
    %c0_9 = arith.constant 0 : index
    %c0_10 = arith.constant 0 : index
    %12 = vector.load %arg5[%c0_8, %c0_9, %c0_10] : memref<1x12x128xf32, #tpu.memory_space<vmem>>, vector<1x12x128xf32>
    %13 = vector.shape_cast %12 : vector<1x12x128xf32> to vector<12x128xf32>
    %14 = vector.shape_cast %11 : vector<12x128xf32> to vector<1x12x128xf32>
    tpu.vector_store %arg5[%c0_8, %c0_9, %c0_10], %14 {strides = array<i32>} : memref<1x12x128xf32, #tpu.memory_space<vmem>>, vector<1x12x128xf32>,
    return
  }
  func.func @transform_0(%arg0: i32, %arg1: i32) -> (i32, i32, i32) {
    %c0_i32 = arith.constant 0 : i32
    %c0_i32_0 = arith.constant 0 : i32
    return %arg0, %c0_i32, %arg1 : i32, i32, i32
  }
  func.func @transform_1(%arg0: i32, %arg1: i32) -> (i32, i32) {
    %c0_i32 = arith.constant 0 : i32
    %c0_i32_0 = arith.constant 0 : i32
    %c0_i32_1 = arith.constant 0 : i32
    return %c0_i32, %c0_i32_0 : i32, i32
  }
  func.func @transform_2(%arg0: i32, %arg1: i32) -> (i32, i32) {
    %c0_i32 = arith.constant 0 : i32
    %c0_i32_0 = arith.constant 0 : i32
    %c0_i32_1 = arith.constant 0 : i32
    return %c0_i32, %c0_i32_0 : i32, i32
  }
  func.func @transform_3(%arg0: i32, %arg1: i32) -> (i32, i32, i32) {
    %c0_i32 = arith.constant 0 : i32
    %c0_i32_0 = arith.constant 0 : i32
    return %arg0, %c0_i32, %arg1 : i32, i32, i32
  }
}

module attributes {stable_mosaic.version = 11 : i64} {
  func.func @_conv1x1_cf_kernel(%arg0: i32, %arg1: i32, %arg2: memref<1x4x128xf32, #tpu.memory_space<vmem>>, %arg3: memref<4x4xf32, #tpu.memory_space<vmem>>, %arg4: memref<4x1xf32, #tpu.memory_space<vmem>>, %arg5: memref<1x4x128xf32, #tpu.memory_space<vmem>>) attributes {dimension_semantics = [#tpu.dimension_semantics<parallel>, #tpu.dimension_semantics<parallel>], iteration_bounds = array<i64: 2, 1>, scalar_prefetch = 0 : i64, scratch_operands = 0 : i64, tpu.core_type = #tpu.core_type<tc>, window_params = [{transform_indices = @transform_0, window_bounds = array<i64: 1, 4, 128>}, {pipeline_mode = #tpu.pipeline_mode<synchronous>, transform_indices = @transform_1, window_bounds = array<i64: 4, 4>}, {pipeline_mode = #tpu.pipeline_mode<synchronous>, transform_indices = @transform_2, window_bounds = array<i64: 4, 1>}, {transform_indices = @transform_3, window_bounds = array<i64: 1, 4, 128>}]} {
    %c0 = arith.constant 0 : index
    %c0_0 = arith.constant 0 : index
    %0 = vector.load %arg3[%c0, %c0_0] : memref<4x4xf32, #tpu.memory_space<vmem>>, vector<4x4xf32>
    %c0_1 = arith.constant 0 : index
    %c0_2 = arith.constant 0 : index
    %c0_3 = arith.constant 0 : index
    %1 = vector.load %arg2[%c0_1, %c0_2, %c0_3] : memref<1x4x128xf32, #tpu.memory_space<vmem>>, vector<1x4x128xf32>
    %2 = vector.shape_cast %1 : vector<1x4x128xf32> to vector<4x128xf32>
    %cst = arith.constant dense<0.000000e+00> : vector<4x128xf32>
    %3 = tpu.matmul %0, %2, %cst {dimension_numbers = #tpu.dot_dimension_numbers<[1], [0], [0], [1], [0, 0, 1, 1], [], []>} : vector<4x4xf32>, vector<4x128xf32>, vector<4x128xf32> -> vector<4x128xf32>
    %c0_4 = arith.constant 0 : index
    %c0_5 = arith.constant 0 : index
    %4 = vector.load %arg4[%c0_4, %c0_5] : memref<4x1xf32, #tpu.memory_space<vmem>>, vector<4x1xf32>
    %5 = vector.broadcast %4 : vector<4x1xf32> to vector<4x128xf32>
    %6 = arith.addf %3, %5 : vector<4x128xf32>
    %cst_6 = arith.constant 0.000000e+00 : f32
    %7 = vector.broadcast %cst_6 : f32 to vector<4x128xf32>
    %8 = arith.cmpf oge, %6, %7 : vector<4x128xf32>
    %cst_7 = arith.constant 2.000000e-01 : f32
    %9 = vector.broadcast %cst_7 : f32 to vector<4x128xf32>
    %10 = arith.mulf %9, %6 : vector<4x128xf32>
    %11 = arith.select %8, %6, %10 : vector<4x128xi1>, vector<4x128xf32>
    %c0_8 = arith.constant 0 : index
    %c0_9 = arith.constant 0 : index
    %c0_10 = arith.constant 0 : index
    %12 = vector.load %arg5[%c0_8, %c0_9, %c0_10] : memref<1x4x128xf32, #tpu.memory_space<vmem>>, vector<1x4x128xf32>
    %13 = vector.shape_cast %12 : vector<1x4x128xf32> to vector<4x128xf32>
    %14 = vector.shape_cast %11 : vector<4x128xf32> to vector<1x4x128xf32>
    tpu.vector_store %arg5[%c0_8, %c0_9, %c0_10], %14 {strides = array<i32>} : memref<1x4x128xf32, #tpu.memory_space<vmem>>, vector<1x4x128xf32>,
    return
  }
  func.func @transform_0(%arg0: i32, %arg1: i32) -> (i32, i32, i32) {
    %c0_i32 = arith.constant 0 : i32
    %c0_i32_0 = arith.constant 0 : i32
    return %arg0, %c0_i32, %arg1 : i32, i32, i32
  }
  func.func @transform_1(%arg0: i32, %arg1: i32) -> (i32, i32) {
    %c0_i32 = arith.constant 0 : i32
    %c0_i32_0 = arith.constant 0 : i32
    %c0_i32_1 = arith.constant 0 : i32
    return %c0_i32, %c0_i32_0 : i32, i32
  }
  func.func @transform_2(%arg0: i32, %arg1: i32) -> (i32, i32) {
    %c0_i32 = arith.constant 0 : i32
    %c0_i32_0 = arith.constant 0 : i32
    %c0_i32_1 = arith.constant 0 : i32
    return %c0_i32, %c0_i32_0 : i32, i32
  }
  func.func @transform_3(%arg0: i32, %arg1: i32) -> (i32, i32, i32) {
    %c0_i32 = arith.constant 0 : i32
    %c0_i32_0 = arith.constant 0 : i32
    return %arg0, %c0_i32, %arg1 : i32, i32, i32
  }
}

module attributes {stable_mosaic.version = 11 : i64} {
  func.func @_conv1x1_cf_res_kernel(%arg0: i32, %arg1: i32, %arg2: memref<1x4x256xf32, #tpu.memory_space<vmem>>, %arg3: memref<1x4x256xf32, #tpu.memory_space<vmem>>, %arg4: memref<12x4xf32, #tpu.memory_space<vmem>>, %arg5: memref<12x1xf32, #tpu.memory_space<vmem>>, %arg6: memref<1x12x256xf32, #tpu.memory_space<vmem>>) attributes {dimension_semantics = [#tpu.dimension_semantics<parallel>, #tpu.dimension_semantics<parallel>], iteration_bounds = array<i64: 2, 1>, scalar_prefetch = 0 : i64, scratch_operands = 0 : i64, tpu.core_type = #tpu.core_type<tc>, window_params = [{transform_indices = @transform_0, window_bounds = array<i64: 1, 4, 256>}, {transform_indices = @transform_1, window_bounds = array<i64: 1, 4, 256>}, {pipeline_mode = #tpu.pipeline_mode<synchronous>, transform_indices = @transform_2, window_bounds = array<i64: 12, 4>}, {pipeline_mode = #tpu.pipeline_mode<synchronous>, transform_indices = @transform_3, window_bounds = array<i64: 12, 1>}, {transform_indices = @transform_4, window_bounds = array<i64: 1, 12, 256>}]} {
    %c0 = arith.constant 0 : index
    %c0_0 = arith.constant 0 : index
    %c0_1 = arith.constant 0 : index
    %0 = vector.load %arg2[%c0, %c0_0, %c0_1] : memref<1x4x256xf32, #tpu.memory_space<vmem>>, vector<1x4x256xf32>
    %1 = vector.shape_cast %0 : vector<1x4x256xf32> to vector<4x256xf32>
    %c0_2 = arith.constant 0 : index
    %c0_3 = arith.constant 0 : index
    %c0_4 = arith.constant 0 : index
    %2 = vector.load %arg3[%c0_2, %c0_3, %c0_4] : memref<1x4x256xf32, #tpu.memory_space<vmem>>, vector<1x4x256xf32>
    %3 = vector.shape_cast %2 : vector<1x4x256xf32> to vector<4x256xf32>
    %4 = arith.addf %1, %3 : vector<4x256xf32>
    %c0_5 = arith.constant 0 : index
    %c0_6 = arith.constant 0 : index
    %5 = vector.load %arg4[%c0_5, %c0_6] : memref<12x4xf32, #tpu.memory_space<vmem>>, vector<12x4xf32>
    %cst = arith.constant dense<0.000000e+00> : vector<12x256xf32>
    %6 = tpu.matmul %5, %4, %cst {dimension_numbers = #tpu.dot_dimension_numbers<[1], [0], [0], [1], [0, 0, 1, 1], [], []>} : vector<12x4xf32>, vector<4x256xf32>, vector<12x256xf32> -> vector<12x256xf32>
    %c0_7 = arith.constant 0 : index
    %c0_8 = arith.constant 0 : index
    %7 = vector.load %arg5[%c0_7, %c0_8] : memref<12x1xf32, #tpu.memory_space<vmem>>, vector<12x1xf32>
    %8 = vector.broadcast %7 : vector<12x1xf32> to vector<12x256xf32>
    %9 = arith.addf %6, %8 : vector<12x256xf32>
    %c0_9 = arith.constant 0 : index
    %c0_10 = arith.constant 0 : index
    %c0_11 = arith.constant 0 : index
    %10 = vector.load %arg6[%c0_9, %c0_10, %c0_11] : memref<1x12x256xf32, #tpu.memory_space<vmem>>, vector<1x12x256xf32>
    %11 = vector.shape_cast %10 : vector<1x12x256xf32> to vector<12x256xf32>
    %12 = vector.shape_cast %9 : vector<12x256xf32> to vector<1x12x256xf32>
    tpu.vector_store %arg6[%c0_9, %c0_10, %c0_11], %12 {strides = array<i32>} : memref<1x12x256xf32, #tpu.memory_space<vmem>>, vector<1x12x256xf32>,
    return
  }
  func.func @transform_0(%arg0: i32, %arg1: i32) -> (i32, i32, i32) {
    %c0_i32 = arith.constant 0 : i32
    %c0_i32_0 = arith.constant 0 : i32
    return %arg0, %c0_i32, %arg1 : i32, i32, i32
  }
  func.func @transform_1(%arg0: i32, %arg1: i32) -> (i32, i32, i32) {
    %c0_i32 = arith.constant 0 : i32
    %c0_i32_0 = arith.constant 0 : i32
    return %arg0, %c0_i32, %arg1 : i32, i32, i32
  }
  func.func @transform_2(%arg0: i32, %arg1: i32) -> (i32, i32) {
    %c0_i32 = arith.constant 0 : i32
    %c0_i32_0 = arith.constant 0 : i32
    %c0_i32_1 = arith.constant 0 : i32
    return %c0_i32, %c0_i32_0 : i32, i32
  }
  func.func @transform_3(%arg0: i32, %arg1: i32) -> (i32, i32) {
    %c0_i32 = arith.constant 0 : i32
    %c0_i32_0 = arith.constant 0 : i32
    %c0_i32_1 = arith.constant 0 : i32
    return %c0_i32, %c0_i32_0 : i32, i32
  }
  func.func @transform_4(%arg0: i32, %arg1: i32) -> (i32, i32, i32) {
    %c0_i32 = arith.constant 0 : i32
    %c0_i32_0 = arith.constant 0 : i32
    return %arg0, %c0_i32, %arg1 : i32, i32, i32
  }
}

module attributes {stable_mosaic.version = 11 : i64} {
  func.func @_last_ca_kernel(%arg0: i32, %arg1: i32, %arg2: i32, %arg3: memref<1x12x256xf32, #tpu.memory_space<vmem>>, %arg4: memref<1x12x256xf32, #tpu.memory_space<vmem>>, %arg5: memref<12x12xf32, #tpu.memory_space<vmem>>, %arg6: memref<12x12xf32, #tpu.memory_space<vmem>>, %arg7: memref<12x1xf32, #tpu.memory_space<vmem>>, %arg8: memref<12x12xf32, #tpu.memory_space<vmem>>, %arg9: memref<12x1xf32, #tpu.memory_space<vmem>>, %arg10: memref<12x12xf32, #tpu.memory_space<vmem>>, %arg11: memref<12x1xf32, #tpu.memory_space<vmem>>, %arg12: memref<1x12x256xf32, #tpu.memory_space<vmem>>, %arg13: memref<12x1xf32, #tpu.memory_space<vmem>>, %arg14: memref<12x1xf32, #tpu.memory_space<vmem>>) attributes {dimension_semantics = [#tpu.dimension_semantics<parallel>, #tpu.dimension_semantics<arbitrary>, #tpu.dimension_semantics<arbitrary>], iteration_bounds = array<i64: 2, 2, 1>, scalar_prefetch = 0 : i64, scratch_operands = 2 : i64, tpu.core_type = #tpu.core_type<tc>, window_params = [{transform_indices = @transform_0, window_bounds = array<i64: 1, 12, 256>}, {transform_indices = @transform_1, window_bounds = array<i64: 1, 12, 256>}, {pipeline_mode = #tpu.pipeline_mode<synchronous>, transform_indices = @transform_2, window_bounds = array<i64: 12, 12>}, {pipeline_mode = #tpu.pipeline_mode<synchronous>, transform_indices = @transform_3, window_bounds = array<i64: 12, 12>}, {pipeline_mode = #tpu.pipeline_mode<synchronous>, transform_indices = @transform_4, window_bounds = array<i64: 12, 1>}, {pipeline_mode = #tpu.pipeline_mode<synchronous>, transform_indices = @transform_5, window_bounds = array<i64: 12, 12>}, {pipeline_mode = #tpu.pipeline_mode<synchronous>, transform_indices = @transform_6, window_bounds = array<i64: 12, 1>}, {pipeline_mode = #tpu.pipeline_mode<synchronous>, transform_indices = @transform_7, window_bounds = array<i64: 12, 12>}, {pipeline_mode = #tpu.pipeline_mode<synchronous>, transform_indices = @transform_8, window_bounds = array<i64: 12, 1>}, {transform_indices = @transform_9, window_bounds = array<i64: 1, 12, 256>}]} {
    %c0_i32 = arith.constant 0 : i32
    %0 = arith.cmpi eq, %arg1, %c0_i32 : i32
    %c0_i32_0 = arith.constant 0 : i32
    %1 = arith.cmpi eq, %arg2, %c0_i32_0 : i32
    %2 = arith.andi %0, %1 : i1
    %3 = arith.extui %2 : i1 to i32
    %c0_i32_1 = arith.constant 0 : i32
    %4 = arith.cmpi ne, %3, %c0_i32_1 : i32
    scf.if %4 {
      %cst = arith.constant 0.000000e+00 : f32
      %16 = vector.broadcast %cst : f32 to vector<12x1xf32>
      %c0 = arith.constant 0 : index
      %c0_8 = arith.constant 0 : index
      %17 = vector.load %arg13[%c0, %c0_8] : memref<12x1xf32, #tpu.memory_space<vmem>>, vector<12x1xf32>
      tpu.vector_store %arg13[%c0, %c0_8], %16 {strides = array<i32>} : memref<12x1xf32, #tpu.memory_space<vmem>>, vector<12x1xf32>,
    } else {
    }
    %c0_i32_2 = arith.constant 0 : i32
    %5 = arith.cmpi eq, %arg1, %c0_i32_2 : i32
    %6 = arith.extui %5 : i1 to i32
    %c0_i32_3 = arith.constant 0 : i32
    %7 = arith.cmpi ne, %6, %c0_i32_3 : i32
    scf.if %7 {
      %c0 = arith.constant 0 : index
      %c0_8 = arith.constant 0 : index
      %16 = vector.load %arg5[%c0, %c0_8] : memref<12x12xf32, #tpu.memory_space<vmem>>, vector<12x12xf32>
      %c0_9 = arith.constant 0 : index
      %c0_10 = arith.constant 0 : index
      %c0_11 = arith.constant 0 : index
      %17 = vector.load %arg3[%c0_9, %c0_10, %c0_11] : memref<1x12x256xf32, #tpu.memory_space<vmem>>, vector<1x12x256xf32>
      %18 = vector.shape_cast %17 : vector<1x12x256xf32> to vector<12x256xf32>
      %cst = arith.constant dense<0.000000e+00> : vector<12x256xf32>
      %19 = tpu.matmul %16, %18, %cst {dimension_numbers = #tpu.dot_dimension_numbers<[1], [0], [0], [1], [0, 0, 1, 1], [], []>} : vector<12x12xf32>, vector<12x256xf32>, vector<12x256xf32> -> vector<12x256xf32>
      %c0_12 = arith.constant 0 : index
      %c0_13 = arith.constant 0 : index
      %20 = vector.load %arg6[%c0_12, %c0_13] : memref<12x12xf32, #tpu.memory_space<vmem>>, vector<12x12xf32>
      %c0_14 = arith.constant 0 : index
      %c0_15 = arith.constant 0 : index
      %c0_16 = arith.constant 0 : index
      %21 = vector.load %arg4[%c0_14, %c0_15, %c0_16] : memref<1x12x256xf32, #tpu.memory_space<vmem>>, vector<1x12x256xf32>
      %22 = vector.shape_cast %21 : vector<1x12x256xf32> to vector<12x256xf32>
      %cst_17 = arith.constant dense<0.000000e+00> : vector<12x256xf32>
      %23 = tpu.matmul %20, %22, %cst_17 {dimension_numbers = #tpu.dot_dimension_numbers<[1], [0], [0], [1], [0, 0, 1, 1], [], []>} : vector<12x12xf32>, vector<12x256xf32>, vector<12x256xf32> -> vector<12x256xf32>
      %24 = arith.addf %19, %23 : vector<12x256xf32>
      %c0_18 = arith.constant 0 : index
      %c0_19 = arith.constant 0 : index
      %25 = vector.load %arg7[%c0_18, %c0_19] : memref<12x1xf32, #tpu.memory_space<vmem>>, vector<12x1xf32>
      %26 = vector.broadcast %25 : vector<12x1xf32> to vector<12x256xf32>
      %27 = arith.addf %24, %26 : vector<12x256xf32>
      %c256_i32 = arith.constant 256 : i32
      %28 = arith.muli %arg2, %c256_i32 : i32
      %29 = tpu.iota {dimensions = array<i32: 1>} : vector<12x256xi32>
      %30 = vector.broadcast %28 : i32 to vector<12x256xi32>
      %31 = arith.addi %30, %29 : vector<12x256xi32>
      %c256_i32_20 = arith.constant 256 : i32
      %32 = vector.broadcast %c256_i32_20 : i32 to vector<12x256xi32>
      %33 = arith.cmpi slt, %31, %32 : vector<12x256xi32>
      %cst_21 = arith.constant 0.000000e+00 : f32
      %34 = vector.broadcast %cst_21 : f32 to vector<12x256xf32>
      %35 = arith.select %33, %27, %34 : vector<12x256xi1>, vector<12x256xf32>
      %c0_22 = arith.constant 0 : index
      %c0_23 = arith.constant 0 : index
      %36 = vector.load %arg13[%c0_22, %c0_23] : memref<12x1xf32, #tpu.memory_space<vmem>>, vector<12x1xf32>
      %cst_24 = arith.constant dense<0.000000e+00> : vector<12xf32>
      %37 = vector.multi_reduction <add>, %35, %cst_24 [1] : vector<12x256xf32> to vector<12xf32>
      %38 = vector.shape_cast %37 : vector<12xf32> to vector<12x1xf32>
      %39 = arith.addf %36, %38 : vector<12x1xf32>
      %c0_25 = arith.constant 0 : index
      %c0_26 = arith.constant 0 : index
      %40 = vector.load %arg13[%c0_25, %c0_26] : memref<12x1xf32, #tpu.memory_space<vmem>>, vector<12x1xf32>
      tpu.vector_store %arg13[%c0_25, %c0_26], %39 {strides = array<i32>} : memref<12x1xf32, #tpu.memory_space<vmem>>, vector<12x1xf32>,
    } else {
    }
    %c0_i32_4 = arith.constant 0 : i32
    %8 = arith.cmpi eq, %arg1, %c0_i32_4 : i32
    %c0_i32_5 = arith.constant 0 : i32
    %9 = arith.cmpi eq, %arg2, %c0_i32_5 : i32
    %10 = arith.andi %8, %9 : i1
    %11 = arith.extui %10 : i1 to i32
    %c0_i32_6 = arith.constant 0 : i32
    %12 = arith.cmpi ne, %11, %c0_i32_6 : i32
    scf.if %12 {
      %c0 = arith.constant 0 : index
      %c0_8 = arith.constant 0 : index
      %16 = vector.load %arg13[%c0, %c0_8] : memref<12x1xf32, #tpu.memory_space<vmem>>, vector<12x1xf32>
      %cst = arith.constant 3.906250e-03 : f32
      %17 = vector.broadcast %cst : f32 to vector<12x1xf32>
      %18 = arith.mulf %16, %17 : vector<12x1xf32>
      %c0_9 = arith.constant 0 : index
      %c0_10 = arith.constant 0 : index
      %19 = vector.load %arg8[%c0_9, %c0_10] : memref<12x12xf32, #tpu.memory_space<vmem>>, vector<12x12xf32>
      %cst_11 = arith.constant dense<0.000000e+00> : vector<12x1xf32>
      %20 = tpu.matmul %19, %18, %cst_11 {dimension_numbers = #tpu.dot_dimension_numbers<[1], [0], [0], [1], [0, 0, 1, 1], [], []>} : vector<12x12xf32>, vector<12x1xf32>, vector<12x1xf32> -> vector<12x1xf32>
      %c0_12 = arith.constant 0 : index
      %c0_13 = arith.constant 0 : index
      %21 = vector.load %arg9[%c0_12, %c0_13] : memref<12x1xf32, #tpu.memory_space<vmem>>, vector<12x1xf32>
      %22 = arith.addf %20, %21 : vector<12x1xf32>
      %cst_14 = arith.constant 0.000000e+00 : f32
      %23 = vector.broadcast %cst_14 : f32 to vector<12x1xf32>
      %24 = arith.maximumf %22, %23 : vector<12x1xf32>
      %c0_15 = arith.constant 0 : index
      %c0_16 = arith.constant 0 : index
      %25 = vector.load %arg10[%c0_15, %c0_16] : memref<12x12xf32, #tpu.memory_space<vmem>>, vector<12x12xf32>
      %cst_17 = arith.constant dense<0.000000e+00> : vector<12x1xf32>
      %26 = tpu.matmul %25, %24, %cst_17 {dimension_numbers = #tpu.dot_dimension_numbers<[1], [0], [0], [1], [0, 0, 1, 1], [], []>} : vector<12x12xf32>, vector<12x1xf32>, vector<12x1xf32> -> vector<12x1xf32>
      %c0_18 = arith.constant 0 : index
      %c0_19 = arith.constant 0 : index
      %27 = vector.load %arg11[%c0_18, %c0_19] : memref<12x1xf32, #tpu.memory_space<vmem>>, vector<12x1xf32>
      %28 = arith.addf %26, %27 : vector<12x1xf32>
      %cst_20 = arith.constant 0.000000e+00 : f32
      %29 = vector.broadcast %cst_20 : f32 to vector<12x1xf32>
      %30 = arith.subf %29, %28 : vector<12x1xf32>
      %31 = math.exp %30 : vector<12x1xf32>
      %cst_21 = arith.constant 1.000000e+00 : f32
      %32 = vector.broadcast %cst_21 : f32 to vector<12x1xf32>
      %33 = arith.addf %32, %31 : vector<12x1xf32>
      %cst_22 = arith.constant 1.000000e+00 : f32
      %34 = vector.broadcast %cst_22 : f32 to vector<12x1xf32>
      %35 = arith.divf %34, %33 : vector<12x1xf32>
      %c0_23 = arith.constant 0 : index
      %c0_24 = arith.constant 0 : index
      %36 = vector.load %arg14[%c0_23, %c0_24] : memref<12x1xf32, #tpu.memory_space<vmem>>, vector<12x1xf32>
      tpu.vector_store %arg14[%c0_23, %c0_24], %35 {strides = array<i32>} : memref<12x1xf32, #tpu.memory_space<vmem>>, vector<12x1xf32>,
    } else {
    }
    %c1_i32 = arith.constant 1 : i32
    %13 = arith.cmpi eq, %arg1, %c1_i32 : i32
    %14 = arith.extui %13 : i1 to i32
    %c0_i32_7 = arith.constant 0 : i32
    %15 = arith.cmpi ne, %14, %c0_i32_7 : i32
    scf.if %15 {
      %c0 = arith.constant 0 : index
      %c0_8 = arith.constant 0 : index
      %16 = vector.load %arg5[%c0, %c0_8] : memref<12x12xf32, #tpu.memory_space<vmem>>, vector<12x12xf32>
      %c0_9 = arith.constant 0 : index
      %c0_10 = arith.constant 0 : index
      %c0_11 = arith.constant 0 : index
      %17 = vector.load %arg3[%c0_9, %c0_10, %c0_11] : memref<1x12x256xf32, #tpu.memory_space<vmem>>, vector<1x12x256xf32>
      %18 = vector.shape_cast %17 : vector<1x12x256xf32> to vector<12x256xf32>
      %cst = arith.constant dense<0.000000e+00> : vector<12x256xf32>
      %19 = tpu.matmul %16, %18, %cst {dimension_numbers = #tpu.dot_dimension_numbers<[1], [0], [0], [1], [0, 0, 1, 1], [], []>} : vector<12x12xf32>, vector<12x256xf32>, vector<12x256xf32> -> vector<12x256xf32>
      %c0_12 = arith.constant 0 : index
      %c0_13 = arith.constant 0 : index
      %20 = vector.load %arg6[%c0_12, %c0_13] : memref<12x12xf32, #tpu.memory_space<vmem>>, vector<12x12xf32>
      %c0_14 = arith.constant 0 : index
      %c0_15 = arith.constant 0 : index
      %c0_16 = arith.constant 0 : index
      %21 = vector.load %arg4[%c0_14, %c0_15, %c0_16] : memref<1x12x256xf32, #tpu.memory_space<vmem>>, vector<1x12x256xf32>
      %22 = vector.shape_cast %21 : vector<1x12x256xf32> to vector<12x256xf32>
      %cst_17 = arith.constant dense<0.000000e+00> : vector<12x256xf32>
      %23 = tpu.matmul %20, %22, %cst_17 {dimension_numbers = #tpu.dot_dimension_numbers<[1], [0], [0], [1], [0, 0, 1, 1], [], []>} : vector<12x12xf32>, vector<12x256xf32>, vector<12x256xf32> -> vector<12x256xf32>
      %24 = arith.addf %19, %23 : vector<12x256xf32>
      %c0_18 = arith.constant 0 : index
      %c0_19 = arith.constant 0 : index
      %25 = vector.load %arg7[%c0_18, %c0_19] : memref<12x1xf32, #tpu.memory_space<vmem>>, vector<12x1xf32>
      %26 = vector.broadcast %25 : vector<12x1xf32> to vector<12x256xf32>
      %27 = arith.addf %24, %26 : vector<12x256xf32>
      %c0_20 = arith.constant 0 : index
      %c0_21 = arith.constant 0 : index
      %28 = vector.load %arg14[%c0_20, %c0_21] : memref<12x1xf32, #tpu.memory_space<vmem>>, vector<12x1xf32>
      %29 = vector.broadcast %28 : vector<12x1xf32> to vector<12x256xf32>
      %30 = arith.mulf %27, %29 : vector<12x256xf32>
      %c0_22 = arith.constant 0 : index
      %c0_23 = arith.constant 0 : index
      %c0_24 = arith.constant 0 : index
      %31 = vector.load %arg12[%c0_22, %c0_23, %c0_24] : memref<1x12x256xf32, #tpu.memory_space<vmem>>, vector<1x12x256xf32>
      %32 = vector.shape_cast %31 : vector<1x12x256xf32> to vector<12x256xf32>
      %33 = vector.shape_cast %30 : vector<12x256xf32> to vector<1x12x256xf32>
      tpu.vector_store %arg12[%c0_22, %c0_23, %c0_24], %33 {strides = array<i32>} : memref<1x12x256xf32, #tpu.memory_space<vmem>>, vector<1x12x256xf32>,
    } else {
    }
    return
  }
  func.func @transform_0(%arg0: i32, %arg1: i32, %arg2: i32) -> (i32, i32, i32) {
    %c0_i32 = arith.constant 0 : i32
    %c0_i32_0 = arith.constant 0 : i32
    return %arg0, %c0_i32, %arg2 : i32, i32, i32
  }
  func.func @transform_1(%arg0: i32, %arg1: i32, %arg2: i32) -> (i32, i32, i32) {
    %c0_i32 = arith.constant 0 : i32
    %c0_i32_0 = arith.constant 0 : i32
    return %arg0, %c0_i32, %arg2 : i32, i32, i32
  }
  func.func @transform_2(%arg0: i32, %arg1: i32, %arg2: i32) -> (i32, i32) {
    %c0_i32 = arith.constant 0 : i32
    %c0_i32_0 = arith.constant 0 : i32
    %c0_i32_1 = arith.constant 0 : i32
    return %c0_i32, %c0_i32_0 : i32, i32
  }
  func.func @transform_3(%arg0: i32, %arg1: i32, %arg2: i32) -> (i32, i32) {
    %c0_i32 = arith.constant 0 : i32
    %c0_i32_0 = arith.constant 0 : i32
    %c0_i32_1 = arith.constant 0 : i32
    return %c0_i32, %c0_i32_0 : i32, i32
  }
  func.func @transform_4(%arg0: i32, %arg1: i32, %arg2: i32) -> (i32, i32) {
    %c0_i32 = arith.constant 0 : i32
    %c0_i32_0 = arith.constant 0 : i32
    %c0_i32_1 = arith.constant 0 : i32
    return %c0_i32, %c0_i32_0 : i32, i32
  }
  func.func @transform_5(%arg0: i32, %arg1: i32, %arg2: i32) -> (i32, i32) {
    %c0_i32 = arith.constant 0 : i32
    %c0_i32_0 = arith.constant 0 : i32
    %c0_i32_1 = arith.constant 0 : i32
    return %c0_i32, %c0_i32_0 : i32, i32
  }
  func.func @transform_6(%arg0: i32, %arg1: i32, %arg2: i32) -> (i32, i32) {
    %c0_i32 = arith.constant 0 : i32
    %c0_i32_0 = arith.constant 0 : i32
    %c0_i32_1 = arith.constant 0 : i32
    return %c0_i32, %c0_i32_0 : i32, i32
  }
  func.func @transform_7(%arg0: i32, %arg1: i32, %arg2: i32) -> (i32, i32) {
    %c0_i32 = arith.constant 0 : i32
    %c0_i32_0 = arith.constant 0 : i32
    %c0_i32_1 = arith.constant 0 : i32
    return %c0_i32, %c0_i32_0 : i32, i32
  }
  func.func @transform_8(%arg0: i32, %arg1: i32, %arg2: i32) -> (i32, i32) {
    %c0_i32 = arith.constant 0 : i32
    %c0_i32_0 = arith.constant 0 : i32
    %c0_i32_1 = arith.constant 0 : i32
    return %c0_i32, %c0_i32_0 : i32, i32
  }
  func.func @transform_9(%arg0: i32, %arg1: i32, %arg2: i32) -> (i32, i32, i32) {
    %0 = arith.muli %arg2, %arg1 : i32
    %c0_i32 = arith.constant 0 : i32
    %c0_i32_0 = arith.constant 0 : i32
    return %arg0, %c0_i32, %0 : i32, i32, i32
  }
}

</mosaic_0001>

<llo_original>
// kernel: transform_attention.10
$region0: #{transform_attention.10}
  #allocation0 [shape = 'u32[]', space=smem, size = 0x4, offset = 0x4, fixed_abs, tag = 'smem constant byte address 0x4 - core index']
  #allocation1 [shape = 'u32[72,128]{1,0:T(1,128)}', space=vmem, size = 0x9000, scoped, tag = 'internal scratch']
  %s0 = inlined_call_operand.vmem [shape: f32[2,12,256], index: 0, kind: input, shape index: {}]
  %s1 = inlined_call_operand.vmem [shape: f32[4,12], index: 1, kind: input, shape index: {}]
  %s2 = inlined_call_operand.vmem [shape: f32[4,1], index: 2, kind: input, shape index: {}]
  %s3 = inlined_call_operand.vmem [shape: f32[6,12], index: 3, kind: input, shape index: {}]
  %s4 = inlined_call_operand.vmem [shape: f32[6,1], index: 4, kind: input, shape index: {}]
  %s5 = inlined_call_operand.vmem [shape: f32[2,4,256], index: 5, kind: output, shape index: {0}]
  %s6 = inlined_call_operand.vmem [shape: f32[2,6,256], index: 6, kind: output, shape index: {1}]
  %7 = xla_tuple %s5, %s6
  %s8 = sld [smem:[#allocation0]]
  $region61: #{transform_attention.10} parent=0
    _
  %s10 = ssub.s32 1, %s8
  %s11 = scalar_select 0, %s10, %s8
  loop: start=0, step=1, limit=4
  $region2: #{transform_attention.10} parent=0 // loop_pre_header
    _
  $region3: #{transform_attention.10} parent=0 // loop_header
    %s13 = sphi 0, %s17
    %p14 = scmp.ge.s32.totalorder %s13, 4
    %s20 = sphi 0, %s32
    %s21 = sphi 0, %s28
    %s22 = sphi 0, %s20
    %s23 = sphi 0, %s21
    %s24 = sphi 0, %s22
    %s25 = sphi 0, %s23
    %s37 = sphi 0, %s39
    %s40 = sphi 0, %s37
    %s41 = sphi 0, %s40
    %s57 = sphi 0, %s41
    %s61 = sphi 0, %s61
    %s63 = sphi 0, %s61
    %s64 = sphi 0, %s63
    %s78 = sphi 0, %s64
    %s82 = sphi 0, %s82
    %s84 = sphi 0, %s82
    %s85 = sphi 0, %s84
    %s99 = sphi 0, %s85
    %s103 = sphi 0, %s103
    %s105 = sphi 0, %s103
    %s106 = sphi 0, %s105
    %s120 = sphi 0, %s106
    %s124 = sphi 0, %s124
    %s126 = sphi 0, %s124
    %s127 = sphi 0, %s126
    %s141 = sphi 0, %s127
    %s149 = sphi 0, %s151
    %s152 = sphi 0, %s149
    %s153 = sphi 0, %s152
    %s169 = sphi 0, %s153
    %s177 = sphi 0, %s179
    %s180 = sphi 0, %s177
    %s181 = sphi 0, %s180
    %s197 = sphi 0, %s181
  $region4: #{transform_attention.10} parent=0 // loop_header_branch
    %16 = sbr.rel (%p14) target = $region8
  $region5: #{transform_attention.10} parent=0 // loop_body
    %s18 = ssub.s32 %s13, 1
    %s19 = ssub.s32 %s13, 2
    %s26 = sadd.s32 1, %s21
    %p27 = scmp.ge.s32.totalorder %s26, 1
    %s28 = scalar_select %p27, 0, %s26
    %s29 = sadd.s32 1, %s20
    %s30 = scalar_select %p27, %s29, %s20
    %p31 = scmp.ge.s32.totalorder %s30, 2
    %s32 = scalar_select %p31, 0, %s30
    %s33 = ssub.s32 %s20, %s32
    %s34 = ssub.s32 %s21, %s28
    %s35 = sor.u32 %s33, %s34
    %p36 = scmp.eq.s32.totalorder %s35, 0
    %s38 = sadd.s32 %s37, 1
    %s39 = scalar_select %p36, %s37, %s38
    %p42 = pneg %p36
    %p43 = scmp.eq.s32.totalorder %s13, 1
    %p44 = por %p42, %p43
    %p45 = scmp.ne.s32.totalorder %s37, %s40
    %p46 = scmp.eq.s32.totalorder %s13, 0
    %p47 = por %p45, %p46
    %p48 = scmp.ne.s32.totalorder %s37, %s40
    %p49 = scmp.eq.s32.totalorder %s18, 1
    %p50 = por %p48, %p49
    %p51 = scmp.ne.s32.totalorder %s40, %s41
    %p52 = scmp.eq.s32.totalorder %s18, 0
    %p53 = por %p51, %p52
    %p54 = scmp.ne.s32.totalorder %s40, %s41
    %p55 = scmp.eq.s32.totalorder %s19, 1
    %p56 = por %p54, %p55
    %p58 = scmp.ne.s32.totalorder %s41, %s57
    %p59 = scmp.eq.s32.totalorder %s19, 0
    %p60 = por %p58, %p59
    %s62 = sadd.s32 %s61, 1
    %p65 = scmp.eq.s32.totalorder %s13, 1
    %p66 = scmp.ne.s32.totalorder %s61, %s63
    %p67 = scmp.eq.s32.totalorder %s13, 0
    %p68 = por %p66, %p67
    %p69 = scmp.ne.s32.totalorder %s61, %s63
    %p70 = scmp.eq.s32.totalorder %s18, 1
    %p71 = por %p69, %p70
    %p72 = scmp.ne.s32.totalorder %s63, %s64
    %p73 = scmp.eq.s32.totalorder %s18, 0
    %p74 = por %p72, %p73
    %p75 = scmp.ne.s32.totalorder %s63, %s64
    %p76 = scmp.eq.s32.totalorder %s19, 1
    %p77 = por %p75, %p76
    %p79 = scmp.ne.s32.totalorder %s64, %s78
    %p80 = scmp.eq.s32.totalorder %s19, 0
    %p81 = por %p79, %p80
    %s83 = sadd.s32 %s82, 1
    %p86 = scmp.eq.s32.totalorder %s13, 1
    %p87 = scmp.ne.s32.totalorder %s82, %s84
    %p88 = scmp.eq.s32.totalorder %s13, 0
    %p89 = por %p87, %p88
    %p90 = scmp.ne.s32.totalorder %s82, %s84
    %p91 = scmp.eq.s32.totalorder %s18, 1
    %p92 = por %p90, %p91
    %p93 = scmp.ne.s32.totalorder %s84, %s85
    %p94 = scmp.eq.s32.totalorder %s18, 0
    %p95 = por %p93, %p94
    %p96 = scmp.ne.s32.totalorder %s84, %s85
    %p97 = scmp.eq.s32.totalorder %s19, 1
    %p98 = por %p96, %p97
    %p100 = scmp.ne.s32.totalorder %s85, %s99
    %p101 = scmp.eq.s32.totalorder %s19, 0
    %p102 = por %p100, %p101
    %s104 = sadd.s32 %s103, 1
    %p107 = scmp.eq.s32.totalorder %s13, 1
    %p108 = scmp.ne.s32.totalorder %s103, %s105
    %p109 = scmp.eq.s32.totalorder %s13, 0
    %p110 = por %p108, %p109
    %p111 = scmp.ne.s32.totalorder %s103, %s105
    %p112 = scmp.eq.s32.totalorder %s18, 1
    %p113 = por %p111, %p112
    %p114 = scmp.ne.s32.totalorder %s105, %s106
    %p115 = scmp.eq.s32.totalorder %s18, 0
    %p116 = por %p114, %p115
    %p117 = scmp.ne.s32.totalorder %s105, %s106
    %p118 = scmp.eq.s32.totalorder %s19, 1
    %p119 = por %p117, %p118
    %p121 = scmp.ne.s32.totalorder %s106, %s120
    %p122 = scmp.eq.s32.totalorder %s19, 0
    %p123 = por %p121, %p122
    %s125 = sadd.s32 %s124, 1
    %p128 = scmp.eq.s32.totalorder %s13, 1
    %p129 = scmp.ne.s32.totalorder %s124, %s126
    %p130 = scmp.eq.s32.totalorder %s13, 0
    %p131 = por %p129, %p130
    %p132 = scmp.ne.s32.totalorder %s124, %s126
    %p133 = scmp.eq.s32.totalorder %s18, 1
    %p134 = por %p132, %p133
    %p135 = scmp.ne.s32.totalorder %s126, %s127
    %p136 = scmp.eq.s32.totalorder %s18, 0
    %p137 = por %p135, %p136
    %p138 = scmp.ne.s32.totalorder %s126, %s127
    %p139 = scmp.eq.s32.totalorder %s19, 1
    %p140 = por %p138, %p139
    %p142 = scmp.ne.s32.totalorder %s127, %s141
    %p143 = scmp.eq.s32.totalorder %s19, 0
    %p144 = por %p142, %p143
    %s145 = ssub.s32 %s20, %s32
    %s146 = ssub.s32 %s21, %s28
    %s147 = sor.u32 %s145, %s146
    %p148 = scmp.eq.s32.totalorder %s147, 0
    %s150 = sadd.s32 %s149, 1
    %s151 = scalar_select %p148, %s149, %s150
    %p154 = pneg %p148
    %p155 = scmp.eq.s32.totalorder %s13, 1
    %p156 = por %p154, %p155
    %p157 = scmp.ne.s32.totalorder %s149, %s152
    %p158 = scmp.eq.s32.totalorder %s13, 0
    %p159 = por %p157, %p158
    %p160 = scmp.ne.s32.totalorder %s149, %s152
    %p161 = scmp.eq.s32.totalorder %s18, 1
    %p162 = por %p160, %p161
    %p163 = scmp.ne.s32.totalorder %s152, %s153
    %p164 = scmp.eq.s32.totalorder %s18, 0
    %p165 = por %p163, %p164
    %p166 = scmp.ne.s32.totalorder %s152, %s153
    %p167 = scmp.eq.s32.totalorder %s19, 1
    %p168 = por %p166, %p167
    %p170 = scmp.ne.s32.totalorder %s153, %s169
    %p171 = scmp.eq.s32.totalorder %s19, 0
    %p172 = por %p170, %p171
    %s173 = ssub.s32 %s20, %s32
    %s174 = ssub.s32 %s21, %s28
    %s175 = sor.u32 %s173, %s174
    %p176 = scmp.eq.s32.totalorder %s175, 0
    %s178 = sadd.s32 %s177, 1
    %s179 = scalar_select %p176, %s177, %s178
    %p182 = pneg %p176
    %p183 = scmp.eq.s32.totalorder %s13, 1
    %p184 = por %p182, %p183
    %p185 = scmp.ne.s32.totalorder %s177, %s180
    %p186 = scmp.eq.s32.totalorder %s13, 0
    %p187 = por %p185, %p186
    %p188 = scmp.ne.s32.totalorder %s177, %s180
    %p189 = scmp.eq.s32.totalorder %s18, 1
    %p190 = por %p188, %p189
    %p191 = scmp.ne.s32.totalorder %s180, %s181
    %p192 = scmp.eq.s32.totalorder %s18, 0
    %p193 = por %p191, %p192
    %p194 = scmp.ne.s32.totalorder %s180, %s181
    %p195 = scmp.eq.s32.totalorder %s19, 1
    %p196 = por %p194, %p195
    %p198 = scmp.ne.s32.totalorder %s181, %s197
    %p199 = scmp.eq.s32.totalorder %s19, 0
    %p200 = por %p198, %p199
    %p201 = scmp.le.s32.totalorder 1, %s13
    %p202 = scmp.lt.s32.totalorder %s13, 3
    %p203 = pnand %p201, %p202
    %p204 = pneg %p203
    // Predicated region
    $region9: #{transform_attention.10} parent=5 // pred_check
      _
    $region10: #{transform_attention.10} parent=5 // pred_check_branch
      %206 = sbr.rel (%p203) target = $region12
    $region11: #{transform_attention.10} parent=5 // pred_region
      %s207 = ssub.s32 %s13, 1
      // Predicated region
      $region13: #{transform_attention.10} parent=11 // pred_check
        %p208 = pneg %p74
      $region14: #{transform_attention.10} parent=11 // pred_check_branch
        %210 = sbr.rel (%p208) target = $region16
      $region15: #{transform_attention.10} parent=11 // pred_region
        _
      $region16: #{transform_attention.10} parent=11 // pred_fallthru
        _
      // Predicated region
      $region17: #{transform_attention.10} parent=11 // pred_check
        %p211 = pneg %p95
      $region18: #{transform_attention.10} parent=11 // pred_check_branch
        %213 = sbr.rel (%p211) target = $region20
      $region19: #{transform_attention.10} parent=11 // pred_region
        _
      $region20: #{transform_attention.10} parent=11 // pred_fallthru
        _
      // Predicated region
      $region21: #{transform_attention.10} parent=11 // pred_check
        %p214 = pneg %p116
      $region22: #{transform_attention.10} parent=11 // pred_check_branch
        %216 = sbr.rel (%p214) target = $region24
      $region23: #{transform_attention.10} parent=11 // pred_region
        _
      $region24: #{transform_attention.10} parent=11 // pred_fallthru
        _
      // Predicated region
      $region25: #{transform_attention.10} parent=11 // pred_check
        %p217 = pneg %p137
      $region26: #{transform_attention.10} parent=11 // pred_check_branch
        %219 = sbr.rel (%p217) target = $region28
      $region27: #{transform_attention.10} parent=11 // pred_region
        _
      $region28: #{transform_attention.10} parent=11 // pred_fallthru
        _
    $region12: #{transform_attention.10} parent=5 // pred_fallthru
      _
    %p220 = scmp.lt.s32.totalorder %s13, 2
    // Predicated region
    $region29: #{transform_attention.10} parent=5 // pred_check
      %p221 = pneg %p220
    $region30: #{transform_attention.10} parent=5 // pred_check_branch
      %223 = sbr.rel (%p221) target = $region32
    $region31: #{transform_attention.10} parent=5 // pred_region
      // Predicated region
      $region33: #{transform_attention.10} parent=31 // pred_check
        %p224 = pneg %p47
      $region34: #{transform_attention.10} parent=31 // pred_check_branch
        %226 = sbr.rel (%p224) target = $region36
      $region35: #{transform_attention.10} parent=31 // pred_region
        %s227 = smul.u32 2, %s21
        %p228 = scmp.lt.s32.totalorder %s20, 1
        %s229 = scalar_select %p228, %s20, 1
        %p230 = scmp.lt.s32.totalorder %s227, 1
        %s231 = scalar_select %p230, %s227, 1
        %s232 = smul.addr %s229, 4
        %s233 = sadd.s32 %s231, %s232
        %s234 = smul.addr %s233, 8
        %s235 = scalar_lea.vmem %s0, %s234
        %s236 = smul.u32 2, %s21
      $region36: #{transform_attention.10} parent=31 // pred_fallthru
        _
    $region32: #{transform_attention.10} parent=5 // pred_fallthru
      _
    %p237 = scmp.le.s32.totalorder 1, %s13
    %p238 = scmp.lt.s32.totalorder %s13, 3
    %p239 = pnand %p237, %p238
    %p240 = pneg %p239
    // Predicated region
    $region37: #{transform_attention.10} parent=5 // pred_check
      _
    $region38: #{transform_attention.10} parent=5 // pred_check_branch
      %242 = sbr.rel (%p239) target = $region40
    $region39: #{transform_attention.10} parent=5 // pred_region
      %s243 = ssub.s32 %s13, 1
      %s244 = smul.u32 2, %s23
      %p245 = scmp.lt.s32.totalorder %s22, 1
      %s246 = scalar_select %p245, %s22, 1
      %p247 = scmp.lt.s32.totalorder %s244, 1
      %s248 = scalar_select %p247, %s244, 1
      %s249 = smul.addr %s246, 4
      %s250 = sadd.s32 %s248, %s249
      %s251 = smul.addr %s250, 8
      %s252 = scalar_lea.vmem %s0, %s251
      %p253 = pneg %p53
      %p254 = pneg %p50
      %p255 = pneg %p74
      %p256 = pneg %p71
      %p257 = pneg %p95
      %p258 = pneg %p92
      %p259 = pneg %p116
      %p260 = pneg %p113
      %p261 = pneg %p137
      %p262 = pneg %p134
      %p263 = pneg %p165
      %p264 = pneg %p162
      %s265 = smul.u32 2, %s23
      %p266 = scmp.lt.s32.totalorder %s22, 1
      %s267 = scalar_select %p266, %s22, 1
      %p268 = scmp.lt.s32.totalorder %s265, 1
      %s269 = scalar_select %p268, %s265, 1
      %s270 = smul.addr %s267, 2
      %s271 = sadd.s32 %s269, %s270
      %s272 = smul.addr %s271, 4
      %s273 = scalar_lea.vmem %s5, %s272
      %p274 = pneg %p193
      %p275 = pneg %p190
      %s276 = smul.u32 2, %s23
      %p277 = scmp.lt.s32.totalorder %s22, 1
      %s278 = scalar_select %p277, %s22, 1
      %p279 = scmp.lt.s32.totalorder %s276, 1
      %s280 = scalar_select %p279, %s276, 1
      %s281 = smul.addr %s278, 2
      %s282 = sadd.s32 %s280, %s281
      %s283 = smul.addr %s282, 8
      %s284 = scalar_lea.vmem %s6, %s283
      %s285 = smul.u32 2, %s23
      %p286 = scmp.lt.s32.totalorder %s22, 1
      %s287 = scalar_select %p286, %s22, 1
      %p288 = scmp.lt.s32.totalorder %s285, 1
      %s289 = scalar_select %p288, %s285, 1
      %s290 = smul.addr %s287, 4
      %s291 = sadd.s32 %s289, %s290
      %s292 = smul.addr %s291, 8
      %s293 = scalar_lea.vmem %s0, %s292
      %s294 = smul.u32 2, %s23
      %s295 = smul.u32 2, %s23
      %p296 = scmp.lt.s32.totalorder %s22, 1
      %s297 = scalar_select %p296, %s22, 1
      %p298 = scmp.lt.s32.totalorder %s295, 1
      %s299 = scalar_select %p298, %s295, 1
      %s300 = smul.addr %s297, 2
      %s301 = sadd.s32 %s299, %s300
      %s302 = smul.addr %s301, 4
      %s303 = scalar_lea.vmem %s5, %s302
      %s304 = smul.u32 2, %s23
      %s305 = smul.u32 2, %s23
      %p306 = scmp.lt.s32.totalorder %s22, 1
      %s307 = scalar_select %p306, %s22, 1
      %p308 = scmp.lt.s32.totalorder %s305, 1
      %s309 = scalar_select %p308, %s305, 1
      %s310 = smul.addr %s307, 2
      %s311 = sadd.s32 %s309, %s310
      %s312 = smul.addr %s311, 8
      %s313 = scalar_lea.vmem %s6, %s312
      %s314 = smul.u32 2, %s23
      %v315 = vld [vmem:[%s293] sm:$0xff]
      %v316 = vld [vmem:[%s293 + $0x8] sm:$0xff]
      %v317 = vld [vmem:[%s293 + $0x10] sm:$0xf]
      %v318 = vld [vmem:[%s293 + $0x18] sm:$0xf]
      %v319 = vld [vmem:[%s1] sm:$0xf]
      %v320 = vld [vmem:[%s2] sm:$0xf]
      %322 = vset.pattern.permute.xlu0 0
      %323 = vperm.xlu0 %322, %v320
      %v324 = vpop.permute.xlu0 %323
      %vm326 = vcmask 97280
      %v328 = vsel %vm326, %v319, 0
      %vm330 = vcmask 1043456
      %v332 = vsel %vm330, %v317, 0
      %v335 = vsel %vm330, %v318, 0
      %337 = vmatpush.msra.mxu0 0.0
      %338 = vmatpush.msra.mxu0 0.0
      %339 = vmatpush.msra.mxu0 0.0
      %340 = vmatpush.msra.mxu0 0.0
      %341 = vmatpush.msra.mxu0 0.0
      %342 = vmatpush.msra.mxu0 0.0
      %343 = vmatpush.msra.mxu0 0.0
      %344 = vmatpush.msra.mxu0 0.0
      %345 = vmatpush.msra.mxu0 0.0
      %346 = vmatpush.msra.mxu0 0.0
      %347 = vmatpush.msra.mxu0 0.0
      %348 = vmatpush.msra.mxu0 0.0
      %349 = vmatpush.msra.mxu0 0.0
      %350 = vmatpush.msra.mxu0 0.0
      %351 = vmatpush.msra.mxu0 %v332
      %352 = vmatpush.msra.mxu0 %v315
      %353 = vmatmul.f32.gmra.mxu0 %v328
      %v354 = vpop.f32.mrf.mxu0
      %v355 = vadd.f32 %v324, %v354
      %356 = vdwg.mxu0
      %357 = vmatpush.msra.mxu0 0.0
      %358 = vmatpush.msra.mxu0 0.0
      %359 = vmatpush.msra.mxu0 0.0
      %360 = vmatpush.msra.mxu0 0.0
      %361 = vmatpush.msra.mxu0 0.0
      %362 = vmatpush.msra.mxu0 0.0
      %363 = vmatpush.msra.mxu0 0.0
      %364 = vmatpush.msra.mxu0 0.0
      %365 = vmatpush.msra.mxu0 0.0
      %366 = vmatpush.msra.mxu0 0.0
      %367 = vmatpush.msra.mxu0 0.0
      %368 = vmatpush.msra.mxu0 0.0
      %369 = vmatpush.msra.mxu0 0.0
      %370 = vmatpush.msra.mxu0 0.0
      %371 = vmatpush.msra.mxu0 %v335
      %372 = vmatpush.msra.mxu0 %v316
      %373 = vmatmul.f32.gmra.mxu0 %v328
      %v374 = vpop.f32.mrf.mxu0
      %v375 = vadd.f32 %v324, %v374
      %376 = vdwg.mxu0
      %v377 = vld [vmem:[%s3] sm:$0x3f]
      %v378 = vld [vmem:[%s4] sm:$0x3f]
      %380 = vset.pattern.permute.xlu0 0
      %381 = vperm.xlu0 %380, %v378
      %v382 = vpop.permute.xlu0 %381
      %v385 = vsel %vm326, %v377, 0
      %387 = vmatpush.msra.mxu0 0.0
      %388 = vmatpush.msra.mxu0 0.0
      %389 = vmatpush.msra.mxu0 0.0
      %390 = vmatpush.msra.mxu0 0.0
      %391 = vmatpush.msra.mxu0 0.0
      %392 = vmatpush.msra.mxu0 0.0
      %393 = vmatpush.msra.mxu0 0.0
      %394 = vmatpush.msra.mxu0 0.0
      %395 = vmatpush.msra.mxu0 0.0
      %396 = vmatpush.msra.mxu0 0.0
      %397 = vmatpush.msra.mxu0 0.0
      %398 = vmatpush.msra.mxu0 0.0
      %399 = vmatpush.msra.mxu0 0.0
      %400 = vmatpush.msra.mxu0 0.0
      %401 = vmatpush.msra.mxu0 %v332
      %402 = vmatpush.msra.mxu0 %v315
      %403 = vmatmul.f32.gmra.mxu0 %v385
      %v404 = vpop.f32.mrf.mxu0
      %v405 = vadd.f32 %v382, %v404
      %406 = vdwg.mxu0
      %407 = vmatpush.msra.mxu0 0.0
      %408 = vmatpush.msra.mxu0 0.0
      %409 = vmatpush.msra.mxu0 0.0
      %410 = vmatpush.msra.mxu0 0.0
      %411 = vmatpush.msra.mxu0 0.0
      %412 = vmatpush.msra.mxu0 0.0
      %413 = vmatpush.msra.mxu0 0.0
      %414 = vmatpush.msra.mxu0 0.0
      %415 = vmatpush.msra.mxu0 0.0
      %416 = vmatpush.msra.mxu0 0.0
      %417 = vmatpush.msra.mxu0 0.0
      %418 = vmatpush.msra.mxu0 0.0
      %419 = vmatpush.msra.mxu0 0.0
      %420 = vmatpush.msra.mxu0 0.0
      %421 = vmatpush.msra.mxu0 %v335
      %422 = vmatpush.msra.mxu0 %v316
      %423 = vmatmul.f32.gmra.mxu0 %v385
      %v424 = vpop.f32.mrf.mxu0
      %v425 = vadd.f32 %v382, %v424
      %426 = vdwg.mxu0
      %vm427 = vcmp.ge.f32.partialorder %v355, 0.0
      %vm428 = vcmp.ge.f32.partialorder %v375, 0.0
      %v429 = vmul.f32 %v355, 0.2
      %v430 = vmul.f32 %v375, 0.2
      %v431 = vsel %vm427, %v355, %v429
      %v432 = vsel %vm428, %v375, %v430
      %v435 = vrot.slane %v432, 4
      %v436 = vsel %vm330, %v431, %v435
      %438 = vst [vmem:[%s303] sm:$0xff] %v436
      %vm439 = vcmp.ge.f32.partialorder %v405, 0.0
      %vm440 = vcmp.ge.f32.partialorder %v425, 0.0
      %v441 = vmul.f32 %v405, 0.2
      %v442 = vmul.f32 %v425, 0.2
      %v443 = vsel %vm439, %v405, %v441
      %v444 = vsel %vm440, %v425, %v442
      %445 = vst [vmem:[%s313] sm:$0x3f] %v443
      %446 = vst [vmem:[%s313 + $0x8] sm:$0x3f] %v444
      %s447 = smul.u32 2, %s23
      %p448 = scmp.lt.s32.totalorder %s22, 1
      %s449 = scalar_select %p448, %s22, 1
      %p450 = scmp.lt.s32.totalorder %s447, 1
      %s451 = scalar_select %p450, %s447, 1
      %s452 = smul.addr %s449, 2
      %s453 = sadd.s32 %s451, %s452
      %s454 = smul.addr %s453, 4
      %s455 = scalar_lea.vmem %s5, %s454
      %s456 = smul.u32 2, %s23
      %p457 = scmp.lt.s32.totalorder %s22, 1
      %s458 = scalar_select %p457, %s22, 1
      %p459 = scmp.lt.s32.totalorder %s456, 1
      %s460 = scalar_select %p459, %s456, 1
      %s461 = smul.addr %s458, 2
      %s462 = sadd.s32 %s460, %s461
      %s463 = smul.addr %s462, 8
      %s464 = scalar_lea.vmem %s6, %s463
      // Predicated region
      $region41: #{transform_attention.10} parent=39 // pred_check
        %p465 = pneg %p162
      $region42: #{transform_attention.10} parent=39 // pred_check_branch
        %467 = sbr.rel (%p465) target = $region44
      $region43: #{transform_attention.10} parent=39 // pred_region
        %s468 = smul.u32 2, %s23
      $region44: #{transform_attention.10} parent=39 // pred_fallthru
        _
      // Predicated region
      $region45: #{transform_attention.10} parent=39 // pred_check
        %p469 = pneg %p190
      $region46: #{transform_attention.10} parent=39 // pred_check_branch
        %471 = sbr.rel (%p469) target = $region48
      $region47: #{transform_attention.10} parent=39 // pred_region
        %s472 = smul.u32 2, %s23
      $region48: #{transform_attention.10} parent=39 // pred_fallthru
        _
    $region40: #{transform_attention.10} parent=5 // pred_fallthru
      _
    %p473 = scmp.le.s32.totalorder 2, %s13
    // Predicated region
    $region49: #{transform_attention.10} parent=5 // pred_check
      %p474 = pneg %p473
    $region50: #{transform_attention.10} parent=5 // pred_check_branch
      %476 = sbr.rel (%p474) target = $region52
    $region51: #{transform_attention.10} parent=5 // pred_region
      %s477 = ssub.s32 %s13, 2
      // Predicated region
      $region53: #{transform_attention.10} parent=51 // pred_check
        %p478 = pneg %p168
      $region54: #{transform_attention.10} parent=51 // pred_check_branch
        %480 = sbr.rel (%p478) target = $region56
      $region55: #{transform_attention.10} parent=51 // pred_region
        %s481 = smul.u32 2, %s25
        %p482 = scmp.lt.s32.totalorder %s24, 1
        %s483 = scalar_select %p482, %s24, 1
        %p484 = scmp.lt.s32.totalorder %s481, 1
        %s485 = scalar_select %p484, %s481, 1
        %s486 = smul.addr %s483, 2
        %s487 = sadd.s32 %s485, %s486
        %s488 = smul.addr %s487, 4
        %s489 = scalar_lea.vmem %s5, %s488
      $region56: #{transform_attention.10} parent=51 // pred_fallthru
        _
      // Predicated region
      $region57: #{transform_attention.10} parent=51 // pred_check
        %p490 = pneg %p196
      $region58: #{transform_attention.10} parent=51 // pred_check_branch
        %492 = sbr.rel (%p490) target = $region60
      $region59: #{transform_attention.10} parent=51 // pred_region
        %s493 = smul.u32 2, %s25
        %p494 = scmp.lt.s32.totalorder %s24, 1
        %s495 = scalar_select %p494, %s24, 1
        %p496 = scmp.lt.s32.totalorder %s493, 1
        %s497 = scalar_select %p496, %s493, 1
        %s498 = smul.addr %s495, 2
        %s499 = sadd.s32 %s497, %s498
        %s500 = smul.addr %s499, 8
        %s501 = scalar_lea.vmem %s6, %s500
      $region60: #{transform_attention.10} parent=51 // pred_fallthru
        _
    $region52: #{transform_attention.10} parent=5 // pred_fallthru
      _
  $region6: #{transform_attention.10} parent=0 // loop_footer
    %s17 = sadd.s32 1, %s13
  $region7: #{transform_attention.10} parent=0 // loop_footer_branch
    %12 = sbr.rel target = $region3
  $region8: #{transform_attention.10} parent=0 // loop_exit
    _

// kernel: transform_attention.17
$region0: #{transform_attention.17}
  #allocation0 [shape = 'u32[]', space=smem, size = 0x4, offset = 0x4, fixed_abs, tag = 'smem constant byte address 0x4 - core index']
  #allocation1 [shape = 'u32[72,128]{1,0:T(1,128)}', space=vmem, size = 0x9000, scoped, tag = 'internal scratch']
  %s0 = inlined_call_operand.vmem [shape: f32[2,6,256], index: 0, kind: input, shape index: {}]
  %s1 = inlined_call_operand.vmem [shape: f32[2,6,256], index: 1, kind: input, shape index: {}]
  %s2 = inlined_call_operand.vmem [shape: f32[6,6], index: 2, kind: input, shape index: {}]
  %s3 = inlined_call_operand.vmem [shape: f32[6,6], index: 3, kind: input, shape index: {}]
  %s4 = inlined_call_operand.vmem [shape: f32[6,6], index: 4, kind: input, shape index: {}]
  %s5 = inlined_call_operand.vmem [shape: f32[6,6], index: 5, kind: input, shape index: {}]
  %s6 = inlined_call_operand.vmem [shape: f32[6,1], index: 6, kind: input, shape index: {}]
  %s7 = inlined_call_operand.vmem [shape: f32[6,1], index: 7, kind: input, shape index: {}]
  %s8 = inlined_call_operand.vmem [shape: f32[2,6,256], index: 8, kind: output, shape index: {0}]
  %s9 = inlined_call_operand.vmem [shape: f32[2,6,256], index: 9, kind: output, shape index: {1}]
  %10 = xla_tuple %s8, %s9
  %s11 = sld [smem:[#allocation0]]
  $region73: #{transform_attention.17} parent=0
    _
  %s13 = ssub.s32 1, %s11
  %s14 = scalar_select 0, %s13, %s11
  loop: start=0, step=1, limit=4
  $region2: #{transform_attention.17} parent=0 // loop_pre_header
    _
  $region3: #{transform_attention.17} parent=0 // loop_header
    %s16 = sphi 0, %s20
    %p17 = scmp.ge.s32.totalorder %s16, 4
    %s23 = sphi 0, %s35
    %s24 = sphi 0, %s31
    %s25 = sphi 0, %s23
    %s26 = sphi 0, %s24
    %s27 = sphi 0, %s25
    %s28 = sphi 0, %s26
    %s40 = sphi 0, %s42
    %s43 = sphi 0, %s40
    %s44 = sphi 0, %s43
    %s60 = sphi 0, %s44
    %s68 = sphi 0, %s70
    %s71 = sphi 0, %s68
    %s72 = sphi 0, %s71
    %s88 = sphi 0, %s72
    %s92 = sphi 0, %s92
    %s94 = sphi 0, %s92
    %s95 = sphi 0, %s94
    %s109 = sphi 0, %s95
    %s113 = sphi 0, %s113
    %s115 = sphi 0, %s113
    %s116 = sphi 0, %s115
    %s130 = sphi 0, %s116
    %s134 = sphi 0, %s134
    %s136 = sphi 0, %s134
    %s137 = sphi 0, %s136
    %s151 = sphi 0, %s137
    %s155 = sphi 0, %s155
    %s157 = sphi 0, %s155
    %s158 = sphi 0, %s157
    %s172 = sphi 0, %s158
    %s176 = sphi 0, %s176
    %s178 = sphi 0, %s176
    %s179 = sphi 0, %s178
    %s193 = sphi 0, %s179
    %s197 = sphi 0, %s197
    %s199 = sphi 0, %s197
    %s200 = sphi 0, %s199
    %s214 = sphi 0, %s200
    %s222 = sphi 0, %s224
    %s225 = sphi 0, %s222
    %s226 = sphi 0, %s225
    %s242 = sphi 0, %s226
    %s250 = sphi 0, %s252
    %s253 = sphi 0, %s250
    %s254 = sphi 0, %s253
    %s270 = sphi 0, %s254
  $region4: #{transform_attention.17} parent=0 // loop_header_branch
    %19 = sbr.rel (%p17) target = $region8
  $region5: #{transform_attention.17} parent=0 // loop_body
    %s21 = ssub.s32 %s16, 1
    %s22 = ssub.s32 %s16, 2
    %s29 = sadd.s32 1, %s24
    %p30 = scmp.ge.s32.totalorder %s29, 1
    %s31 = scalar_select %p30, 0, %s29
    %s32 = sadd.s32 1, %s23
    %s33 = scalar_select %p30, %s32, %s23
    %p34 = scmp.ge.s32.totalorder %s33, 2
    %s35 = scalar_select %p34, 0, %s33
    %s36 = ssub.s32 %s23, %s35
    %s37 = ssub.s32 %s24, %s31
    %s38 = sor.u32 %s36, %s37
    %p39 = scmp.eq.s32.totalorder %s38, 0
    %s41 = sadd.s32 %s40, 1
    %s42 = scalar_select %p39, %s40, %s41
    %p45 = pneg %p39
    %p46 = scmp.eq.s32.totalorder %s16, 1
    %p47 = por %p45, %p46
    %p48 = scmp.ne.s32.totalorder %s40, %s43
    %p49 = scmp.eq.s32.totalorder %s16, 0
    %p50 = por %p48, %p49
    %p51 = scmp.ne.s32.totalorder %s40, %s43
    %p52 = scmp.eq.s32.totalorder %s21, 1
    %p53 = por %p51, %p52
    %p54 = scmp.ne.s32.totalorder %s43, %s44
    %p55 = scmp.eq.s32.totalorder %s21, 0
    %p56 = por %p54, %p55
    %p57 = scmp.ne.s32.totalorder %s43, %s44
    %p58 = scmp.eq.s32.totalorder %s22, 1
    %p59 = por %p57, %p58
    %p61 = scmp.ne.s32.totalorder %s44, %s60
    %p62 = scmp.eq.s32.totalorder %s22, 0
    %p63 = por %p61, %p62
    %s64 = ssub.s32 %s23, %s35
    %s65 = ssub.s32 %s24, %s31
    %s66 = sor.u32 %s64, %s65
    %p67 = scmp.eq.s32.totalorder %s66, 0
    %s69 = sadd.s32 %s68, 1
    %s70 = scalar_select %p67, %s68, %s69
    %p73 = pneg %p67
    %p74 = scmp.eq.s32.totalorder %s16, 1
    %p75 = por %p73, %p74
    %p76 = scmp.ne.s32.totalorder %s68, %s71
    %p77 = scmp.eq.s32.totalorder %s16, 0
    %p78 = por %p76, %p77
    %p79 = scmp.ne.s32.totalorder %s68, %s71
    %p80 = scmp.eq.s32.totalorder %s21, 1
    %p81 = por %p79, %p80
    %p82 = scmp.ne.s32.totalorder %s71, %s72
    %p83 = scmp.eq.s32.totalorder %s21, 0
    %p84 = por %p82, %p83
    %p85 = scmp.ne.s32.totalorder %s71, %s72
    %p86 = scmp.eq.s32.totalorder %s22, 1
    %p87 = por %p85, %p86
    %p89 = scmp.ne.s32.totalorder %s72, %s88
    %p90 = scmp.eq.s32.totalorder %s22, 0
    %p91 = por %p89, %p90
    %s93 = sadd.s32 %s92, 1
    %p96 = scmp.eq.s32.totalorder %s16, 1
    %p97 = scmp.ne.s32.totalorder %s92, %s94
    %p98 = scmp.eq.s32.totalorder %s16, 0
    %p99 = por %p97, %p98
    %p100 = scmp.ne.s32.totalorder %s92, %s94
    %p101 = scmp.eq.s32.totalorder %s21, 1
    %p102 = por %p100, %p101
    %p103 = scmp.ne.s32.totalorder %s94, %s95
    %p104 = scmp.eq.s32.totalorder %s21, 0
    %p105 = por %p103, %p104
    %p106 = scmp.ne.s32.totalorder %s94, %s95
    %p107 = scmp.eq.s32.totalorder %s22, 1
    %p108 = por %p106, %p107
    %p110 = scmp.ne.s32.totalorder %s95, %s109
    %p111 = scmp.eq.s32.totalorder %s22, 0
    %p112 = por %p110, %p111
    %s114 = sadd.s32 %s113, 1
    %p117 = scmp.eq.s32.totalorder %s16, 1
    %p118 = scmp.ne.s32.totalorder %s113, %s115
    %p119 = scmp.eq.s32.totalorder %s16, 0
    %p120 = por %p118, %p119
    %p121 = scmp.ne.s32.totalorder %s113, %s115
    %p122 = scmp.eq.s32.totalorder %s21, 1
    %p123 = por %p121, %p122
    %p124 = scmp.ne.s32.totalorder %s115, %s116
    %p125 = scmp.eq.s32.totalorder %s21, 0
    %p126 = por %p124, %p125
    %p127 = scmp.ne.s32.totalorder %s115, %s116
    %p128 = scmp.eq.s32.totalorder %s22, 1
    %p129 = por %p127, %p128
    %p131 = scmp.ne.s32.totalorder %s116, %s130
    %p132 = scmp.eq.s32.totalorder %s22, 0
    %p133 = por %p131, %p132
    %s135 = sadd.s32 %s134, 1
    %p138 = scmp.eq.s32.totalorder %s16, 1
    %p139 = scmp.ne.s32.totalorder %s134, %s136
    %p140 = scmp.eq.s32.totalorder %s16, 0
    %p141 = por %p139, %p140
    %p142 = scmp.ne.s32.totalorder %s134, %s136
    %p143 = scmp.eq.s32.totalorder %s21, 1
    %p144 = por %p142, %p143
    %p145 = scmp.ne.s32.totalorder %s136, %s137
    %p146 = scmp.eq.s32.totalorder %s21, 0
    %p147 = por %p145, %p146
    %p148 = scmp.ne.s32.totalorder %s136, %s137
    %p149 = scmp.eq.s32.totalorder %s22, 1
    %p150 = por %p148, %p149
    %p152 = scmp.ne.s32.totalorder %s137, %s151
    %p153 = scmp.eq.s32.totalorder %s22, 0
    %p154 = por %p152, %p153
    %s156 = sadd.s32 %s155, 1
    %p159 = scmp.eq.s32.totalorder %s16, 1
    %p160 = scmp.ne.s32.totalorder %s155, %s157
    %p161 = scmp.eq.s32.totalorder %s16, 0
    %p162 = por %p160, %p161
    %p163 = scmp.ne.s32.totalorder %s155, %s157
    %p164 = scmp.eq.s32.totalorder %s21, 1
    %p165 = por %p163, %p164
    %p166 = scmp.ne.s32.totalorder %s157, %s158
    %p167 = scmp.eq.s32.totalorder %s21, 0
    %p168 = por %p166, %p167
    %p169 = scmp.ne.s32.totalorder %s157, %s158
    %p170 = scmp.eq.s32.totalorder %s22, 1
    %p171 = por %p169, %p170
    %p173 = scmp.ne.s32.totalorder %s158, %s172
    %p174 = scmp.eq.s32.totalorder %s22, 0
    %p175 = por %p173, %p174
    %s177 = sadd.s32 %s176, 1
    %p180 = scmp.eq.s32.totalorder %s16, 1
    %p181 = scmp.ne.s32.totalorder %s176, %s178
    %p182 = scmp.eq.s32.totalorder %s16, 0
    %p183 = por %p181, %p182
    %p184 = scmp.ne.s32.totalorder %s176, %s178
    %p185 = scmp.eq.s32.totalorder %s21, 1
    %p186 = por %p184, %p185
    %p187 = scmp.ne.s32.totalorder %s178, %s179
    %p188 = scmp.eq.s32.totalorder %s21, 0
    %p189 = por %p187, %p188
    %p190 = scmp.ne.s32.totalorder %s178, %s179
    %p191 = scmp.eq.s32.totalorder %s22, 1
    %p192 = por %p190, %p191
    %p194 = scmp.ne.s32.totalorder %s179, %s193
    %p195 = scmp.eq.s32.totalorder %s22, 0
    %p196 = por %p194, %p195
    %s198 = sadd.s32 %s197, 1
    %p201 = scmp.eq.s32.totalorder %s16, 1
    %p202 = scmp.ne.s32.totalorder %s197, %s199
    %p203 = scmp.eq.s32.totalorder %s16, 0
    %p204 = por %p202, %p203
    %p205 = scmp.ne.s32.totalorder %s197, %s199
    %p206 = scmp.eq.s32.totalorder %s21, 1
    %p207 = por %p205, %p206
    %p208 = scmp.ne.s32.totalorder %s199, %s200
    %p209 = scmp.eq.s32.totalorder %s21, 0
    %p210 = por %p208, %p209
    %p211 = scmp.ne.s32.totalorder %s199, %s200
    %p212 = scmp.eq.s32.totalorder %s22, 1
    %p213 = por %p211, %p212
    %p215 = scmp.ne.s32.totalorder %s200, %s214
    %p216 = scmp.eq.s32.totalorder %s22, 0
    %p217 = por %p215, %p216
    %s218 = ssub.s32 %s23, %s35
    %s219 = ssub.s32 %s24, %s31
    %s220 = sor.u32 %s218, %s219
    %p221 = scmp.eq.s32.totalorder %s220, 0
    %s223 = sadd.s32 %s222, 1
    %s224 = scalar_select %p221, %s222, %s223
    %p227 = pneg %p221
    %p228 = scmp.eq.s32.totalorder %s16, 1
    %p229 = por %p227, %p228
    %p230 = scmp.ne.s32.totalorder %s222, %s225
    %p231 = scmp.eq.s32.totalorder %s16, 0
    %p232 = por %p230, %p231
    %p233 = scmp.ne.s32.totalorder %s222, %s225
    %p234 = scmp.eq.s32.totalorder %s21, 1
    %p235 = por %p233, %p234
    %p236 = scmp.ne.s32.totalorder %s225, %s226
    %p237 = scmp.eq.s32.totalorder %s21, 0
    %p238 = por %p236, %p237
    %p239 = scmp.ne.s32.totalorder %s225, %s226
    %p240 = scmp.eq.s32.totalorder %s22, 1
    %p241 = por %p239, %p240
    %p243 = scmp.ne.s32.totalorder %s226, %s242
    %p244 = scmp.eq.s32.totalorder %s22, 0
    %p245 = por %p243, %p244
    %s246 = ssub.s32 %s23, %s35
    %s247 = ssub.s32 %s24, %s31
    %s248 = sor.u32 %s246, %s247
    %p249 = scmp.eq.s32.totalorder %s248, 0
    %s251 = sadd.s32 %s250, 1
    %s252 = scalar_select %p249, %s250, %s251
    %p255 = pneg %p249
    %p256 = scmp.eq.s32.totalorder %s16, 1
    %p257 = por %p255, %p256
    %p258 = scmp.ne.s32.totalorder %s250, %s253
    %p259 = scmp.eq.s32.totalorder %s16, 0
    %p260 = por %p258, %p259
    %p261 = scmp.ne.s32.totalorder %s250, %s253
    %p262 = scmp.eq.s32.totalorder %s21, 1
    %p263 = por %p261, %p262
    %p264 = scmp.ne.s32.totalorder %s253, %s254
    %p265 = scmp.eq.s32.totalorder %s21, 0
    %p266 = por %p264, %p265
    %p267 = scmp.ne.s32.totalorder %s253, %s254
    %p268 = scmp.eq.s32.totalorder %s22, 1
    %p269 = por %p267, %p268
    %p271 = scmp.ne.s32.totalorder %s254, %s270
    %p272 = scmp.eq.s32.totalorder %s22, 0
    %p273 = por %p271, %p272
    %p274 = scmp.le.s32.totalorder 1, %s16
    %p275 = scmp.lt.s32.totalorder %s16, 3
    %p276 = pnand %p274, %p275
    %p277 = pneg %p276
    // Predicated region
    $region9: #{transform_attention.17} parent=5 // pred_check
      _
    $region10: #{transform_attention.17} parent=5 // pred_check_branch
      %279 = sbr.rel (%p276) target = $region12
    $region11: #{transform_attention.17} parent=5 // pred_region
      %s280 = ssub.s32 %s16, 1
      // Predicated region
      $region13: #{transform_attention.17} parent=11 // pred_check
        %p281 = pneg %p105
      $region14: #{transform_attention.17} parent=11 // pred_check_branch
        %283 = sbr.rel (%p281) target = $region16
      $region15: #{transform_attention.17} parent=11 // pred_region
        _
      $region16: #{transform_attention.17} parent=11 // pred_fallthru
        _
      // Predicated region
      $region17: #{transform_attention.17} parent=11 // pred_check
        %p284 = pneg %p126
      $region18: #{transform_attention.17} parent=11 // pred_check_branch
        %286 = sbr.rel (%p284) target = $region20
      $region19: #{transform_attention.17} parent=11 // pred_region
        _
      $region20: #{transform_attention.17} parent=11 // pred_fallthru
        _
      // Predicated region
      $region21: #{transform_attention.17} parent=11 // pred_check
        %p287 = pneg %p147
      $region22: #{transform_attention.17} parent=11 // pred_check_branch
        %289 = sbr.rel (%p287) target = $region24
      $region23: #{transform_attention.17} parent=11 // pred_region
        _
      $region24: #{transform_attention.17} parent=11 // pred_fallthru
        _
      // Predicated region
      $region25: #{transform_attention.17} parent=11 // pred_check
        %p290 = pneg %p168
      $region26: #{transform_attention.17} parent=11 // pred_check_branch
        %292 = sbr.rel (%p290) target = $region28
      $region27: #{transform_attention.17} parent=11 // pred_region
        _
      $region28: #{transform_attention.17} parent=11 // pred_fallthru
        _
      // Predicated region
      $region29: #{transform_attention.17} parent=11 // pred_check
        %p293 = pneg %p189
      $region30: #{transform_attention.17} parent=11 // pred_check_branch
        %295 = sbr.rel (%p293) target = $region32
      $region31: #{transform_attention.17} parent=11 // pred_region
        _
      $region32: #{transform_attention.17} parent=11 // pred_fallthru
        _
      // Predicated region
      $region33: #{transform_attention.17} parent=11 // pred_check
        %p296 = pneg %p210
      $region34: #{transform_attention.17} parent=11 // pred_check_branch
        %298 = sbr.rel (%p296) target = $region36
      $region35: #{transform_attention.17} parent=11 // pred_region
        _
      $region36: #{transform_attention.17} parent=11 // pred_fallthru
        _
    $region12: #{transform_attention.17} parent=5 // pred_fallthru
      _
    %p299 = scmp.lt.s32.totalorder %s16, 2
    // Predicated region
    $region37: #{transform_attention.17} parent=5 // pred_check
      %p300 = pneg %p299
    $region38: #{transform_attention.17} parent=5 // pred_check_branch
      %302 = sbr.rel (%p300) target = $region40
    $region39: #{transform_attention.17} parent=5 // pred_region
      // Predicated region
      $region41: #{transform_attention.17} parent=39 // pred_check
        %p303 = pneg %p50
      $region42: #{transform_attention.17} parent=39 // pred_check_branch
        %305 = sbr.rel (%p303) target = $region44
      $region43: #{transform_attention.17} parent=39 // pred_region
        %s306 = smul.u32 2, %s24
        %p307 = scmp.lt.s32.totalorder %s23, 1
        %s308 = scalar_select %p307, %s23, 1
        %p309 = scmp.lt.s32.totalorder %s306, 1
        %s310 = scalar_select %p309, %s306, 1
        %s311 = smul.addr %s308, 2
        %s312 = sadd.s32 %s310, %s311
        %s313 = smul.addr %s312, 8
        %s314 = scalar_lea.vmem %s0, %s313
        %s315 = smul.u32 2, %s24
      $region44: #{transform_attention.17} parent=39 // pred_fallthru
        _
      // Predicated region
      $region45: #{transform_attention.17} parent=39 // pred_check
        %p316 = pneg %p78
      $region46: #{transform_attention.17} parent=39 // pred_check_branch
        %318 = sbr.rel (%p316) target = $region48
      $region47: #{transform_attention.17} parent=39 // pred_region
        %s319 = smul.u32 2, %s24
        %p320 = scmp.lt.s32.totalorder %s23, 1
        %s321 = scalar_select %p320, %s23, 1
        %p322 = scmp.lt.s32.totalorder %s319, 1
        %s323 = scalar_select %p322, %s319, 1
        %s324 = smul.addr %s321, 2
        %s325 = sadd.s32 %s323, %s324
        %s326 = smul.addr %s325, 8
        %s327 = scalar_lea.vmem %s1, %s326
        %s328 = smul.u32 2, %s24
      $region48: #{transform_attention.17} parent=39 // pred_fallthru
        _
    $region40: #{transform_attention.17} parent=5 // pred_fallthru
      _
    %p329 = scmp.le.s32.totalorder 1, %s16
    %p330 = scmp.lt.s32.totalorder %s16, 3
    %p331 = pnand %p329, %p330
    %p332 = pneg %p331
    // Predicated region
    $region49: #{transform_attention.17} parent=5 // pred_check
      _
    $region50: #{transform_attention.17} parent=5 // pred_check_branch
      %334 = sbr.rel (%p331) target = $region52
    $region51: #{transform_attention.17} parent=5 // pred_region
      %s335 = ssub.s32 %s16, 1
      %s336 = smul.u32 2, %s26
      %p337 = scmp.lt.s32.totalorder %s25, 1
      %s338 = scalar_select %p337, %s25, 1
      %p339 = scmp.lt.s32.totalorder %s336, 1
      %s340 = scalar_select %p339, %s336, 1
      %s341 = smul.addr %s338, 2
      %s342 = sadd.s32 %s340, %s341
      %s343 = smul.addr %s342, 8
      %s344 = scalar_lea.vmem %s0, %s343
      %p345 = pneg %p56
      %p346 = pneg %p53
      %s347 = smul.u32 2, %s26
      %p348 = scmp.lt.s32.totalorder %s25, 1
      %s349 = scalar_select %p348, %s25, 1
      %p350 = scmp.lt.s32.totalorder %s347, 1
      %s351 = scalar_select %p350, %s347, 1
      %s352 = smul.addr %s349, 2
      %s353 = sadd.s32 %s351, %s352
      %s354 = smul.addr %s353, 8
      %s355 = scalar_lea.vmem %s1, %s354
      %p356 = pneg %p84
      %p357 = pneg %p81
      %p358 = pneg %p105
      %p359 = pneg %p102
      %p360 = pneg %p126
      %p361 = pneg %p123
      %p362 = pneg %p147
      %p363 = pneg %p144
      %p364 = pneg %p168
      %p365 = pneg %p165
      %p366 = pneg %p189
      %p367 = pneg %p186
      %p368 = pneg %p210
      %p369 = pneg %p207
      %p370 = pneg %p238
      %p371 = pneg %p235
      %s372 = smul.u32 2, %s26
      %p373 = scmp.lt.s32.totalorder %s25, 1
      %s374 = scalar_select %p373, %s25, 1
      %p375 = scmp.lt.s32.totalorder %s372, 1
      %s376 = scalar_select %p375, %s372, 1
      %s377 = smul.addr %s374, 2
      %s378 = sadd.s32 %s376, %s377
      %s379 = smul.addr %s378, 8
      %s380 = scalar_lea.vmem %s8, %s379
      %p381 = pneg %p266
      %p382 = pneg %p263
      %s383 = smul.u32 2, %s26
      %p384 = scmp.lt.s32.totalorder %s25, 1
      %s385 = scalar_select %p384, %s25, 1
      %p386 = scmp.lt.s32.totalorder %s383, 1
      %s387 = scalar_select %p386, %s383, 1
      %s388 = smul.addr %s385, 2
      %s389 = sadd.s32 %s387, %s388
      %s390 = smul.addr %s389, 8
      %s391 = scalar_lea.vmem %s9, %s390
      %s392 = smul.u32 2, %s26
      %p393 = scmp.lt.s32.totalorder %s25, 1
      %s394 = scalar_select %p393, %s25, 1
      %p395 = scmp.lt.s32.totalorder %s392, 1
      %s396 = scalar_select %p395, %s392, 1
      %s397 = smul.addr %s394, 2
      %s398 = sadd.s32 %s396, %s397
      %s399 = smul.addr %s398, 8
      %s400 = scalar_lea.vmem %s0, %s399
      %s401 = smul.u32 2, %s26
      %s402 = smul.u32 2, %s26
      %p403 = scmp.lt.s32.totalorder %s25, 1
      %s404 = scalar_select %p403, %s25, 1
      %p405 = scmp.lt.s32.totalorder %s402, 1
      %s406 = scalar_select %p405, %s402, 1
      %s407 = smul.addr %s404, 2
      %s408 = sadd.s32 %s406, %s407
      %s409 = smul.addr %s408, 8
      %s410 = scalar_lea.vmem %s1, %s409
      %s411 = smul.u32 2, %s26
      %s412 = smul.u32 2, %s26
      %p413 = scmp.lt.s32.totalorder %s25, 1
      %s414 = scalar_select %p413, %s25, 1
      %p415 = scmp.lt.s32.totalorder %s412, 1
      %s416 = scalar_select %p415, %s412, 1
      %s417 = smul.addr %s414, 2
      %s418 = sadd.s32 %s416, %s417
      %s419 = smul.addr %s418, 8
      %s420 = scalar_lea.vmem %s8, %s419
      %s421 = smul.u32 2, %s26
      %s422 = smul.u32 2, %s26
      %p423 = scmp.lt.s32.totalorder %s25, 1
      %s424 = scalar_select %p423, %s25, 1
      %p425 = scmp.lt.s32.totalorder %s422, 1
      %s426 = scalar_select %p425, %s422, 1
      %s427 = smul.addr %s424, 2
      %s428 = sadd.s32 %s426, %s427
      %s429 = smul.addr %s428, 8
      %s430 = scalar_lea.vmem %s9, %s429
      %s431 = smul.u32 2, %s26
      %v432 = vld [vmem:[%s400] sm:$0x3f]
      %v433 = vld [vmem:[%s400 + $0x8] sm:$0x3f]
      %v434 = vld [vmem:[%s410] sm:$0x3f]
      %v435 = vld [vmem:[%s410 + $0x8] sm:$0x3f]
      %v436 = vld [vmem:[%s2] sm:$0x3f]
      %v437 = vld [vmem:[%s3] sm:$0x3f]
      %vm438 = vcmask 48128
      %v440 = vsel %vm438, %v437, 0
      %vm442 = vcmask 1045504
      %v444 = vsel %vm442, %v434, 0
      %v447 = vsel %vm442, %v435, 0
      %449 = vmatpush.msra.mxu0 0.0
      %450 = vmatpush.msra.mxu0 0.0
      %451 = vmatpush.msra.mxu0 0.0
      %452 = vmatpush.msra.mxu0 0.0
      %453 = vmatpush.msra.mxu0 0.0
      %454 = vmatpush.msra.mxu0 0.0
      %455 = vmatpush.msra.mxu0 0.0
      %456 = vmatpush.msra.mxu0 0.0
      %457 = vmatpush.msra.mxu0 0.0
      %458 = vmatpush.msra.mxu0 0.0
      %459 = vmatpush.msra.mxu0 0.0
      %460 = vmatpush.msra.mxu0 0.0
      %461 = vmatpush.msra.mxu0 0.0
      %462 = vmatpush.msra.mxu0 0.0
      %463 = vmatpush.msra.mxu0 0.0
      %464 = vmatpush.msra.mxu0 %v444
      %465 = vmatmul.f32.gmra.mxu0 %v440
      %v466 = vpop.f32.mrf.mxu0
      %v467 = vadd.f32 0.0, %v466
      %468 = vdwg.mxu0
      %469 = vmatpush.msra.mxu0 0.0
      %470 = vmatpush.msra.mxu0 0.0
      %471 = vmatpush.msra.mxu0 0.0
      %472 = vmatpush.msra.mxu0 0.0
      %473 = vmatpush.msra.mxu0 0.0
      %474 = vmatpush.msra.mxu0 0.0
      %475 = vmatpush.msra.mxu0 0.0
      %476 = vmatpush.msra.mxu0 0.0
      %477 = vmatpush.msra.mxu0 0.0
      %478 = vmatpush.msra.mxu0 0.0
      %479 = vmatpush.msra.mxu0 0.0
      %480 = vmatpush.msra.mxu0 0.0
      %481 = vmatpush.msra.mxu0 0.0
      %482 = vmatpush.msra.mxu0 0.0
      %483 = vmatpush.msra.mxu0 0.0
      %484 = vmatpush.msra.mxu0 %v447
      %485 = vmatmul.f32.gmra.mxu0 %v440
      %v486 = vpop.f32.mrf.mxu0
      %v487 = vadd.f32 0.0, %v486
      %488 = vdwg.mxu0
      %v490 = vsel %vm438, %v436, 0
      %v493 = vsel %vm442, %v432, 0
      %v496 = vsel %vm442, %v433, 0
      %498 = vmatpush.msra.mxu0 0.0
      %499 = vmatpush.msra.mxu0 0.0
      %500 = vmatpush.msra.mxu0 0.0
      %501 = vmatpush.msra.mxu0 0.0
      %502 = vmatpush.msra.mxu0 0.0
      %503 = vmatpush.msra.mxu0 0.0
      %504 = vmatpush.msra.mxu0 0.0
      %505 = vmatpush.msra.mxu0 0.0
      %506 = vmatpush.msra.mxu0 0.0
      %507 = vmatpush.msra.mxu0 0.0
      %508 = vmatpush.msra.mxu0 0.0
      %509 = vmatpush.msra.mxu0 0.0
      %510 = vmatpush.msra.mxu0 0.0
      %511 = vmatpush.msra.mxu0 0.0
      %512 = vmatpush.msra.mxu0 0.0
      %513 = vmatpush.msra.mxu0 %v493
      %514 = vmatmul.f32.gmra.mxu0 %v490
      %v515 = vpop.f32.mrf.mxu0
      %v516 = vadd.f32 %v467, %v515
      %517 = vdwg.mxu0
      %518 = vmatpush.msra.mxu0 0.0
      %519 = vmatpush.msra.mxu0 0.0
      %520 = vmatpush.msra.mxu0 0.0
      %521 = vmatpush.msra.mxu0 0.0
      %522 = vmatpush.msra.mxu0 0.0
      %523 = vmatpush.msra.mxu0 0.0
      %524 = vmatpush.msra.mxu0 0.0
      %525 = vmatpush.msra.mxu0 0.0
      %526 = vmatpush.msra.mxu0 0.0
      %527 = vmatpush.msra.mxu0 0.0
      %528 = vmatpush.msra.mxu0 0.0
      %529 = vmatpush.msra.mxu0 0.0
      %530 = vmatpush.msra.mxu0 0.0
      %531 = vmatpush.msra.mxu0 0.0
      %532 = vmatpush.msra.mxu0 0.0
      %533 = vmatpush.msra.mxu0 %v496
      %534 = vmatmul.f32.gmra.mxu0 %v490
      %v535 = vpop.f32.mrf.mxu0
      %v536 = vadd.f32 %v487, %v535
      %537 = vdwg.mxu0
      %v538 = vld [vmem:[%s6] sm:$0x3f]
      %540 = vset.pattern.permute.xlu0 0
      %541 = vperm.xlu0 %540, %v538
      %v542 = vpop.permute.xlu0 %541
      %v544 = vadd.f32 %v516, %v542
      %v545 = vadd.f32 %v536, %v542
      %v546 = vld [vmem:[%s4] sm:$0x3f]
      %v547 = vld [vmem:[%s5] sm:$0x3f]
      %v549 = vsel %vm438, %v547, 0
      %551 = vmatpush.msra.mxu0 0.0
      %552 = vmatpush.msra.mxu0 0.0
      %553 = vmatpush.msra.mxu0 0.0
      %554 = vmatpush.msra.mxu0 0.0
      %555 = vmatpush.msra.mxu0 0.0
      %556 = vmatpush.msra.mxu0 0.0
      %557 = vmatpush.msra.mxu0 0.0
      %558 = vmatpush.msra.mxu0 0.0
      %559 = vmatpush.msra.mxu0 0.0
      %560 = vmatpush.msra.mxu0 0.0
      %561 = vmatpush.msra.mxu0 0.0
      %562 = vmatpush.msra.mxu0 0.0
      %563 = vmatpush.msra.mxu0 0.0
      %564 = vmatpush.msra.mxu0 0.0
      %565 = vmatpush.msra.mxu0 0.0
      %566 = vmatpush.msra.mxu0 %v444
      %567 = vmatmul.f32.gmra.mxu0 %v549
      %v568 = vpop.f32.mrf.mxu0
      %v569 = vadd.f32 0.0, %v568
      %570 = vdwg.mxu0
      %571 = vmatpush.msra.mxu0 0.0
      %572 = vmatpush.msra.mxu0 0.0
      %573 = vmatpush.msra.mxu0 0.0
      %574 = vmatpush.msra.mxu0 0.0
      %575 = vmatpush.msra.mxu0 0.0
      %576 = vmatpush.msra.mxu0 0.0
      %577 = vmatpush.msra.mxu0 0.0
      %578 = vmatpush.msra.mxu0 0.0
      %579 = vmatpush.msra.mxu0 0.0
      %580 = vmatpush.msra.mxu0 0.0
      %581 = vmatpush.msra.mxu0 0.0
      %582 = vmatpush.msra.mxu0 0.0
      %583 = vmatpush.msra.mxu0 0.0
      %584 = vmatpush.msra.mxu0 0.0
      %585 = vmatpush.msra.mxu0 0.0
      %586 = vmatpush.msra.mxu0 %v447
      %587 = vmatmul.f32.gmra.mxu0 %v549
      %v588 = vpop.f32.mrf.mxu0
      %v589 = vadd.f32 0.0, %v588
      %590 = vdwg.mxu0
      %v592 = vsel %vm438, %v546, 0
      %594 = vmatpush.msra.mxu0 0.0
      %595 = vmatpush.msra.mxu0 0.0
      %596 = vmatpush.msra.mxu0 0.0
      %597 = vmatpush.msra.mxu0 0.0
      %598 = vmatpush.msra.mxu0 0.0
      %599 = vmatpush.msra.mxu0 0.0
      %600 = vmatpush.msra.mxu0 0.0
      %601 = vmatpush.msra.mxu0 0.0
      %602 = vmatpush.msra.mxu0 0.0
      %603 = vmatpush.msra.mxu0 0.0
      %604 = vmatpush.msra.mxu0 0.0
      %605 = vmatpush.msra.mxu0 0.0
      %606 = vmatpush.msra.mxu0 0.0
      %607 = vmatpush.msra.mxu0 0.0
      %608 = vmatpush.msra.mxu0 0.0
      %609 = vmatpush.msra.mxu0 %v493
      %610 = vmatmul.f32.gmra.mxu0 %v592
      %v611 = vpop.f32.mrf.mxu0
      %v612 = vadd.f32 %v569, %v611
      %613 = vdwg.mxu0
      %614 = vmatpush.msra.mxu0 0.0
      %615 = vmatpush.msra.mxu0 0.0
      %616 = vmatpush.msra.mxu0 0.0
      %617 = vmatpush.msra.mxu0 0.0
      %618 = vmatpush.msra.mxu0 0.0
      %619 = vmatpush.msra.mxu0 0.0
      %620 = vmatpush.msra.mxu0 0.0
      %621 = vmatpush.msra.mxu0 0.0
      %622 = vmatpush.msra.mxu0 0.0
      %623 = vmatpush.msra.mxu0 0.0
      %624 = vmatpush.msra.mxu0 0.0
      %625 = vmatpush.msra.mxu0 0.0
      %626 = vmatpush.msra.mxu0 0.0
      %627 = vmatpush.msra.mxu0 0.0
      %628 = vmatpush.msra.mxu0 0.0
      %629 = vmatpush.msra.mxu0 %v496
      %630 = vmatmul.f32.gmra.mxu0 %v592
      %v631 = vpop.f32.mrf.mxu0
      %v632 = vadd.f32 %v589, %v631
      %633 = vdwg.mxu0
      %v634 = vld [vmem:[%s7] sm:$0x3f]
      %636 = vset.pattern.permute.xlu0 0
      %637 = vperm.xlu0 %636, %v634
      %v638 = vpop.permute.xlu0 %637
      %v640 = vadd.f32 %v612, %v638
      %v641 = vadd.f32 %v632, %v638
      %vm642 = vcmp.ge.f32.partialorder %v544, 0.0
      %vm643 = vcmp.ge.f32.partialorder %v545, 0.0
      %v644 = vmul.f32 %v544, 0.2
      %v645 = vmul.f32 %v545, 0.2
      %v646 = vsel %vm642, %v544, %v644
      %v647 = vsel %vm643, %v545, %v645
      %648 = vst [vmem:[%s420] sm:$0x3f] %v646
      %649 = vst [vmem:[%s420 + $0x8] sm:$0x3f] %v647
      %vm650 = vcmp.ge.f32.partialorder %v640, 0.0
      %vm651 = vcmp.ge.f32.partialorder %v641, 0.0
      %v652 = vmul.f32 %v640, 0.2
      %v653 = vmul.f32 %v641, 0.2
      %v654 = vsel %vm650, %v640, %v652
      %v655 = vsel %vm651, %v641, %v653
      %656 = vst [vmem:[%s430] sm:$0x3f] %v654
      %657 = vst [vmem:[%s430 + $0x8] sm:$0x3f] %v655
      %s658 = smul.u32 2, %s26
      %p659 = scmp.lt.s32.totalorder %s25, 1
      %s660 = scalar_select %p659, %s25, 1
      %p661 = scmp.lt.s32.totalorder %s658, 1
      %s662 = scalar_select %p661, %s658, 1
      %s663 = smul.addr %s660, 2
      %s664 = sadd.s32 %s662, %s663
      %s665 = smul.addr %s664, 8
      %s666 = scalar_lea.vmem %s8, %s665
      %s667 = smul.u32 2, %s26
      %p668 = scmp.lt.s32.totalorder %s25, 1
      %s669 = scalar_select %p668, %s25, 1
      %p670 = scmp.lt.s32.totalorder %s667, 1
      %s671 = scalar_select %p670, %s667, 1
      %s672 = smul.addr %s669, 2
      %s673 = sadd.s32 %s671, %s672
      %s674 = smul.addr %s673, 8
      %s675 = scalar_lea.vmem %s9, %s674
      // Predicated region
      $region53: #{transform_attention.17} parent=51 // pred_check
        %p676 = pneg %p235
      $region54: #{transform_attention.17} parent=51 // pred_check_branch
        %678 = sbr.rel (%p676) target = $region56
      $region55: #{transform_attention.17} parent=51 // pred_region
        %s679 = smul.u32 2, %s26
      $region56: #{transform_attention.17} parent=51 // pred_fallthru
        _
      // Predicated region
      $region57: #{transform_attention.17} parent=51 // pred_check
        %p680 = pneg %p263
      $region58: #{transform_attention.17} parent=51 // pred_check_branch
        %682 = sbr.rel (%p680) target = $region60
      $region59: #{transform_attention.17} parent=51 // pred_region
        %s683 = smul.u32 2, %s26
      $region60: #{transform_attention.17} parent=51 // pred_fallthru
        _
    $region52: #{transform_attention.17} parent=5 // pred_fallthru
      _
    %p684 = scmp.le.s32.totalorder 2, %s16
    // Predicated region
    $region61: #{transform_attention.17} parent=5 // pred_check
      %p685 = pneg %p684
    $region62: #{transform_attention.17} parent=5 // pred_check_branch
      %687 = sbr.rel (%p685) target = $region64
    $region63: #{transform_attention.17} parent=5 // pred_region
      %s688 = ssub.s32 %s16, 2
      // Predicated region
      $region65: #{transform_attention.17} parent=63 // pred_check
        %p689 = pneg %p241
      $region66: #{transform_attention.17} parent=63 // pred_check_branch
        %691 = sbr.rel (%p689) target = $region68
      $region67: #{transform_attention.17} parent=63 // pred_region
        %s692 = smul.u32 2, %s28
        %p693 = scmp.lt.s32.totalorder %s27, 1
        %s694 = scalar_select %p693, %s27, 1
        %p695 = scmp.lt.s32.totalorder %s692, 1
        %s696 = scalar_select %p695, %s692, 1
        %s697 = smul.addr %s694, 2
        %s698 = sadd.s32 %s696, %s697
        %s699 = smul.addr %s698, 8
        %s700 = scalar_lea.vmem %s8, %s699
      $region68: #{transform_attention.17} parent=63 // pred_fallthru
        _
      // Predicated region
      $region69: #{transform_attention.17} parent=63 // pred_check
        %p701 = pneg %p269
      $region70: #{transform_attention.17} parent=63 // pred_check_branch
        %703 = sbr.rel (%p701) target = $region72
      $region71: #{transform_attention.17} parent=63 // pred_region
        %s704 = smul.u32 2, %s28
        %p705 = scmp.lt.s32.totalorder %s27, 1
        %s706 = scalar_select %p705, %s27, 1
        %p707 = scmp.lt.s32.totalorder %s704, 1
        %s708 = scalar_select %p707, %s704, 1
        %s709 = smul.addr %s706, 2
        %s710 = sadd.s32 %s708, %s709
        %s711 = smul.addr %s710, 8
        %s712 = scalar_lea.vmem %s9, %s711
      $region72: #{transform_attention.17} parent=63 // pred_fallthru
        _
    $region64: #{transform_attention.17} parent=5 // pred_fallthru
      _
  $region6: #{transform_attention.17} parent=0 // loop_footer
    %s20 = sadd.s32 1, %s16
  $region7: #{transform_attention.17} parent=0 // loop_footer_branch
    %15 = sbr.rel target = $region3
  $region8: #{transform_attention.17} parent=0 // loop_exit
    _

// kernel: reverse.0
$region0: #{reverse.0}
  %s0 = inlined_call_operand.vmem [shape: f32[2,6,16,7], index: 0, kind: input, shape index: {}]
  %s1 = inlined_call_operand.vmem [shape: f32[2,6,16,7], index: 1, kind: output, shape index: {}]
  $region1: #{reverse.0} parent=0
    #allocation0 [shape = 'u8[98304]{0}', space=vmem, size = 0x18000, scoped, tag = 'operand span for operand 0']
    #allocation1 [shape = 'u8[49152]{0}', space=vmem, size = 0xc000, scoped, tag = 'operand span for operand 1']
    %s2 = scalar_lea.vmem [#allocation0], 8
    // Predicated region
    $region2: #{reverse.0} parent=1 // pred_check
      _
    $region3: #{reverse.0} parent=1 // pred_check_branch
      %4 = sbr.rel (0) target = $region5
    $region4: #{reverse.0} parent=1 // pred_region
      // Predicated region
      $region6: #{reverse.0} parent=4 // pred_check
        _
      $region7: #{reverse.0} parent=4 // pred_check_branch
        %6 = sbr.rel (0) target = $region9
      $region8: #{reverse.0} parent=4 // pred_region
        // Predicated region
        $region21: #{reverse.0} parent=8 // pred_check
          _
        $region22: #{reverse.0} parent=8 // pred_check_branch
          %44 = sbr.rel (0) target = $region24
        $region23: #{reverse.0} parent=8 // pred_region
          loop: start=0, step=1, limit=1
          $region25: #{reverse.0} parent=23 // loop_pre_header
            _
          $region26: #{reverse.0} parent=23 // loop_header
            %s46 = sphi 0, %s50
            %p47 = scmp.ge.s32.totalorder %s46, 1
            %s51 = sphi %s0, %s0
            %s52 = sphi %s2, %s2
          $region27: #{reverse.0} parent=23 // loop_header_branch
            %49 = sbr.rel (%p47) target = $region31
          $region28: #{reverse.0} parent=23 // loop_body
            %v53 = vld [vmem:[%s51] sm:$0xff]
            %54 = vst [vmem:[%s52] sm:$0xff] %v53
            %v55 = vld [vmem:[%s51 + $0x8] sm:$0xff]
            %56 = vst [vmem:[%s52 + $0x10] sm:$0xff] %v55
            %v57 = vld [vmem:[%s51 + $0x10] sm:$0xff]
            %58 = vst [vmem:[%s52 + $0x20] sm:$0xff] %v57
            %v59 = vld [vmem:[%s51 + $0x18] sm:$0xff]
            %60 = vst [vmem:[%s52 + $0x30] sm:$0xff] %v59
            %v61 = vld [vmem:[%s51 + $0x20] sm:$0xff]
            %62 = vst [vmem:[%s52 + $0x40] sm:$0xff] %v61
            %v63 = vld [vmem:[%s51 + $0x28] sm:$0xff]
            %64 = vst [vmem:[%s52 + $0x50] sm:$0xff] %v63
            %v65 = vld [vmem:[%s51 + $0x30] sm:$0xff]
            %66 = vst [vmem:[%s52 + $0x60] sm:$0xff] %v65
            %v67 = vld [vmem:[%s51 + $0x38] sm:$0xff]
            %68 = vst [vmem:[%s52 + $0x70] sm:$0xff] %v67
            %v69 = vld [vmem:[%s51 + $0x40] sm:$0xff]
            %70 = vst [vmem:[%s52 + $0x80] sm:$0xff] %v69
            %v71 = vld [vmem:[%s51 + $0x48] sm:$0xff]
            %72 = vst [vmem:[%s52 + $0x90] sm:$0xff] %v71
            %v73 = vld [vmem:[%s51 + $0x50] sm:$0xff]
            %74 = vst [vmem:[%s52 + $0xa0] sm:$0xff] %v73
            %v75 = vld [vmem:[%s51 + $0x58] sm:$0xff]
            %76 = vst [vmem:[%s52 + $0xb0] sm:$0xff] %v75
          $region29: #{reverse.0} parent=23 // loop_footer
            %s50 = sadd.s32 1, %s46
          $region30: #{reverse.0} parent=23 // loop_footer_branch
            %45 = sbr.rel target = $region26
          $region31: #{reverse.0} parent=23 // loop_exit
            _
        $region24: #{reverse.0} parent=8 // pred_fallthru
          _
        // Predicated region
        $region32: #{reverse.0} parent=8 // pred_check
          _
        $region33: #{reverse.0} parent=8 // pred_check_branch
          %78 = sbr.rel target = $region35
        $region34: #{reverse.0} parent=8 // pred_region
          _
        $region35: #{reverse.0} parent=8 // pred_fallthru
          _
      $region9: #{reverse.0} parent=4 // pred_fallthru
        _
      // Predicated region
      $region10: #{reverse.0} parent=4 // pred_check
        _
      $region11: #{reverse.0} parent=4 // pred_check_branch
        %8 = sbr.rel target = $region13
      $region12: #{reverse.0} parent=4 // pred_region
        %s10 = ssub.s32 256, 1
        loop: start=0, step=1, limit=1
        $region14: #{reverse.0} parent=12 // loop_pre_header
          _
        $region15: #{reverse.0} parent=12 // loop_header
          %s12 = sphi 0, %s16
          %p13 = scmp.ge.s32.totalorder %s12, 1
          %s17 = sphi %s0, %s0
          %s18 = sphi %s2, %s2
        $region16: #{reverse.0} parent=12 // loop_header_branch
          %15 = sbr.rel (%p13) target = $region20
        $region17: #{reverse.0} parent=12 // loop_body
          %v19 = vld [vmem:[%s17] sm:%s10]
          %20 = vst [vmem:[%s18] sm:%s10] %v19
          %v21 = vld [vmem:[%s17 + $0x8] sm:%s10]
          %22 = vst [vmem:[%s18 + $0x10] sm:%s10] %v21
          %v23 = vld [vmem:[%s17 + $0x10] sm:%s10]
          %24 = vst [vmem:[%s18 + $0x20] sm:%s10] %v23
          %v25 = vld [vmem:[%s17 + $0x18] sm:%s10]
          %26 = vst [vmem:[%s18 + $0x30] sm:%s10] %v25
          %v27 = vld [vmem:[%s17 + $0x20] sm:%s10]
          %28 = vst [vmem:[%s18 + $0x40] sm:%s10] %v27
          %v29 = vld [vmem:[%s17 + $0x28] sm:%s10]
          %30 = vst [vmem:[%s18 + $0x50] sm:%s10] %v29
          %v31 = vld [vmem:[%s17 + $0x30] sm:%s10]
          %32 = vst [vmem:[%s18 + $0x60] sm:%s10] %v31
          %v33 = vld [vmem:[%s17 + $0x38] sm:%s10]
          %34 = vst [vmem:[%s18 + $0x70] sm:%s10] %v33
          %v35 = vld [vmem:[%s17 + $0x40] sm:%s10]
          %36 = vst [vmem:[%s18 + $0x80] sm:%s10] %v35
          %v37 = vld [vmem:[%s17 + $0x48] sm:%s10]
          %38 = vst [vmem:[%s18 + $0x90] sm:%s10] %v37
          %v39 = vld [vmem:[%s17 + $0x50] sm:%s10]
          %40 = vst [vmem:[%s18 + $0xa0] sm:%s10] %v39
          %v41 = vld [vmem:[%s17 + $0x58] sm:%s10]
          %42 = vst [vmem:[%s18 + $0xb0] sm:%s10] %v41
        $region18: #{reverse.0} parent=12 // loop_footer
          %s16 = sadd.s32 1, %s12
        $region19: #{reverse.0} parent=12 // loop_footer_branch
          %11 = sbr.rel target = $region15
        $region20: #{reverse.0} parent=12 // loop_exit
          _
      $region13: #{reverse.0} parent=4 // pred_fallthru
        _
    $region5: #{reverse.0} parent=1 // pred_fallthru
      _
    %79 = vnop
    %s80 = scalar_lea.vmem [#allocation0], 7
    %v81 = vld [vmem:[%s80] ss:$-1 sm:$0xff]
    %v82 = vrot.slane %v81, 1
    %83 = vst [vmem:[#allocation1] sm:$0xff] %v82
    %s84 = scalar_lea.vmem [#allocation0], 8
    %s85 = scalar_lea.vmem %s84, 7 [#allocation0]
    %v86 = vld [vmem:[%s85] ss:$-1 sm:$0xff]
    %v87 = vrot.slane %v86, 1
    %v88 = vlaneseq
    %v89 = vshrl.u32 %v88, 7
    %vm90 = vcmp.lt.s32.totalorder %v89, 7
    %91 = vst.msk [vmem:[#allocation1] sm:$0xff] %vm90, %v87
    %s92 = scalar_lea.vmem [#allocation1], 8
    %s93 = scalar_lea.vmem [#allocation0], 16
    %s94 = scalar_lea.vmem %s93, 7 [#allocation0]
    %v95 = vld [vmem:[%s94] ss:$-1 sm:$0xff]
    %v96 = vrot.slane %v95, 1
    %97 = vst [vmem:[%s92] sm:$0xff] %v96
    %s98 = scalar_lea.vmem %s93, 8 [#allocation0]
    %s99 = scalar_lea.vmem %s98, 7 [#allocation0]
    %v100 = vld [vmem:[%s99] ss:$-1 sm:$0xff]
    %v101 = vrot.slane %v100, 1
    %v102 = vlaneseq
    %v103 = vshrl.u32 %v102, 7
    %vm104 = vcmp.lt.s32.totalorder %v103, 7
    %105 = vst.msk [vmem:[%s92] sm:$0xff] %vm104, %v101
    %s106 = scalar_lea.vmem [#allocation1], 16
    %s107 = scalar_lea.vmem [#allocation0], 32
    %s108 = scalar_lea.vmem %s107, 7 [#allocation0]
    %v109 = vld [vmem:[%s108] ss:$-1 sm:$0xff]
    %v110 = vrot.slane %v109, 1
    %111 = vst [vmem:[%s106] sm:$0xff] %v110
    %s112 = scalar_lea.vmem %s107, 8 [#allocation0]
    %s113 = scalar_lea.vmem %s112, 7 [#allocation0]
    %v114 = vld [vmem:[%s113] ss:$-1 sm:$0xff]
    %v115 = vrot.slane %v114, 1
    %v116 = vlaneseq
    %v117 = vshrl.u32 %v116, 7
    %vm118 = vcmp.lt.s32.totalorder %v117, 7
    %119 = vst.msk [vmem:[%s106] sm:$0xff] %vm118, %v115
    %s120 = scalar_lea.vmem [#allocation1], 24
    %s121 = scalar_lea.vmem [#allocation0], 48
    %s122 = scalar_lea.vmem %s121, 7 [#allocation0]
    %v123 = vld [vmem:[%s122] ss:$-1 sm:$0xff]
    %v124 = vrot.slane %v123, 1
    %125 = vst [vmem:[%s120] sm:$0xff] %v124
    %s126 = scalar_lea.vmem %s121, 8 [#allocation0]
    %s127 = scalar_lea.vmem %s126, 7 [#allocation0]
    %v128 = vld [vmem:[%s127] ss:$-1 sm:$0xff]
    %v129 = vrot.slane %v128, 1
    %v130 = vlaneseq
    %v131 = vshrl.u32 %v130, 7
    %vm132 = vcmp.lt.s32.totalorder %v131, 7
    %133 = vst.msk [vmem:[%s120] sm:$0xff] %vm132, %v129
    %s134 = scalar_lea.vmem [#allocation1], 32
    %s135 = scalar_lea.vmem [#allocation0], 64
    %s136 = scalar_lea.vmem %s135, 7 [#allocation0]
    %v137 = vld [vmem:[%s136] ss:$-1 sm:$0xff]
    %v138 = vrot.slane %v137, 1
    %139 = vst [vmem:[%s134] sm:$0xff] %v138
    %s140 = scalar_lea.vmem %s135, 8 [#allocation0]
    %s141 = scalar_lea.vmem %s140, 7 [#allocation0]
    %v142 = vld [vmem:[%s141] ss:$-1 sm:$0xff]
    %v143 = vrot.slane %v142, 1
    %v144 = vlaneseq
    %v145 = vshrl.u32 %v144, 7
    %vm146 = vcmp.lt.s32.totalorder %v145, 7
    %147 = vst.msk [vmem:[%s134] sm:$0xff] %vm146, %v143
    %s148 = scalar_lea.vmem [#allocation1], 40
    %s149 = scalar_lea.vmem [#allocation0], 80
    %s150 = scalar_lea.vmem %s149, 7 [#allocation0]
    %v151 = vld [vmem:[%s150] ss:$-1 sm:$0xff]
    %v152 = vrot.slane %v151, 1
    %153 = vst [vmem:[%s148] sm:$0xff] %v152
    %s154 = scalar_lea.vmem %s149, 8 [#allocation0]
    %s155 = scalar_lea.vmem %s154, 7 [#allocation0]
    %v156 = vld [vmem:[%s155] ss:$-1 sm:$0xff]
    %v157 = vrot.slane %v156, 1
    %v158 = vlaneseq
    %v159 = vshrl.u32 %v158, 7
    %vm160 = vcmp.lt.s32.totalorder %v159, 7
    %161 = vst.msk [vmem:[%s148] sm:$0xff] %vm160, %v157
    %s162 = scalar_lea.vmem [#allocation1], 48
    %s163 = scalar_lea.vmem [#allocation0], 96
    %s164 = scalar_lea.vmem %s163, 7 [#allocation0]
    %v165 = vld [vmem:[%s164] ss:$-1 sm:$0xff]
    %v166 = vrot.slane %v165, 1
    %167 = vst [vmem:[%s162] sm:$0xff] %v166
    %s168 = scalar_lea.vmem %s163, 8 [#allocation0]
    %s169 = scalar_lea.vmem %s168, 7 [#allocation0]
    %v170 = vld [vmem:[%s169] ss:$-1 sm:$0xff]
    %v171 = vrot.slane %v170, 1
    %v172 = vlaneseq
    %v173 = vshrl.u32 %v172, 7
    %vm174 = vcmp.lt.s32.totalorder %v173, 7
    %175 = vst.msk [vmem:[%s162] sm:$0xff] %vm174, %v171
    %s176 = scalar_lea.vmem [#allocation1], 56
    %s177 = scalar_lea.vmem [#allocation0], 112
    %s178 = scalar_lea.vmem %s177, 7 [#allocation0]
    %v179 = vld [vmem:[%s178] ss:$-1 sm:$0xff]
    %v180 = vrot.slane %v179, 1
    %181 = vst [vmem:[%s176] sm:$0xff] %v180
    %s182 = scalar_lea.vmem %s177, 8 [#allocation0]
    %s183 = scalar_lea.vmem %s182, 7 [#allocation0]
    %v184 = vld [vmem:[%s183] ss:$-1 sm:$0xff]
    %v185 = vrot.slane %v184, 1
    %v186 = vlaneseq
    %v187 = vshrl.u32 %v186, 7
    %vm188 = vcmp.lt.s32.totalorder %v187, 7
    %189 = vst.msk [vmem:[%s176] sm:$0xff] %vm188, %v185
    %s190 = scalar_lea.vmem [#allocation1], 64
    %s191 = scalar_lea.vmem [#allocation0], 128
    %s192 = scalar_lea.vmem %s191, 7 [#allocation0]
    %v193 = vld [vmem:[%s192] ss:$-1 sm:$0xff]
    %v194 = vrot.slane %v193, 1
    %195 = vst [vmem:[%s190] sm:$0xff] %v194
    %s196 = scalar_lea.vmem %s191, 8 [#allocation0]
    %s197 = scalar_lea.vmem %s196, 7 [#allocation0]
    %v198 = vld [vmem:[%s197] ss:$-1 sm:$0xff]
    %v199 = vrot.slane %v198, 1
    %v200 = vlaneseq
    %v201 = vshrl.u32 %v200, 7
    %vm202 = vcmp.lt.s32.totalorder %v201, 7
    %203 = vst.msk [vmem:[%s190] sm:$0xff] %vm202, %v199
    %s204 = scalar_lea.vmem [#allocation1], 72
    %s205 = scalar_lea.vmem [#allocation0], 144
    %s206 = scalar_lea.vmem %s205, 7 [#allocation0]
    %v207 = vld [vmem:[%s206] ss:$-1 sm:$0xff]
    %v208 = vrot.slane %v207, 1
    %209 = vst [vmem:[%s204] sm:$0xff] %v208
    %s210 = scalar_lea.vmem %s205, 8 [#allocation0]
    %s211 = scalar_lea.vmem %s210, 7 [#allocation0]
    %v212 = vld [vmem:[%s211] ss:$-1 sm:$0xff]
    %v213 = vrot.slane %v212, 1
    %v214 = vlaneseq
    %v215 = vshrl.u32 %v214, 7
    %vm216 = vcmp.lt.s32.totalorder %v215, 7
    %217 = vst.msk [vmem:[%s204] sm:$0xff] %vm216, %v213
    %s218 = scalar_lea.vmem [#allocation1], 80
    %s219 = scalar_lea.vmem [#allocation0], 160
    %s220 = scalar_lea.vmem %s219, 7 [#allocation0]
    %v221 = vld [vmem:[%s220] ss:$-1 sm:$0xff]
    %v222 = vrot.slane %v221, 1
    %223 = vst [vmem:[%s218] sm:$0xff] %v222
    %s224 = scalar_lea.vmem %s219, 8 [#allocation0]
    %s225 = scalar_lea.vmem %s224, 7 [#allocation0]
    %v226 = vld [vmem:[%s225] ss:$-1 sm:$0xff]
    %v227 = vrot.slane %v226, 1
    %v228 = vlaneseq
    %v229 = vshrl.u32 %v228, 7
    %vm230 = vcmp.lt.s32.totalorder %v229, 7
    %231 = vst.msk [vmem:[%s218] sm:$0xff] %vm230, %v227
    %s232 = scalar_lea.vmem [#allocation1], 88
    %s233 = scalar_lea.vmem [#allocation0], 176
    %s234 = scalar_lea.vmem %s233, 7 [#allocation0]
    %v235 = vld [vmem:[%s234] ss:$-1 sm:$0xff]
    %v236 = vrot.slane %v235, 1
    %237 = vst [vmem:[%s232] sm:$0xff] %v236
    %s238 = scalar_lea.vmem %s233, 8 [#allocation0]
    %s239 = scalar_lea.vmem %s238, 7 [#allocation0]
    %v240 = vld [vmem:[%s239] ss:$-1 sm:$0xff]
    %v241 = vrot.slane %v240, 1
    %v242 = vlaneseq
    %v243 = vshrl.u32 %v242, 7
    %vm244 = vcmp.lt.s32.totalorder %v243, 7
    %245 = vst.msk [vmem:[%s232] sm:$0xff] %vm244, %v241
    // Predicated region
    $region36: #{reverse.0} parent=1 // pred_check
      _
    $region37: #{reverse.0} parent=1 // pred_check_branch
      %247 = sbr.rel (0) target = $region39
    $region38: #{reverse.0} parent=1 // pred_region
      // Predicated region
      $region40: #{reverse.0} parent=38 // pred_check
        _
      $region41: #{reverse.0} parent=38 // pred_check_branch
        %249 = sbr.rel (0) target = $region43
      $region42: #{reverse.0} parent=38 // pred_region
        // Predicated region
        $region55: #{reverse.0} parent=42 // pred_check
          _
        $region56: #{reverse.0} parent=42 // pred_check_branch
          %287 = sbr.rel (0) target = $region58
        $region57: #{reverse.0} parent=42 // pred_region
          loop: start=0, step=1, limit=1
          $region59: #{reverse.0} parent=57 // loop_pre_header
            _
          $region60: #{reverse.0} parent=57 // loop_header
            %s289 = sphi 0, %s293
            %p290 = scmp.ge.s32.totalorder %s289, 1
            %s294 = sphi [#allocation1], [#allocation1]
            %s295 = sphi %s1, %s1
          $region61: #{reverse.0} parent=57 // loop_header_branch
            %292 = sbr.rel (%p290) target = $region65
          $region62: #{reverse.0} parent=57 // loop_body
            %v296 = vld [vmem:[%s294] sm:$0xff]
            %297 = vst [vmem:[%s295] sm:$0xff] %v296
            %v298 = vld [vmem:[%s294 + $0x8] sm:$0xff]
            %299 = vst [vmem:[%s295 + $0x8] sm:$0xff] %v298
            %v300 = vld [vmem:[%s294 + $0x10] sm:$0xff]
            %301 = vst [vmem:[%s295 + $0x10] sm:$0xff] %v300
            %v302 = vld [vmem:[%s294 + $0x18] sm:$0xff]
            %303 = vst [vmem:[%s295 + $0x18] sm:$0xff] %v302
            %v304 = vld [vmem:[%s294 + $0x20] sm:$0xff]
            %305 = vst [vmem:[%s295 + $0x20] sm:$0xff] %v304
            %v306 = vld [vmem:[%s294 + $0x28] sm:$0xff]
            %307 = vst [vmem:[%s295 + $0x28] sm:$0xff] %v306
            %v308 = vld [vmem:[%s294 + $0x30] sm:$0xff]
            %309 = vst [vmem:[%s295 + $0x30] sm:$0xff] %v308
            %v310 = vld [vmem:[%s294 + $0x38] sm:$0xff]
            %311 = vst [vmem:[%s295 + $0x38] sm:$0xff] %v310
            %v312 = vld [vmem:[%s294 + $0x40] sm:$0xff]
            %313 = vst [vmem:[%s295 + $0x40] sm:$0xff] %v312
            %v314 = vld [vmem:[%s294 + $0x48] sm:$0xff]
            %315 = vst [vmem:[%s295 + $0x48] sm:$0xff] %v314
            %v316 = vld [vmem:[%s294 + $0x50] sm:$0xff]
            %317 = vst [vmem:[%s295 + $0x50] sm:$0xff] %v316
            %v318 = vld [vmem:[%s294 + $0x58] sm:$0xff]
            %319 = vst [vmem:[%s295 + $0x58] sm:$0xff] %v318
          $region63: #{reverse.0} parent=57 // loop_footer
            %s293 = sadd.s32 1, %s289
          $region64: #{reverse.0} parent=57 // loop_footer_branch
            %288 = sbr.rel target = $region60
          $region65: #{reverse.0} parent=57 // loop_exit
            _
        $region58: #{reverse.0} parent=42 // pred_fallthru
          _
        // Predicated region
        $region66: #{reverse.0} parent=42 // pred_check
          _
        $region67: #{reverse.0} parent=42 // pred_check_branch
          %321 = sbr.rel target = $region69
        $region68: #{reverse.0} parent=42 // pred_region
          _
        $region69: #{reverse.0} parent=42 // pred_fallthru
          _
      $region43: #{reverse.0} parent=38 // pred_fallthru
        _
      // Predicated region
      $region44: #{reverse.0} parent=38 // pred_check
        _
      $region45: #{reverse.0} parent=38 // pred_check_branch
        %251 = sbr.rel target = $region47
      $region46: #{reverse.0} parent=38 // pred_region
        %s253 = ssub.s32 256, 1
        loop: start=0, step=1, limit=1
        $region48: #{reverse.0} parent=46 // loop_pre_header
          _
        $region49: #{reverse.0} parent=46 // loop_header
          %s255 = sphi 0, %s259
          %p256 = scmp.ge.s32.totalorder %s255, 1
          %s260 = sphi [#allocation1], [#allocation1]
          %s261 = sphi %s1, %s1
        $region50: #{reverse.0} parent=46 // loop_header_branch
          %258 = sbr.rel (%p256) target = $region54
        $region51: #{reverse.0} parent=46 // loop_body
          %v262 = vld [vmem:[%s260] sm:%s253]
          %263 = vst [vmem:[%s261] sm:%s253] %v262
          %v264 = vld [vmem:[%s260 + $0x8] sm:%s253]
          %265 = vst [vmem:[%s261 + $0x8] sm:%s253] %v264
          %v266 = vld [vmem:[%s260 + $0x10] sm:%s253]
          %267 = vst [vmem:[%s261 + $0x10] sm:%s253] %v266
          %v268 = vld [vmem:[%s260 + $0x18] sm:%s253]
          %269 = vst [vmem:[%s261 + $0x18] sm:%s253] %v268
          %v270 = vld [vmem:[%s260 + $0x20] sm:%s253]
          %271 = vst [vmem:[%s261 + $0x20] sm:%s253] %v270
          %v272 = vld [vmem:[%s260 + $0x28] sm:%s253]
          %273 = vst [vmem:[%s261 + $0x28] sm:%s253] %v272
          %v274 = vld [vmem:[%s260 + $0x30] sm:%s253]
          %275 = vst [vmem:[%s261 + $0x30] sm:%s253] %v274
          %v276 = vld [vmem:[%s260 + $0x38] sm:%s253]
          %277 = vst [vmem:[%s261 + $0x38] sm:%s253] %v276
          %v278 = vld [vmem:[%s260 + $0x40] sm:%s253]
          %279 = vst [vmem:[%s261 + $0x40] sm:%s253] %v278
          %v280 = vld [vmem:[%s260 + $0x48] sm:%s253]
          %281 = vst [vmem:[%s261 + $0x48] sm:%s253] %v280
          %v282 = vld [vmem:[%s260 + $0x50] sm:%s253]
          %283 = vst [vmem:[%s261 + $0x50] sm:%s253] %v282
          %v284 = vld [vmem:[%s260 + $0x58] sm:%s253]
          %285 = vst [vmem:[%s261 + $0x58] sm:%s253] %v284
        $region52: #{reverse.0} parent=46 // loop_footer
          %s259 = sadd.s32 1, %s255
        $region53: #{reverse.0} parent=46 // loop_footer_branch
          %254 = sbr.rel target = $region49
        $region54: #{reverse.0} parent=46 // loop_exit
          _
      $region47: #{reverse.0} parent=38 // pred_fallthru
        _
    $region39: #{reverse.0} parent=1 // pred_fallthru
      _
    %322 = vnop

// kernel: transform_attention.18
$region0: #{transform_attention.18}
  #allocation0 [shape = 'u32[]', space=smem, size = 0x4, offset = 0x4, fixed_abs, tag = 'smem constant byte address 0x4 - core index']
  #allocation1 [shape = 'u32[72,128]{1,0:T(1,128)}', space=vmem, size = 0x9000, scoped, tag = 'internal scratch']
  %s0 = inlined_call_operand.vmem [shape: f32[2,6,256], index: 0, kind: input, shape index: {}]
  %s1 = inlined_call_operand.vmem [shape: f32[2,6,256], index: 1, kind: input, shape index: {}]
  %s2 = inlined_call_operand.vmem [shape: f32[12,6], index: 2, kind: input, shape index: {}]
  %s3 = inlined_call_operand.vmem [shape: f32[12,1], index: 3, kind: input, shape index: {}]
  %s4 = inlined_call_operand.vmem [shape: f32[2,12,256], index: 4, kind: output, shape index: {}]
  %s5 = sld [smem:[#allocation0]]
  $region49: #{transform_attention.18} parent=0
    _
  %s7 = ssub.s32 1, %s5
  %s8 = scalar_select 0, %s7, %s5
  loop: start=0, step=1, limit=4
  $region2: #{transform_attention.18} parent=0 // loop_pre_header
    _
  $region3: #{transform_attention.18} parent=0 // loop_header
    %s10 = sphi 0, %s14
    %p11 = scmp.ge.s32.totalorder %s10, 4
    %s17 = sphi 0, %s29
    %s18 = sphi 0, %s25
    %s19 = sphi 0, %s17
    %s20 = sphi 0, %s18
    %s21 = sphi 0, %s19
    %s22 = sphi 0, %s20
    %s34 = sphi 0, %s36
    %s37 = sphi 0, %s34
    %s38 = sphi 0, %s37
    %s54 = sphi 0, %s38
    %s62 = sphi 0, %s64
    %s65 = sphi 0, %s62
    %s66 = sphi 0, %s65
    %s82 = sphi 0, %s66
    %s86 = sphi 0, %s86
    %s88 = sphi 0, %s86
    %s89 = sphi 0, %s88
    %s103 = sphi 0, %s89
    %s107 = sphi 0, %s107
    %s109 = sphi 0, %s107
    %s110 = sphi 0, %s109
    %s124 = sphi 0, %s110
    %s132 = sphi 0, %s134
    %s135 = sphi 0, %s132
    %s136 = sphi 0, %s135
    %s152 = sphi 0, %s136
  $region4: #{transform_attention.18} parent=0 // loop_header_branch
    %13 = sbr.rel (%p11) target = $region8
  $region5: #{transform_attention.18} parent=0 // loop_body
    %s15 = ssub.s32 %s10, 1
    %s16 = ssub.s32 %s10, 2
    %s23 = sadd.s32 1, %s18
    %p24 = scmp.ge.s32.totalorder %s23, 1
    %s25 = scalar_select %p24, 0, %s23
    %s26 = sadd.s32 1, %s17
    %s27 = scalar_select %p24, %s26, %s17
    %p28 = scmp.ge.s32.totalorder %s27, 2
    %s29 = scalar_select %p28, 0, %s27
    %s30 = ssub.s32 %s17, %s29
    %s31 = ssub.s32 %s18, %s25
    %s32 = sor.u32 %s30, %s31
    %p33 = scmp.eq.s32.totalorder %s32, 0
    %s35 = sadd.s32 %s34, 1
    %s36 = scalar_select %p33, %s34, %s35
    %p39 = pneg %p33
    %p40 = scmp.eq.s32.totalorder %s10, 1
    %p41 = por %p39, %p40
    %p42 = scmp.ne.s32.totalorder %s34, %s37
    %p43 = scmp.eq.s32.totalorder %s10, 0
    %p44 = por %p42, %p43
    %p45 = scmp.ne.s32.totalorder %s34, %s37
    %p46 = scmp.eq.s32.totalorder %s15, 1
    %p47 = por %p45, %p46
    %p48 = scmp.ne.s32.totalorder %s37, %s38
    %p49 = scmp.eq.s32.totalorder %s15, 0
    %p50 = por %p48, %p49
    %p51 = scmp.ne.s32.totalorder %s37, %s38
    %p52 = scmp.eq.s32.totalorder %s16, 1
    %p53 = por %p51, %p52
    %p55 = scmp.ne.s32.totalorder %s38, %s54
    %p56 = scmp.eq.s32.totalorder %s16, 0
    %p57 = por %p55, %p56
    %s58 = ssub.s32 %s17, %s29
    %s59 = ssub.s32 %s18, %s25
    %s60 = sor.u32 %s58, %s59
    %p61 = scmp.eq.s32.totalorder %s60, 0
    %s63 = sadd.s32 %s62, 1
    %s64 = scalar_select %p61, %s62, %s63
    %p67 = pneg %p61
    %p68 = scmp.eq.s32.totalorder %s10, 1
    %p69 = por %p67, %p68
    %p70 = scmp.ne.s32.totalorder %s62, %s65
    %p71 = scmp.eq.s32.totalorder %s10, 0
    %p72 = por %p70, %p71
    %p73 = scmp.ne.s32.totalorder %s62, %s65
    %p74 = scmp.eq.s32.totalorder %s15, 1
    %p75 = por %p73, %p74
    %p76 = scmp.ne.s32.totalorder %s65, %s66
    %p77 = scmp.eq.s32.totalorder %s15, 0
    %p78 = por %p76, %p77
    %p79 = scmp.ne.s32.totalorder %s65, %s66
    %p80 = scmp.eq.s32.totalorder %s16, 1
    %p81 = por %p79, %p80
    %p83 = scmp.ne.s32.totalorder %s66, %s82
    %p84 = scmp.eq.s32.totalorder %s16, 0
    %p85 = por %p83, %p84
    %s87 = sadd.s32 %s86, 1
    %p90 = scmp.eq.s32.totalorder %s10, 1
    %p91 = scmp.ne.s32.totalorder %s86, %s88
    %p92 = scmp.eq.s32.totalorder %s10, 0
    %p93 = por %p91, %p92
    %p94 = scmp.ne.s32.totalorder %s86, %s88
    %p95 = scmp.eq.s32.totalorder %s15, 1
    %p96 = por %p94, %p95
    %p97 = scmp.ne.s32.totalorder %s88, %s89
    %p98 = scmp.eq.s32.totalorder %s15, 0
    %p99 = por %p97, %p98
    %p100 = scmp.ne.s32.totalorder %s88, %s89
    %p101 = scmp.eq.s32.totalorder %s16, 1
    %p102 = por %p100, %p101
    %p104 = scmp.ne.s32.totalorder %s89, %s103
    %p105 = scmp.eq.s32.totalorder %s16, 0
    %p106 = por %p104, %p105
    %s108 = sadd.s32 %s107, 1
    %p111 = scmp.eq.s32.totalorder %s10, 1
    %p112 = scmp.ne.s32.totalorder %s107, %s109
    %p113 = scmp.eq.s32.totalorder %s10, 0
    %p114 = por %p112, %p113
    %p115 = scmp.ne.s32.totalorder %s107, %s109
    %p116 = scmp.eq.s32.totalorder %s15, 1
    %p117 = por %p115, %p116
    %p118 = scmp.ne.s32.totalorder %s109, %s110
    %p119 = scmp.eq.s32.totalorder %s15, 0
    %p120 = por %p118, %p119
    %p121 = scmp.ne.s32.totalorder %s109, %s110
    %p122 = scmp.eq.s32.totalorder %s16, 1
    %p123 = por %p121, %p122
    %p125 = scmp.ne.s32.totalorder %s110, %s124
    %p126 = scmp.eq.s32.totalorder %s16, 0
    %p127 = por %p125, %p126
    %s128 = ssub.s32 %s17, %s29
    %s129 = ssub.s32 %s18, %s25
    %s130 = sor.u32 %s128, %s129
    %p131 = scmp.eq.s32.totalorder %s130, 0
    %s133 = sadd.s32 %s132, 1
    %s134 = scalar_select %p131, %s132, %s133
    %p137 = pneg %p131
    %p138 = scmp.eq.s32.totalorder %s10, 1
    %p139 = por %p137, %p138
    %p140 = scmp.ne.s32.totalorder %s132, %s135
    %p141 = scmp.eq.s32.totalorder %s10, 0
    %p142 = por %p140, %p141
    %p143 = scmp.ne.s32.totalorder %s132, %s135
    %p144 = scmp.eq.s32.totalorder %s15, 1
    %p145 = por %p143, %p144
    %p146 = scmp.ne.s32.totalorder %s135, %s136
    %p147 = scmp.eq.s32.totalorder %s15, 0
    %p148 = por %p146, %p147
    %p149 = scmp.ne.s32.totalorder %s135, %s136
    %p150 = scmp.eq.s32.totalorder %s16, 1
    %p151 = por %p149, %p150
    %p153 = scmp.ne.s32.totalorder %s136, %s152
    %p154 = scmp.eq.s32.totalorder %s16, 0
    %p155 = por %p153, %p154
    %p156 = scmp.le.s32.totalorder 1, %s10
    %p157 = scmp.lt.s32.totalorder %s10, 3
    %p158 = pnand %p156, %p157
    %p159 = pneg %p158
    // Predicated region
    $region9: #{transform_attention.18} parent=5 // pred_check
      _
    $region10: #{transform_attention.18} parent=5 // pred_check_branch
      %161 = sbr.rel (%p158) target = $region12
    $region11: #{transform_attention.18} parent=5 // pred_region
      %s162 = ssub.s32 %s10, 1
      // Predicated region
      $region13: #{transform_attention.18} parent=11 // pred_check
        %p163 = pneg %p99
      $region14: #{transform_attention.18} parent=11 // pred_check_branch
        %165 = sbr.rel (%p163) target = $region16
      $region15: #{transform_attention.18} parent=11 // pred_region
        _
      $region16: #{transform_attention.18} parent=11 // pred_fallthru
        _
      // Predicated region
      $region17: #{transform_attention.18} parent=11 // pred_check
        %p166 = pneg %p120
      $region18: #{transform_attention.18} parent=11 // pred_check_branch
        %168 = sbr.rel (%p166) target = $region20
      $region19: #{transform_attention.18} parent=11 // pred_region
        _
      $region20: #{transform_attention.18} parent=11 // pred_fallthru
        _
    $region12: #{transform_attention.18} parent=5 // pred_fallthru
      _
    %p169 = scmp.lt.s32.totalorder %s10, 2
    // Predicated region
    $region21: #{transform_attention.18} parent=5 // pred_check
      %p170 = pneg %p169
    $region22: #{transform_attention.18} parent=5 // pred_check_branch
      %172 = sbr.rel (%p170) target = $region24
    $region23: #{transform_attention.18} parent=5 // pred_region
      // Predicated region
      $region25: #{transform_attention.18} parent=23 // pred_check
        %p173 = pneg %p44
      $region26: #{transform_attention.18} parent=23 // pred_check_branch
        %175 = sbr.rel (%p173) target = $region28
      $region27: #{transform_attention.18} parent=23 // pred_region
        %s176 = smul.u32 2, %s18
        %p177 = scmp.lt.s32.totalorder %s17, 1
        %s178 = scalar_select %p177, %s17, 1
        %p179 = scmp.lt.s32.totalorder %s176, 1
        %s180 = scalar_select %p179, %s176, 1
        %s181 = smul.addr %s178, 2
        %s182 = sadd.s32 %s180, %s181
        %s183 = smul.addr %s182, 8
        %s184 = scalar_lea.vmem %s0, %s183
        %s185 = smul.u32 2, %s18
      $region28: #{transform_attention.18} parent=23 // pred_fallthru
        _
      // Predicated region
      $region29: #{transform_attention.18} parent=23 // pred_check
        %p186 = pneg %p72
      $region30: #{transform_attention.18} parent=23 // pred_check_branch
        %188 = sbr.rel (%p186) target = $region32
      $region31: #{transform_attention.18} parent=23 // pred_region
        %s189 = smul.u32 2, %s18
        %p190 = scmp.lt.s32.totalorder %s17, 1
        %s191 = scalar_select %p190, %s17, 1
        %p192 = scmp.lt.s32.totalorder %s189, 1
        %s193 = scalar_select %p192, %s189, 1
        %s194 = smul.addr %s191, 2
        %s195 = sadd.s32 %s193, %s194
        %s196 = smul.addr %s195, 8
        %s197 = scalar_lea.vmem %s1, %s196
        %s198 = smul.u32 2, %s18
      $region32: #{transform_attention.18} parent=23 // pred_fallthru
        _
    $region24: #{transform_attention.18} parent=5 // pred_fallthru
      _
    %p199 = scmp.le.s32.totalorder 1, %s10
    %p200 = scmp.lt.s32.totalorder %s10, 3
    %p201 = pnand %p199, %p200
    %p202 = pneg %p201
    // Predicated region
    $region33: #{transform_attention.18} parent=5 // pred_check
      _
    $region34: #{transform_attention.18} parent=5 // pred_check_branch
      %204 = sbr.rel (%p201) target = $region36
    $region35: #{transform_attention.18} parent=5 // pred_region
      %s205 = ssub.s32 %s10, 1
      %s206 = smul.u32 2, %s20
      %p207 = scmp.lt.s32.totalorder %s19, 1
      %s208 = scalar_select %p207, %s19, 1
      %p209 = scmp.lt.s32.totalorder %s206, 1
      %s210 = scalar_select %p209, %s206, 1
      %s211 = smul.addr %s208, 2
      %s212 = sadd.s32 %s210, %s211
      %s213 = smul.addr %s212, 8
      %s214 = scalar_lea.vmem %s0, %s213
      %p215 = pneg %p50
      %p216 = pneg %p47
      %s217 = smul.u32 2, %s20
      %p218 = scmp.lt.s32.totalorder %s19, 1
      %s219 = scalar_select %p218, %s19, 1
      %p220 = scmp.lt.s32.totalorder %s217, 1
      %s221 = scalar_select %p220, %s217, 1
      %s222 = smul.addr %s219, 2
      %s223 = sadd.s32 %s221, %s222
      %s224 = smul.addr %s223, 8
      %s225 = scalar_lea.vmem %s1, %s224
      %p226 = pneg %p78
      %p227 = pneg %p75
      %p228 = pneg %p99
      %p229 = pneg %p96
      %p230 = pneg %p120
      %p231 = pneg %p117
      %p232 = pneg %p148
      %p233 = pneg %p145
      %s234 = smul.u32 2, %s20
      %p235 = scmp.lt.s32.totalorder %s19, 1
      %s236 = scalar_select %p235, %s19, 1
      %p237 = scmp.lt.s32.totalorder %s234, 1
      %s238 = scalar_select %p237, %s234, 1
      %s239 = smul.addr %s236, 4
      %s240 = sadd.s32 %s238, %s239
      %s241 = smul.addr %s240, 8
      %s242 = scalar_lea.vmem %s4, %s241
      %s243 = smul.u32 2, %s20
      %p244 = scmp.lt.s32.totalorder %s19, 1
      %s245 = scalar_select %p244, %s19, 1
      %p246 = scmp.lt.s32.totalorder %s243, 1
      %s247 = scalar_select %p246, %s243, 1
      %s248 = smul.addr %s245, 2
      %s249 = sadd.s32 %s247, %s248
      %s250 = smul.addr %s249, 8
      %s251 = scalar_lea.vmem %s0, %s250
      %s252 = smul.u32 2, %s20
      %s253 = smul.u32 2, %s20
      %p254 = scmp.lt.s32.totalorder %s19, 1
      %s255 = scalar_select %p254, %s19, 1
      %p256 = scmp.lt.s32.totalorder %s253, 1
      %s257 = scalar_select %p256, %s253, 1
      %s258 = smul.addr %s255, 2
      %s259 = sadd.s32 %s257, %s258
      %s260 = smul.addr %s259, 8
      %s261 = scalar_lea.vmem %s1, %s260
      %s262 = smul.u32 2, %s20
      %s263 = smul.u32 2, %s20
      %p264 = scmp.lt.s32.totalorder %s19, 1
      %s265 = scalar_select %p264, %s19, 1
      %p266 = scmp.lt.s32.totalorder %s263, 1
      %s267 = scalar_select %p266, %s263, 1
      %s268 = smul.addr %s265, 4
      %s269 = sadd.s32 %s267, %s268
      %s270 = smul.addr %s269, 8
      %s271 = scalar_lea.vmem %s4, %s270
      %s272 = smul.u32 2, %s20
      %v273 = vld [vmem:[%s251] sm:$0x3f]
      %v274 = vld [vmem:[%s251 + $0x8] sm:$0x3f]
      %v275 = vld [vmem:[%s261] sm:$0x3f]
      %v276 = vld [vmem:[%s261 + $0x8] sm:$0x3f]
      %v277 = vadd.f32 %v273, %v275
      %v278 = vadd.f32 %v274, %v276
      %v279 = vld [vmem:[%s2] sm:$0xff]
      %v280 = vld [vmem:[%s2 + $0x8] sm:$0xf]
      %v281 = vld [vmem:[%s3] sm:$0xff]
      %v282 = vld [vmem:[%s3 + $0x8] sm:$0xf]
      %284 = vset.pattern.permute.xlu0 0
      %285 = vperm.xlu0 %284, %v281
      %v286 = vpop.permute.xlu0 %285
      %289 = vset.pattern.permute.xlu0 0
      %290 = vperm.xlu0 %289, %v282
      %v291 = vpop.permute.xlu0 %290
      %vm293 = vcmask 48128
      %v295 = vsel %vm293, %v279, 0
      %v298 = vsel %vm293, %v280, 0
      %vm300 = vcmask 1045504
      %v302 = vsel %vm300, %v277, 0
      %v305 = vsel %vm300, %v278, 0
      %307 = vmatpush.msra.mxu0 0.0
      %308 = vmatpush.msra.mxu0 0.0
      %309 = vmatpush.msra.mxu0 0.0
      %310 = vmatpush.msra.mxu0 0.0
      %311 = vmatpush.msra.mxu0 0.0
      %312 = vmatpush.msra.mxu0 0.0
      %313 = vmatpush.msra.mxu0 0.0
      %314 = vmatpush.msra.mxu0 0.0
      %315 = vmatpush.msra.mxu0 0.0
      %316 = vmatpush.msra.mxu0 0.0
      %317 = vmatpush.msra.mxu0 0.0
      %318 = vmatpush.msra.mxu0 0.0
      %319 = vmatpush.msra.mxu0 0.0
      %320 = vmatpush.msra.mxu0 0.0
      %321 = vmatpush.msra.mxu0 0.0
      %322 = vmatpush.msra.mxu0 %v302
      %323 = vmatmul.f32.gmra.mxu0 %v295
      %v324 = vpop.f32.mrf.mxu0
      %v325 = vadd.f32 %v286, %v324
      %326 = vmatmul.f32.gmra.mxu0 %v298
      %v327 = vpop.f32.mrf.mxu0
      %v328 = vadd.f32 %v291, %v327
      %329 = vdwg.mxu0
      %330 = vmatpush.msra.mxu0 0.0
      %331 = vmatpush.msra.mxu0 0.0
      %332 = vmatpush.msra.mxu0 0.0
      %333 = vmatpush.msra.mxu0 0.0
      %334 = vmatpush.msra.mxu0 0.0
      %335 = vmatpush.msra.mxu0 0.0
      %336 = vmatpush.msra.mxu0 0.0
      %337 = vmatpush.msra.mxu0 0.0
      %338 = vmatpush.msra.mxu0 0.0
      %339 = vmatpush.msra.mxu0 0.0
      %340 = vmatpush.msra.mxu0 0.0
      %341 = vmatpush.msra.mxu0 0.0
      %342 = vmatpush.msra.mxu0 0.0
      %343 = vmatpush.msra.mxu0 0.0
      %344 = vmatpush.msra.mxu0 0.0
      %345 = vmatpush.msra.mxu0 %v305
      %346 = vmatmul.f32.gmra.mxu0 %v295
      %v347 = vpop.f32.mrf.mxu0
      %v348 = vadd.f32 %v286, %v347
      %349 = vmatmul.f32.gmra.mxu0 %v298
      %v350 = vpop.f32.mrf.mxu0
      %v351 = vadd.f32 %v291, %v350
      %352 = vdwg.mxu0
      %353 = vst [vmem:[%s271] sm:$0xff] %v325
      %354 = vst [vmem:[%s271 + $0x8] sm:$0xff] %v348
      %355 = vst [vmem:[%s271 + $0x10] sm:$0xf] %v328
      %356 = vst [vmem:[%s271 + $0x18] sm:$0xf] %v351
      %s357 = smul.u32 2, %s20
      %p358 = scmp.lt.s32.totalorder %s19, 1
      %s359 = scalar_select %p358, %s19, 1
      %p360 = scmp.lt.s32.totalorder %s357, 1
      %s361 = scalar_select %p360, %s357, 1
      %s362 = smul.addr %s359, 4
      %s363 = sadd.s32 %s361, %s362
      %s364 = smul.addr %s363, 8
      %s365 = scalar_lea.vmem %s4, %s364
      // Predicated region
      $region37: #{transform_attention.18} parent=35 // pred_check
        %p366 = pneg %p145
      $region38: #{transform_attention.18} parent=35 // pred_check_branch
        %368 = sbr.rel (%p366) target = $region40
      $region39: #{transform_attention.18} parent=35 // pred_region
        %s369 = smul.u32 2, %s20
      $region40: #{transform_attention.18} parent=35 // pred_fallthru
        _
    $region36: #{transform_attention.18} parent=5 // pred_fallthru
      _
    %p370 = scmp.le.s32.totalorder 2, %s10
    // Predicated region
    $region41: #{transform_attention.18} parent=5 // pred_check
      %p371 = pneg %p370
    $region42: #{transform_attention.18} parent=5 // pred_check_branch
      %373 = sbr.rel (%p371) target = $region44
    $region43: #{transform_attention.18} parent=5 // pred_region
      %s374 = ssub.s32 %s10, 2
      // Predicated region
      $region45: #{transform_attention.18} parent=43 // pred_check
        %p375 = pneg %p151
      $region46: #{transform_attention.18} parent=43 // pred_check_branch
        %377 = sbr.rel (%p375) target = $region48
      $region47: #{transform_attention.18} parent=43 // pred_region
        %s378 = smul.u32 2, %s22
        %p379 = scmp.lt.s32.totalorder %s21, 1
        %s380 = scalar_select %p379, %s21, 1
        %p381 = scmp.lt.s32.totalorder %s378, 1
        %s382 = scalar_select %p381, %s378, 1
        %s383 = smul.addr %s380, 4
        %s384 = sadd.s32 %s382, %s383
        %s385 = smul.addr %s384, 8
        %s386 = scalar_lea.vmem %s4, %s385
      $region48: #{transform_attention.18} parent=43 // pred_fallthru
        _
    $region44: #{transform_attention.18} parent=5 // pred_fallthru
      _
  $region6: #{transform_attention.18} parent=0 // loop_footer
    %s14 = sadd.s32 1, %s10
  $region7: #{transform_attention.18} parent=0 // loop_footer_branch
    %9 = sbr.rel target = $region3
  $region8: #{transform_attention.18} parent=0 // loop_exit
    _

// kernel: transform_attention.14
$region0: #{transform_attention.14}
  #allocation0 [shape = 'u32[]', space=smem, size = 0x4, offset = 0x4, fixed_abs, tag = 'smem constant byte address 0x4 - core index']
  #allocation1 [shape = 'u32[72,128]{1,0:T(1,128)}', space=vmem, size = 0x9000, scoped, tag = 'internal scratch']
  %s0 = inlined_call_operand.vmem [shape: f32[2,12,128], index: 0, kind: input, shape index: {}]
  %s1 = inlined_call_operand.vmem [shape: f32[12,12], index: 1, kind: input, shape index: {}]
  %s2 = inlined_call_operand.vmem [shape: f32[12,1], index: 2, kind: input, shape index: {}]
  %s3 = inlined_call_operand.vmem [shape: f32[2,12,128], index: 3, kind: output, shape index: {}]
  %s4 = sld [smem:[#allocation0]]
  $region45: #{transform_attention.14} parent=0
    _
  %s6 = ssub.s32 1, %s4
  %s7 = scalar_select 0, %s6, %s4
  loop: start=0, step=1, limit=4
  $region2: #{transform_attention.14} parent=0 // loop_pre_header
    _
  $region3: #{transform_attention.14} parent=0 // loop_header
    %s9 = sphi 0, %s13
    %p10 = scmp.ge.s32.totalorder %s9, 4
    %s16 = sphi 0, %s28
    %s17 = sphi 0, %s24
    %s18 = sphi 0, %s16
    %s19 = sphi 0, %s17
    %s20 = sphi 0, %s18
    %s21 = sphi 0, %s19
    %s33 = sphi 0, %s35
    %s36 = sphi 0, %s33
    %s37 = sphi 0, %s36
    %s53 = sphi 0, %s37
    %s57 = sphi 0, %s57
    %s59 = sphi 0, %s57
    %s60 = sphi 0, %s59
    %s74 = sphi 0, %s60
    %s78 = sphi 0, %s78
    %s80 = sphi 0, %s78
    %s81 = sphi 0, %s80
    %s95 = sphi 0, %s81
    %s103 = sphi 0, %s105
    %s106 = sphi 0, %s103
    %s107 = sphi 0, %s106
    %s123 = sphi 0, %s107
  $region4: #{transform_attention.14} parent=0 // loop_header_branch
    %12 = sbr.rel (%p10) target = $region8
  $region5: #{transform_attention.14} parent=0 // loop_body
    %s14 = ssub.s32 %s9, 1
    %s15 = ssub.s32 %s9, 2
    %s22 = sadd.s32 1, %s17
    %p23 = scmp.ge.s32.totalorder %s22, 1
    %s24 = scalar_select %p23, 0, %s22
    %s25 = sadd.s32 1, %s16
    %s26 = scalar_select %p23, %s25, %s16
    %p27 = scmp.ge.s32.totalorder %s26, 2
    %s28 = scalar_select %p27, 0, %s26
    %s29 = ssub.s32 %s16, %s28
    %s30 = ssub.s32 %s17, %s24
    %s31 = sor.u32 %s29, %s30
    %p32 = scmp.eq.s32.totalorder %s31, 0
    %s34 = sadd.s32 %s33, 1
    %s35 = scalar_select %p32, %s33, %s34
    %p38 = pneg %p32
    %p39 = scmp.eq.s32.totalorder %s9, 1
    %p40 = por %p38, %p39
    %p41 = scmp.ne.s32.totalorder %s33, %s36
    %p42 = scmp.eq.s32.totalorder %s9, 0
    %p43 = por %p41, %p42
    %p44 = scmp.ne.s32.totalorder %s33, %s36
    %p45 = scmp.eq.s32.totalorder %s14, 1
    %p46 = por %p44, %p45
    %p47 = scmp.ne.s32.totalorder %s36, %s37
    %p48 = scmp.eq.s32.totalorder %s14, 0
    %p49 = por %p47, %p48
    %p50 = scmp.ne.s32.totalorder %s36, %s37
    %p51 = scmp.eq.s32.totalorder %s15, 1
    %p52 = por %p50, %p51
    %p54 = scmp.ne.s32.totalorder %s37, %s53
    %p55 = scmp.eq.s32.totalorder %s15, 0
    %p56 = por %p54, %p55
    %s58 = sadd.s32 %s57, 1
    %p61 = scmp.eq.s32.totalorder %s9, 1
    %p62 = scmp.ne.s32.totalorder %s57, %s59
    %p63 = scmp.eq.s32.totalorder %s9, 0
    %p64 = por %p62, %p63
    %p65 = scmp.ne.s32.totalorder %s57, %s59
    %p66 = scmp.eq.s32.totalorder %s14, 1
    %p67 = por %p65, %p66
    %p68 = scmp.ne.s32.totalorder %s59, %s60
    %p69 = scmp.eq.s32.totalorder %s14, 0
    %p70 = por %p68, %p69
    %p71 = scmp.ne.s32.totalorder %s59, %s60
    %p72 = scmp.eq.s32.totalorder %s15, 1
    %p73 = por %p71, %p72
    %p75 = scmp.ne.s32.totalorder %s60, %s74
    %p76 = scmp.eq.s32.totalorder %s15, 0
    %p77 = por %p75, %p76
    %s79 = sadd.s32 %s78, 1
    %p82 = scmp.eq.s32.totalorder %s9, 1
    %p83 = scmp.ne.s32.totalorder %s78, %s80
    %p84 = scmp.eq.s32.totalorder %s9, 0
    %p85 = por %p83, %p84
    %p86 = scmp.ne.s32.totalorder %s78, %s80
    %p87 = scmp.eq.s32.totalorder %s14, 1
    %p88 = por %p86, %p87
    %p89 = scmp.ne.s32.totalorder %s80, %s81
    %p90 = scmp.eq.s32.totalorder %s14, 0
    %p91 = por %p89, %p90
    %p92 = scmp.ne.s32.totalorder %s80, %s81
    %p93 = scmp.eq.s32.totalorder %s15, 1
    %p94 = por %p92, %p93
    %p96 = scmp.ne.s32.totalorder %s81, %s95
    %p97 = scmp.eq.s32.totalorder %s15, 0
    %p98 = por %p96, %p97
    %s99 = ssub.s32 %s16, %s28
    %s100 = ssub.s32 %s17, %s24
    %s101 = sor.u32 %s99, %s100
    %p102 = scmp.eq.s32.totalorder %s101, 0
    %s104 = sadd.s32 %s103, 1
    %s105 = scalar_select %p102, %s103, %s104
    %p108 = pneg %p102
    %p109 = scmp.eq.s32.totalorder %s9, 1
    %p110 = por %p108, %p109
    %p111 = scmp.ne.s32.totalorder %s103, %s106
    %p112 = scmp.eq.s32.totalorder %s9, 0
    %p113 = por %p111, %p112
    %p114 = scmp.ne.s32.totalorder %s103, %s106
    %p115 = scmp.eq.s32.totalorder %s14, 1
    %p116 = por %p114, %p115
    %p117 = scmp.ne.s32.totalorder %s106, %s107
    %p118 = scmp.eq.s32.totalorder %s14, 0
    %p119 = por %p117, %p118
    %p120 = scmp.ne.s32.totalorder %s106, %s107
    %p121 = scmp.eq.s32.totalorder %s15, 1
    %p122 = por %p120, %p121
    %p124 = scmp.ne.s32.totalorder %s107, %s123
    %p125 = scmp.eq.s32.totalorder %s15, 0
    %p126 = por %p124, %p125
    %p127 = scmp.le.s32.totalorder 1, %s9
    %p128 = scmp.lt.s32.totalorder %s9, 3
    %p129 = pnand %p127, %p128
    %p130 = pneg %p129
    // Predicated region
    $region9: #{transform_attention.14} parent=5 // pred_check
      _
    $region10: #{transform_attention.14} parent=5 // pred_check_branch
      %132 = sbr.rel (%p129) target = $region12
    $region11: #{transform_attention.14} parent=5 // pred_region
      %s133 = ssub.s32 %s9, 1
      // Predicated region
      $region13: #{transform_attention.14} parent=11 // pred_check
        %p134 = pneg %p70
      $region14: #{transform_attention.14} parent=11 // pred_check_branch
        %136 = sbr.rel (%p134) target = $region16
      $region15: #{transform_attention.14} parent=11 // pred_region
        _
      $region16: #{transform_attention.14} parent=11 // pred_fallthru
        _
      // Predicated region
      $region17: #{transform_attention.14} parent=11 // pred_check
        %p137 = pneg %p91
      $region18: #{transform_attention.14} parent=11 // pred_check_branch
        %139 = sbr.rel (%p137) target = $region20
      $region19: #{transform_attention.14} parent=11 // pred_region
        _
      $region20: #{transform_attention.14} parent=11 // pred_fallthru
        _
    $region12: #{transform_attention.14} parent=5 // pred_fallthru
      _
    %p140 = scmp.lt.s32.totalorder %s9, 2
    // Predicated region
    $region21: #{transform_attention.14} parent=5 // pred_check
      %p141 = pneg %p140
    $region22: #{transform_attention.14} parent=5 // pred_check_branch
      %143 = sbr.rel (%p141) target = $region24
    $region23: #{transform_attention.14} parent=5 // pred_region
      // Predicated region
      $region25: #{transform_attention.14} parent=23 // pred_check
        %p144 = pneg %p43
      $region26: #{transform_attention.14} parent=23 // pred_check_branch
        %146 = sbr.rel (%p144) target = $region28
      $region27: #{transform_attention.14} parent=23 // pred_region
        %p147 = scmp.lt.s32.totalorder %s16, 1
        %s148 = scalar_select %p147, %s16, 1
        %p149 = scmp.lt.s32.totalorder %s17, 0
        %s150 = scalar_select %p149, %s17, 0
        %s151 = smul.addr %s148, 2
        %s152 = sadd.s32 %s150, %s151
        %s153 = smul.addr %s152, 8
        %s154 = scalar_lea.vmem %s0, %s153
      $region28: #{transform_attention.14} parent=23 // pred_fallthru
        _
    $region24: #{transform_attention.14} parent=5 // pred_fallthru
      _
    %p155 = scmp.le.s32.totalorder 1, %s9
    %p156 = scmp.lt.s32.totalorder %s9, 3
    %p157 = pnand %p155, %p156
    %p158 = pneg %p157
    // Predicated region
    $region29: #{transform_attention.14} parent=5 // pred_check
      _
    $region30: #{transform_attention.14} parent=5 // pred_check_branch
      %160 = sbr.rel (%p157) target = $region32
    $region31: #{transform_attention.14} parent=5 // pred_region
      %s161 = ssub.s32 %s9, 1
      %p162 = scmp.lt.s32.totalorder %s18, 1
      %s163 = scalar_select %p162, %s18, 1
      %p164 = scmp.lt.s32.totalorder %s19, 0
      %s165 = scalar_select %p164, %s19, 0
      %s166 = smul.addr %s163, 2
      %s167 = sadd.s32 %s165, %s166
      %s168 = smul.addr %s167, 8
      %s169 = scalar_lea.vmem %s0, %s168
      %p170 = pneg %p49
      %p171 = pneg %p46
      %p172 = pneg %p70
      %p173 = pneg %p67
      %p174 = pneg %p91
      %p175 = pneg %p88
      %p176 = pneg %p119
      %p177 = pneg %p116
      %p178 = scmp.lt.s32.totalorder %s18, 1
      %s179 = scalar_select %p178, %s18, 1
      %p180 = scmp.lt.s32.totalorder %s19, 0
      %s181 = scalar_select %p180, %s19, 0
      %s182 = smul.addr %s179, 2
      %s183 = sadd.s32 %s181, %s182
      %s184 = smul.addr %s183, 8
      %s185 = scalar_lea.vmem %s3, %s184
      %p186 = scmp.lt.s32.totalorder %s18, 1
      %s187 = scalar_select %p186, %s18, 1
      %p188 = scmp.lt.s32.totalorder %s19, 0
      %s189 = scalar_select %p188, %s19, 0
      %s190 = smul.addr %s187, 2
      %s191 = sadd.s32 %s189, %s190
      %s192 = smul.addr %s191, 8
      %s193 = scalar_lea.vmem %s0, %s192
      %p194 = scmp.lt.s32.totalorder %s18, 1
      %s195 = scalar_select %p194, %s18, 1
      %p196 = scmp.lt.s32.totalorder %s19, 0
      %s197 = scalar_select %p196, %s19, 0
      %s198 = smul.addr %s195, 2
      %s199 = sadd.s32 %s197, %s198
      %s200 = smul.addr %s199, 8
      %s201 = scalar_lea.vmem %s3, %s200
      %v202 = vld [vmem:[%s1] sm:$0xff]
      %v203 = vld [vmem:[%s1 + $0x8] sm:$0xf]
      %v204 = vld [vmem:[%s193] sm:$0xff]
      %v205 = vld [vmem:[%s193 + $0x8] sm:$0xf]
      %v206 = vld [vmem:[%s2] sm:$0xff]
      %v207 = vld [vmem:[%s2 + $0x8] sm:$0xf]
      %209 = vset.pattern.permute.xlu0 0
      %210 = vperm.xlu0 %209, %v206
      %v211 = vpop.permute.xlu0 %210
      %214 = vset.pattern.permute.xlu0 0
      %215 = vperm.xlu0 %214, %v207
      %v216 = vpop.permute.xlu0 %215
      %vm218 = vcmask 97280
      %v220 = vsel %vm218, %v202, 0
      %v223 = vsel %vm218, %v203, 0
      %vm225 = vcmask 1043456
      %v227 = vsel %vm225, %v205, 0
      %229 = vmatpush.msra.mxu0 0.0
      %230 = vmatpush.msra.mxu0 0.0
      %231 = vmatpush.msra.mxu0 0.0
      %232 = vmatpush.msra.mxu0 0.0
      %233 = vmatpush.msra.mxu0 0.0
      %234 = vmatpush.msra.mxu0 0.0
      %235 = vmatpush.msra.mxu0 0.0
      %236 = vmatpush.msra.mxu0 0.0
      %237 = vmatpush.msra.mxu0 0.0
      %238 = vmatpush.msra.mxu0 0.0
      %239 = vmatpush.msra.mxu0 0.0
      %240 = vmatpush.msra.mxu0 0.0
      %241 = vmatpush.msra.mxu0 0.0
      %242 = vmatpush.msra.mxu0 0.0
      %243 = vmatpush.msra.mxu0 %v227
      %244 = vmatpush.msra.mxu0 %v204
      %245 = vmatmul.f32.gmra.mxu0 %v220
      %v246 = vpop.f32.mrf.mxu0
      %v247 = vadd.f32 %v211, %v246
      %248 = vmatmul.f32.gmra.mxu0 %v223
      %v249 = vpop.f32.mrf.mxu0
      %v250 = vadd.f32 %v216, %v249
      %251 = vdwg.mxu0
      %vm252 = vcmp.ge.f32.partialorder %v247, 0.0
      %vm253 = vcmp.ge.f32.partialorder %v250, 0.0
      %v254 = vmul.f32 %v247, 0.2
      %v255 = vmul.f32 %v250, 0.2
      %v256 = vsel %vm252, %v247, %v254
      %v257 = vsel %vm253, %v250, %v255
      %258 = vst [vmem:[%s201] sm:$0xff] %v256
      %259 = vst [vmem:[%s201 + $0x8] sm:$0xf] %v257
      %p260 = scmp.lt.s32.totalorder %s18, 1
      %s261 = scalar_select %p260, %s18, 1
      %p262 = scmp.lt.s32.totalorder %s19, 0
      %s263 = scalar_select %p262, %s19, 0
      %s264 = smul.addr %s261, 2
      %s265 = sadd.s32 %s263, %s264
      %s266 = smul.addr %s265, 8
      %s267 = scalar_lea.vmem %s3, %s266
      // Predicated region
      $region33: #{transform_attention.14} parent=31 // pred_check
        %p268 = pneg %p116
      $region34: #{transform_attention.14} parent=31 // pred_check_branch
        %270 = sbr.rel (%p268) target = $region36
      $region35: #{transform_attention.14} parent=31 // pred_region
        _
      $region36: #{transform_attention.14} parent=31 // pred_fallthru
        _
    $region32: #{transform_attention.14} parent=5 // pred_fallthru
      _
    %p271 = scmp.le.s32.totalorder 2, %s9
    // Predicated region
    $region37: #{transform_attention.14} parent=5 // pred_check
      %p272 = pneg %p271
    $region38: #{transform_attention.14} parent=5 // pred_check_branch
      %274 = sbr.rel (%p272) target = $region40
    $region39: #{transform_attention.14} parent=5 // pred_region
      %s275 = ssub.s32 %s9, 2
      // Predicated region
      $region41: #{transform_attention.14} parent=39 // pred_check
        %p276 = pneg %p122
      $region42: #{transform_attention.14} parent=39 // pred_check_branch
        %278 = sbr.rel (%p276) target = $region44
      $region43: #{transform_attention.14} parent=39 // pred_region
        %p279 = scmp.lt.s32.totalorder %s20, 1
        %s280 = scalar_select %p279, %s20, 1
        %p281 = scmp.lt.s32.totalorder %s21, 0
        %s282 = scalar_select %p281, %s21, 0
        %s283 = smul.addr %s280, 2
        %s284 = sadd.s32 %s282, %s283
        %s285 = smul.addr %s284, 8
        %s286 = scalar_lea.vmem %s3, %s285
      $region44: #{transform_attention.14} parent=39 // pred_fallthru
        _
    $region40: #{transform_attention.14} parent=5 // pred_fallthru
      _
  $region6: #{transform_attention.14} parent=0 // loop_footer
    %s13 = sadd.s32 1, %s9
  $region7: #{transform_attention.14} parent=0 // loop_footer_branch
    %8 = sbr.rel target = $region3
  $region8: #{transform_attention.14} parent=0 // loop_exit
    _

// kernel: transform_attention.11
$region0: #{transform_attention.11}
  #allocation0 [shape = 'u32[]', space=smem, size = 0x4, offset = 0x4, fixed_abs, tag = 'smem constant byte address 0x4 - core index']
  #allocation1 [shape = 'u32[72,128]{1,0:T(1,128)}', space=vmem, size = 0x9000, scoped, tag = 'internal scratch']
  %s0 = inlined_call_operand.vmem [shape: f32[2,4,128], index: 0, kind: input, shape index: {}]
  %s1 = inlined_call_operand.vmem [shape: f32[4,4], index: 1, kind: input, shape index: {}]
  %s2 = inlined_call_operand.vmem [shape: f32[4,1], index: 2, kind: input, shape index: {}]
  %s3 = inlined_call_operand.vmem [shape: f32[2,4,128], index: 3, kind: output, shape index: {}]
  %s4 = sld [smem:[#allocation0]]
  $region45: #{transform_attention.11} parent=0
    _
  %s6 = ssub.s32 1, %s4
  %s7 = scalar_select 0, %s6, %s4
  loop: start=0, step=1, limit=4
  $region2: #{transform_attention.11} parent=0 // loop_pre_header
    _
  $region3: #{transform_attention.11} parent=0 // loop_header
    %s9 = sphi 0, %s13
    %p10 = scmp.ge.s32.totalorder %s9, 4
    %s16 = sphi 0, %s28
    %s17 = sphi 0, %s24
    %s18 = sphi 0, %s16
    %s19 = sphi 0, %s17
    %s20 = sphi 0, %s18
    %s21 = sphi 0, %s19
    %s33 = sphi 0, %s35
    %s36 = sphi 0, %s33
    %s37 = sphi 0, %s36
    %s53 = sphi 0, %s37
    %s57 = sphi 0, %s57
    %s59 = sphi 0, %s57
    %s60 = sphi 0, %s59
    %s74 = sphi 0, %s60
    %s78 = sphi 0, %s78
    %s80 = sphi 0, %s78
    %s81 = sphi 0, %s80
    %s95 = sphi 0, %s81
    %s103 = sphi 0, %s105
    %s106 = sphi 0, %s103
    %s107 = sphi 0, %s106
    %s123 = sphi 0, %s107
  $region4: #{transform_attention.11} parent=0 // loop_header_branch
    %12 = sbr.rel (%p10) target = $region8
  $region5: #{transform_attention.11} parent=0 // loop_body
    %s14 = ssub.s32 %s9, 1
    %s15 = ssub.s32 %s9, 2
    %s22 = sadd.s32 1, %s17
    %p23 = scmp.ge.s32.totalorder %s22, 1
    %s24 = scalar_select %p23, 0, %s22
    %s25 = sadd.s32 1, %s16
    %s26 = scalar_select %p23, %s25, %s16
    %p27 = scmp.ge.s32.totalorder %s26, 2
    %s28 = scalar_select %p27, 0, %s26
    %s29 = ssub.s32 %s16, %s28
    %s30 = ssub.s32 %s17, %s24
    %s31 = sor.u32 %s29, %s30
    %p32 = scmp.eq.s32.totalorder %s31, 0
    %s34 = sadd.s32 %s33, 1
    %s35 = scalar_select %p32, %s33, %s34
    %p38 = pneg %p32
    %p39 = scmp.eq.s32.totalorder %s9, 1
    %p40 = por %p38, %p39
    %p41 = scmp.ne.s32.totalorder %s33, %s36
    %p42 = scmp.eq.s32.totalorder %s9, 0
    %p43 = por %p41, %p42
    %p44 = scmp.ne.s32.totalorder %s33, %s36
    %p45 = scmp.eq.s32.totalorder %s14, 1
    %p46 = por %p44, %p45
    %p47 = scmp.ne.s32.totalorder %s36, %s37
    %p48 = scmp.eq.s32.totalorder %s14, 0
    %p49 = por %p47, %p48
    %p50 = scmp.ne.s32.totalorder %s36, %s37
    %p51 = scmp.eq.s32.totalorder %s15, 1
    %p52 = por %p50, %p51
    %p54 = scmp.ne.s32.totalorder %s37, %s53
    %p55 = scmp.eq.s32.totalorder %s15, 0
    %p56 = por %p54, %p55
    %s58 = sadd.s32 %s57, 1
    %p61 = scmp.eq.s32.totalorder %s9, 1
    %p62 = scmp.ne.s32.totalorder %s57, %s59
    %p63 = scmp.eq.s32.totalorder %s9, 0
    %p64 = por %p62, %p63
    %p65 = scmp.ne.s32.totalorder %s57, %s59
    %p66 = scmp.eq.s32.totalorder %s14, 1
    %p67 = por %p65, %p66
    %p68 = scmp.ne.s32.totalorder %s59, %s60
    %p69 = scmp.eq.s32.totalorder %s14, 0
    %p70 = por %p68, %p69
    %p71 = scmp.ne.s32.totalorder %s59, %s60
    %p72 = scmp.eq.s32.totalorder %s15, 1
    %p73 = por %p71, %p72
    %p75 = scmp.ne.s32.totalorder %s60, %s74
    %p76 = scmp.eq.s32.totalorder %s15, 0
    %p77 = por %p75, %p76
    %s79 = sadd.s32 %s78, 1
    %p82 = scmp.eq.s32.totalorder %s9, 1
    %p83 = scmp.ne.s32.totalorder %s78, %s80
    %p84 = scmp.eq.s32.totalorder %s9, 0
    %p85 = por %p83, %p84
    %p86 = scmp.ne.s32.totalorder %s78, %s80
    %p87 = scmp.eq.s32.totalorder %s14, 1
    %p88 = por %p86, %p87
    %p89 = scmp.ne.s32.totalorder %s80, %s81
    %p90 = scmp.eq.s32.totalorder %s14, 0
    %p91 = por %p89, %p90
    %p92 = scmp.ne.s32.totalorder %s80, %s81
    %p93 = scmp.eq.s32.totalorder %s15, 1
    %p94 = por %p92, %p93
    %p96 = scmp.ne.s32.totalorder %s81, %s95
    %p97 = scmp.eq.s32.totalorder %s15, 0
    %p98 = por %p96, %p97
    %s99 = ssub.s32 %s16, %s28
    %s100 = ssub.s32 %s17, %s24
    %s101 = sor.u32 %s99, %s100
    %p102 = scmp.eq.s32.totalorder %s101, 0
    %s104 = sadd.s32 %s103, 1
    %s105 = scalar_select %p102, %s103, %s104
    %p108 = pneg %p102
    %p109 = scmp.eq.s32.totalorder %s9, 1
    %p110 = por %p108, %p109
    %p111 = scmp.ne.s32.totalorder %s103, %s106
    %p112 = scmp.eq.s32.totalorder %s9, 0
    %p113 = por %p111, %p112
    %p114 = scmp.ne.s32.totalorder %s103, %s106
    %p115 = scmp.eq.s32.totalorder %s14, 1
    %p116 = por %p114, %p115
    %p117 = scmp.ne.s32.totalorder %s106, %s107
    %p118 = scmp.eq.s32.totalorder %s14, 0
    %p119 = por %p117, %p118
    %p120 = scmp.ne.s32.totalorder %s106, %s107
    %p121 = scmp.eq.s32.totalorder %s15, 1
    %p122 = por %p120, %p121
    %p124 = scmp.ne.s32.totalorder %s107, %s123
    %p125 = scmp.eq.s32.totalorder %s15, 0
    %p126 = por %p124, %p125
    %p127 = scmp.le.s32.totalorder 1, %s9
    %p128 = scmp.lt.s32.totalorder %s9, 3
    %p129 = pnand %p127, %p128
    %p130 = pneg %p129
    // Predicated region
    $region9: #{transform_attention.11} parent=5 // pred_check
      _
    $region10: #{transform_attention.11} parent=5 // pred_check_branch
      %132 = sbr.rel (%p129) target = $region12
    $region11: #{transform_attention.11} parent=5 // pred_region
      %s133 = ssub.s32 %s9, 1
      // Predicated region
      $region13: #{transform_attention.11} parent=11 // pred_check
        %p134 = pneg %p70
      $region14: #{transform_attention.11} parent=11 // pred_check_branch
        %136 = sbr.rel (%p134) target = $region16
      $region15: #{transform_attention.11} parent=11 // pred_region
        _
      $region16: #{transform_attention.11} parent=11 // pred_fallthru
        _
      // Predicated region
      $region17: #{transform_attention.11} parent=11 // pred_check
        %p137 = pneg %p91
      $region18: #{transform_attention.11} parent=11 // pred_check_branch
        %139 = sbr.rel (%p137) target = $region20
      $region19: #{transform_attention.11} parent=11 // pred_region
        _
      $region20: #{transform_attention.11} parent=11 // pred_fallthru
        _
    $region12: #{transform_attention.11} parent=5 // pred_fallthru
      _
    %p140 = scmp.lt.s32.totalorder %s9, 2
    // Predicated region
    $region21: #{transform_attention.11} parent=5 // pred_check
      %p141 = pneg %p140
    $region22: #{transform_attention.11} parent=5 // pred_check_branch
      %143 = sbr.rel (%p141) target = $region24
    $region23: #{transform_attention.11} parent=5 // pred_region
      // Predicated region
      $region25: #{transform_attention.11} parent=23 // pred_check
        %p144 = pneg %p43
      $region26: #{transform_attention.11} parent=23 // pred_check_branch
        %146 = sbr.rel (%p144) target = $region28
      $region27: #{transform_attention.11} parent=23 // pred_region
        %p147 = scmp.lt.s32.totalorder %s16, 1
        %s148 = scalar_select %p147, %s16, 1
        %p149 = scmp.lt.s32.totalorder %s17, 0
        %s150 = scalar_select %p149, %s17, 0
        %s151 = sadd.s32 %s150, %s148
        %s152 = smul.addr %s151, 4
        %s153 = scalar_lea.vmem %s0, %s152
      $region28: #{transform_attention.11} parent=23 // pred_fallthru
        _
    $region24: #{transform_attention.11} parent=5 // pred_fallthru
      _
    %p154 = scmp.le.s32.totalorder 1, %s9
    %p155 = scmp.lt.s32.totalorder %s9, 3
    %p156 = pnand %p154, %p155
    %p157 = pneg %p156
    // Predicated region
    $region29: #{transform_attention.11} parent=5 // pred_check
      _
    $region30: #{transform_attention.11} parent=5 // pred_check_branch
      %159 = sbr.rel (%p156) target = $region32
    $region31: #{transform_attention.11} parent=5 // pred_region
      %s160 = ssub.s32 %s9, 1
      %p161 = scmp.lt.s32.totalorder %s18, 1
      %s162 = scalar_select %p161, %s18, 1
      %p163 = scmp.lt.s32.totalorder %s19, 0
      %s164 = scalar_select %p163, %s19, 0
      %s165 = sadd.s32 %s164, %s162
      %s166 = smul.addr %s165, 4
      %s167 = scalar_lea.vmem %s0, %s166
      %p168 = pneg %p49
      %p169 = pneg %p46
      %p170 = pneg %p70
      %p171 = pneg %p67
      %p172 = pneg %p91
      %p173 = pneg %p88
      %p174 = pneg %p119
      %p175 = pneg %p116
      %p176 = scmp.lt.s32.totalorder %s18, 1
      %s177 = scalar_select %p176, %s18, 1
      %p178 = scmp.lt.s32.totalorder %s19, 0
      %s179 = scalar_select %p178, %s19, 0
      %s180 = sadd.s32 %s179, %s177
      %s181 = smul.addr %s180, 4
      %s182 = scalar_lea.vmem %s3, %s181
      %p183 = scmp.lt.s32.totalorder %s18, 1
      %s184 = scalar_select %p183, %s18, 1
      %p185 = scmp.lt.s32.totalorder %s19, 0
      %s186 = scalar_select %p185, %s19, 0
      %s187 = sadd.s32 %s186, %s184
      %s188 = smul.addr %s187, 4
      %s189 = scalar_lea.vmem %s0, %s188
      %p190 = scmp.lt.s32.totalorder %s18, 1
      %s191 = scalar_select %p190, %s18, 1
      %p192 = scmp.lt.s32.totalorder %s19, 0
      %s193 = scalar_select %p192, %s19, 0
      %s194 = sadd.s32 %s193, %s191
      %s195 = smul.addr %s194, 4
      %s196 = scalar_lea.vmem %s3, %s195
      %v197 = vld [vmem:[%s1] sm:$0xf]
      %v198 = vld [vmem:[%s189] sm:$0xf]
      %v199 = vld [vmem:[%s2] sm:$0xf]
      %201 = vset.pattern.permute.xlu0 0
      %202 = vperm.xlu0 %201, %v199
      %v203 = vpop.permute.xlu0 %202
      %vm205 = vcmask 31744
      %v207 = vsel %vm205, %v197, 0
      %vm209 = vcmask 1043456
      %v211 = vsel %vm209, %v198, 0
      %213 = vmatpush.msra.mxu0 0.0
      %214 = vmatpush.msra.mxu0 0.0
      %215 = vmatpush.msra.mxu0 0.0
      %216 = vmatpush.msra.mxu0 0.0
      %217 = vmatpush.msra.mxu0 0.0
      %218 = vmatpush.msra.mxu0 0.0
      %219 = vmatpush.msra.mxu0 0.0
      %220 = vmatpush.msra.mxu0 0.0
      %221 = vmatpush.msra.mxu0 0.0
      %222 = vmatpush.msra.mxu0 0.0
      %223 = vmatpush.msra.mxu0 0.0
      %224 = vmatpush.msra.mxu0 0.0
      %225 = vmatpush.msra.mxu0 0.0
      %226 = vmatpush.msra.mxu0 0.0
      %227 = vmatpush.msra.mxu0 0.0
      %228 = vmatpush.msra.mxu0 %v211
      %229 = vmatmul.f32.gmra.mxu0 %v207
      %v230 = vpop.f32.mrf.mxu0
      %v231 = vadd.f32 %v203, %v230
      %232 = vdwg.mxu0
      %vm233 = vcmp.ge.f32.partialorder %v231, 0.0
      %v234 = vmul.f32 %v231, 0.2
      %v235 = vsel %vm233, %v231, %v234
      %236 = vst [vmem:[%s196] sm:$0xf] %v235
      %p237 = scmp.lt.s32.totalorder %s18, 1
      %s238 = scalar_select %p237, %s18, 1
      %p239 = scmp.lt.s32.totalorder %s19, 0
      %s240 = scalar_select %p239, %s19, 0
      %s241 = sadd.s32 %s240, %s238
      %s242 = smul.addr %s241, 4
      %s243 = scalar_lea.vmem %s3, %s242
      // Predicated region
      $region33: #{transform_attention.11} parent=31 // pred_check
        %p244 = pneg %p116
      $region34: #{transform_attention.11} parent=31 // pred_check_branch
        %246 = sbr.rel (%p244) target = $region36
      $region35: #{transform_attention.11} parent=31 // pred_region
        _
      $region36: #{transform_attention.11} parent=31 // pred_fallthru
        _
    $region32: #{transform_attention.11} parent=5 // pred_fallthru
      _
    %p247 = scmp.le.s32.totalorder 2, %s9
    // Predicated region
    $region37: #{transform_attention.11} parent=5 // pred_check
      %p248 = pneg %p247
    $region38: #{transform_attention.11} parent=5 // pred_check_branch
      %250 = sbr.rel (%p248) target = $region40
    $region39: #{transform_attention.11} parent=5 // pred_region
      %s251 = ssub.s32 %s9, 2
      // Predicated region
      $region41: #{transform_attention.11} parent=39 // pred_check
        %p252 = pneg %p122
      $region42: #{transform_attention.11} parent=39 // pred_check_branch
        %254 = sbr.rel (%p252) target = $region44
      $region43: #{transform_attention.11} parent=39 // pred_region
        %p255 = scmp.lt.s32.totalorder %s20, 1
        %s256 = scalar_select %p255, %s20, 1
        %p257 = scmp.lt.s32.totalorder %s21, 0
        %s258 = scalar_select %p257, %s21, 0
        %s259 = sadd.s32 %s258, %s256
        %s260 = smul.addr %s259, 4
        %s261 = scalar_lea.vmem %s3, %s260
      $region44: #{transform_attention.11} parent=39 // pred_fallthru
        _
    $region40: #{transform_attention.11} parent=5 // pred_fallthru
      _
  $region6: #{transform_attention.11} parent=0 // loop_footer
    %s13 = sadd.s32 1, %s9
  $region7: #{transform_attention.11} parent=0 // loop_footer_branch
    %8 = sbr.rel target = $region3
  $region8: #{transform_attention.11} parent=0 // loop_exit
    _

// kernel: transform_attention.16
$region0: #{transform_attention.16}
  #allocation0 [shape = 'u32[]', space=smem, size = 0x4, offset = 0x4, fixed_abs, tag = 'smem constant byte address 0x4 - core index']
  #allocation1 [shape = 'u32[72,128]{1,0:T(1,128)}', space=vmem, size = 0x9000, scoped, tag = 'internal scratch']
  %s0 = inlined_call_operand.vmem [shape: f32[2,4,256], index: 0, kind: input, shape index: {}]
  %s1 = inlined_call_operand.vmem [shape: f32[2,4,256], index: 1, kind: input, shape index: {}]
  %s2 = inlined_call_operand.vmem [shape: f32[12,4], index: 2, kind: input, shape index: {}]
  %s3 = inlined_call_operand.vmem [shape: f32[12,1], index: 3, kind: input, shape index: {}]
  %s4 = inlined_call_operand.vmem [shape: f32[2,12,256], index: 4, kind: output, shape index: {}]
  %s5 = sld [smem:[#allocation0]]
  $region49: #{transform_attention.16} parent=0
    _
  %s7 = ssub.s32 1, %s5
  %s8 = scalar_select 0, %s7, %s5
  loop: start=0, step=1, limit=4
  $region2: #{transform_attention.16} parent=0 // loop_pre_header
    _
  $region3: #{transform_attention.16} parent=0 // loop_header
    %s10 = sphi 0, %s14
    %p11 = scmp.ge.s32.totalorder %s10, 4
    %s17 = sphi 0, %s29
    %s18 = sphi 0, %s25
    %s19 = sphi 0, %s17
    %s20 = sphi 0, %s18
    %s21 = sphi 0, %s19
    %s22 = sphi 0, %s20
    %s34 = sphi 0, %s36
    %s37 = sphi 0, %s34
    %s38 = sphi 0, %s37
    %s54 = sphi 0, %s38
    %s62 = sphi 0, %s64
    %s65 = sphi 0, %s62
    %s66 = sphi 0, %s65
    %s82 = sphi 0, %s66
    %s86 = sphi 0, %s86
    %s88 = sphi 0, %s86
    %s89 = sphi 0, %s88
    %s103 = sphi 0, %s89
    %s107 = sphi 0, %s107
    %s109 = sphi 0, %s107
    %s110 = sphi 0, %s109
    %s124 = sphi 0, %s110
    %s132 = sphi 0, %s134
    %s135 = sphi 0, %s132
    %s136 = sphi 0, %s135
    %s152 = sphi 0, %s136
  $region4: #{transform_attention.16} parent=0 // loop_header_branch
    %13 = sbr.rel (%p11) target = $region8
  $region5: #{transform_attention.16} parent=0 // loop_body
    %s15 = ssub.s32 %s10, 1
    %s16 = ssub.s32 %s10, 2
    %s23 = sadd.s32 1, %s18
    %p24 = scmp.ge.s32.totalorder %s23, 1
    %s25 = scalar_select %p24, 0, %s23
    %s26 = sadd.s32 1, %s17
    %s27 = scalar_select %p24, %s26, %s17
    %p28 = scmp.ge.s32.totalorder %s27, 2
    %s29 = scalar_select %p28, 0, %s27
    %s30 = ssub.s32 %s17, %s29
    %s31 = ssub.s32 %s18, %s25
    %s32 = sor.u32 %s30, %s31
    %p33 = scmp.eq.s32.totalorder %s32, 0
    %s35 = sadd.s32 %s34, 1
    %s36 = scalar_select %p33, %s34, %s35
    %p39 = pneg %p33
    %p40 = scmp.eq.s32.totalorder %s10, 1
    %p41 = por %p39, %p40
    %p42 = scmp.ne.s32.totalorder %s34, %s37
    %p43 = scmp.eq.s32.totalorder %s10, 0
    %p44 = por %p42, %p43
    %p45 = scmp.ne.s32.totalorder %s34, %s37
    %p46 = scmp.eq.s32.totalorder %s15, 1
    %p47 = por %p45, %p46
    %p48 = scmp.ne.s32.totalorder %s37, %s38
    %p49 = scmp.eq.s32.totalorder %s15, 0
    %p50 = por %p48, %p49
    %p51 = scmp.ne.s32.totalorder %s37, %s38
    %p52 = scmp.eq.s32.totalorder %s16, 1
    %p53 = por %p51, %p52
    %p55 = scmp.ne.s32.totalorder %s38, %s54
    %p56 = scmp.eq.s32.totalorder %s16, 0
    %p57 = por %p55, %p56
    %s58 = ssub.s32 %s17, %s29
    %s59 = ssub.s32 %s18, %s25
    %s60 = sor.u32 %s58, %s59
    %p61 = scmp.eq.s32.totalorder %s60, 0
    %s63 = sadd.s32 %s62, 1
    %s64 = scalar_select %p61, %s62, %s63
    %p67 = pneg %p61
    %p68 = scmp.eq.s32.totalorder %s10, 1
    %p69 = por %p67, %p68
    %p70 = scmp.ne.s32.totalorder %s62, %s65
    %p71 = scmp.eq.s32.totalorder %s10, 0
    %p72 = por %p70, %p71
    %p73 = scmp.ne.s32.totalorder %s62, %s65
    %p74 = scmp.eq.s32.totalorder %s15, 1
    %p75 = por %p73, %p74
    %p76 = scmp.ne.s32.totalorder %s65, %s66
    %p77 = scmp.eq.s32.totalorder %s15, 0
    %p78 = por %p76, %p77
    %p79 = scmp.ne.s32.totalorder %s65, %s66
    %p80 = scmp.eq.s32.totalorder %s16, 1
    %p81 = por %p79, %p80
    %p83 = scmp.ne.s32.totalorder %s66, %s82
    %p84 = scmp.eq.s32.totalorder %s16, 0
    %p85 = por %p83, %p84
    %s87 = sadd.s32 %s86, 1
    %p90 = scmp.eq.s32.totalorder %s10, 1
    %p91 = scmp.ne.s32.totalorder %s86, %s88
    %p92 = scmp.eq.s32.totalorder %s10, 0
    %p93 = por %p91, %p92
    %p94 = scmp.ne.s32.totalorder %s86, %s88
    %p95 = scmp.eq.s32.totalorder %s15, 1
    %p96 = por %p94, %p95
    %p97 = scmp.ne.s32.totalorder %s88, %s89
    %p98 = scmp.eq.s32.totalorder %s15, 0
    %p99 = por %p97, %p98
    %p100 = scmp.ne.s32.totalorder %s88, %s89
    %p101 = scmp.eq.s32.totalorder %s16, 1
    %p102 = por %p100, %p101
    %p104 = scmp.ne.s32.totalorder %s89, %s103
    %p105 = scmp.eq.s32.totalorder %s16, 0
    %p106 = por %p104, %p105
    %s108 = sadd.s32 %s107, 1
    %p111 = scmp.eq.s32.totalorder %s10, 1
    %p112 = scmp.ne.s32.totalorder %s107, %s109
    %p113 = scmp.eq.s32.totalorder %s10, 0
    %p114 = por %p112, %p113
    %p115 = scmp.ne.s32.totalorder %s107, %s109
    %p116 = scmp.eq.s32.totalorder %s15, 1
    %p117 = por %p115, %p116
    %p118 = scmp.ne.s32.totalorder %s109, %s110
    %p119 = scmp.eq.s32.totalorder %s15, 0
    %p120 = por %p118, %p119
    %p121 = scmp.ne.s32.totalorder %s109, %s110
    %p122 = scmp.eq.s32.totalorder %s16, 1
    %p123 = por %p121, %p122
    %p125 = scmp.ne.s32.totalorder %s110, %s124
    %p126 = scmp.eq.s32.totalorder %s16, 0
    %p127 = por %p125, %p126
    %s128 = ssub.s32 %s17, %s29
    %s129 = ssub.s32 %s18, %s25
    %s130 = sor.u32 %s128, %s129
    %p131 = scmp.eq.s32.totalorder %s130, 0
    %s133 = sadd.s32 %s132, 1
    %s134 = scalar_select %p131, %s132, %s133
    %p137 = pneg %p131
    %p138 = scmp.eq.s32.totalorder %s10, 1
    %p139 = por %p137, %p138
    %p140 = scmp.ne.s32.totalorder %s132, %s135
    %p141 = scmp.eq.s32.totalorder %s10, 0
    %p142 = por %p140, %p141
    %p143 = scmp.ne.s32.totalorder %s132, %s135
    %p144 = scmp.eq.s32.totalorder %s15, 1
    %p145 = por %p143, %p144
    %p146 = scmp.ne.s32.totalorder %s135, %s136
    %p147 = scmp.eq.s32.totalorder %s15, 0
    %p148 = por %p146, %p147
    %p149 = scmp.ne.s32.totalorder %s135, %s136
    %p150 = scmp.eq.s32.totalorder %s16, 1
    %p151 = por %p149, %p150
    %p153 = scmp.ne.s32.totalorder %s136, %s152
    %p154 = scmp.eq.s32.totalorder %s16, 0
    %p155 = por %p153, %p154
    %p156 = scmp.le.s32.totalorder 1, %s10
    %p157 = scmp.lt.s32.totalorder %s10, 3
    %p158 = pnand %p156, %p157
    %p159 = pneg %p158
    // Predicated region
    $region9: #{transform_attention.16} parent=5 // pred_check
      _
    $region10: #{transform_attention.16} parent=5 // pred_check_branch
      %161 = sbr.rel (%p158) target = $region12
    $region11: #{transform_attention.16} parent=5 // pred_region
      %s162 = ssub.s32 %s10, 1
      // Predicated region
      $region13: #{transform_attention.16} parent=11 // pred_check
        %p163 = pneg %p99
      $region14: #{transform_attention.16} parent=11 // pred_check_branch
        %165 = sbr.rel (%p163) target = $region16
      $region15: #{transform_attention.16} parent=11 // pred_region
        _
      $region16: #{transform_attention.16} parent=11 // pred_fallthru
        _
      // Predicated region
      $region17: #{transform_attention.16} parent=11 // pred_check
        %p166 = pneg %p120
      $region18: #{transform_attention.16} parent=11 // pred_check_branch
        %168 = sbr.rel (%p166) target = $region20
      $region19: #{transform_attention.16} parent=11 // pred_region
        _
      $region20: #{transform_attention.16} parent=11 // pred_fallthru
        _
    $region12: #{transform_attention.16} parent=5 // pred_fallthru
      _
    %p169 = scmp.lt.s32.totalorder %s10, 2
    // Predicated region
    $region21: #{transform_attention.16} parent=5 // pred_check
      %p170 = pneg %p169
    $region22: #{transform_attention.16} parent=5 // pred_check_branch
      %172 = sbr.rel (%p170) target = $region24
    $region23: #{transform_attention.16} parent=5 // pred_region
      // Predicated region
      $region25: #{transform_attention.16} parent=23 // pred_check
        %p173 = pneg %p44
      $region26: #{transform_attention.16} parent=23 // pred_check_branch
        %175 = sbr.rel (%p173) target = $region28
      $region27: #{transform_attention.16} parent=23 // pred_region
        %s176 = smul.u32 2, %s18
        %p177 = scmp.lt.s32.totalorder %s17, 1
        %s178 = scalar_select %p177, %s17, 1
        %p179 = scmp.lt.s32.totalorder %s176, 1
        %s180 = scalar_select %p179, %s176, 1
        %s181 = smul.addr %s178, 2
        %s182 = sadd.s32 %s180, %s181
        %s183 = smul.addr %s182, 4
        %s184 = scalar_lea.vmem %s0, %s183
        %s185 = smul.u32 2, %s18
      $region28: #{transform_attention.16} parent=23 // pred_fallthru
        _
      // Predicated region
      $region29: #{transform_attention.16} parent=23 // pred_check
        %p186 = pneg %p72
      $region30: #{transform_attention.16} parent=23 // pred_check_branch
        %188 = sbr.rel (%p186) target = $region32
      $region31: #{transform_attention.16} parent=23 // pred_region
        %s189 = smul.u32 2, %s18
        %p190 = scmp.lt.s32.totalorder %s17, 1
        %s191 = scalar_select %p190, %s17, 1
        %p192 = scmp.lt.s32.totalorder %s189, 1
        %s193 = scalar_select %p192, %s189, 1
        %s194 = smul.addr %s191, 2
        %s195 = sadd.s32 %s193, %s194
        %s196 = smul.addr %s195, 4
        %s197 = scalar_lea.vmem %s1, %s196
        %s198 = smul.u32 2, %s18
      $region32: #{transform_attention.16} parent=23 // pred_fallthru
        _
    $region24: #{transform_attention.16} parent=5 // pred_fallthru
      _
    %p199 = scmp.le.s32.totalorder 1, %s10
    %p200 = scmp.lt.s32.totalorder %s10, 3
    %p201 = pnand %p199, %p200
    %p202 = pneg %p201
    // Predicated region
    $region33: #{transform_attention.16} parent=5 // pred_check
      _
    $region34: #{transform_attention.16} parent=5 // pred_check_branch
      %204 = sbr.rel (%p201) target = $region36
    $region35: #{transform_attention.16} parent=5 // pred_region
      %s205 = ssub.s32 %s10, 1
      %s206 = smul.u32 2, %s20
      %p207 = scmp.lt.s32.totalorder %s19, 1
      %s208 = scalar_select %p207, %s19, 1
      %p209 = scmp.lt.s32.totalorder %s206, 1
      %s210 = scalar_select %p209, %s206, 1
      %s211 = smul.addr %s208, 2
      %s212 = sadd.s32 %s210, %s211
      %s213 = smul.addr %s212, 4
      %s214 = scalar_lea.vmem %s0, %s213
      %p215 = pneg %p50
      %p216 = pneg %p47
      %s217 = smul.u32 2, %s20
      %p218 = scmp.lt.s32.totalorder %s19, 1
      %s219 = scalar_select %p218, %s19, 1
      %p220 = scmp.lt.s32.totalorder %s217, 1
      %s221 = scalar_select %p220, %s217, 1
      %s222 = smul.addr %s219, 2
      %s223 = sadd.s32 %s221, %s222
      %s224 = smul.addr %s223, 4
      %s225 = scalar_lea.vmem %s1, %s224
      %p226 = pneg %p78
      %p227 = pneg %p75
      %p228 = pneg %p99
      %p229 = pneg %p96
      %p230 = pneg %p120
      %p231 = pneg %p117
      %p232 = pneg %p148
      %p233 = pneg %p145
      %s234 = smul.u32 2, %s20
      %p235 = scmp.lt.s32.totalorder %s19, 1
      %s236 = scalar_select %p235, %s19, 1
      %p237 = scmp.lt.s32.totalorder %s234, 1
      %s238 = scalar_select %p237, %s234, 1
      %s239 = smul.addr %s236, 4
      %s240 = sadd.s32 %s238, %s239
      %s241 = smul.addr %s240, 8
      %s242 = scalar_lea.vmem %s4, %s241
      %s243 = smul.u32 2, %s20
      %p244 = scmp.lt.s32.totalorder %s19, 1
      %s245 = scalar_select %p244, %s19, 1
      %p246 = scmp.lt.s32.totalorder %s243, 1
      %s247 = scalar_select %p246, %s243, 1
      %s248 = smul.addr %s245, 2
      %s249 = sadd.s32 %s247, %s248
      %s250 = smul.addr %s249, 4
      %s251 = scalar_lea.vmem %s0, %s250
      %s252 = smul.u32 2, %s20
      %s253 = smul.u32 2, %s20
      %p254 = scmp.lt.s32.totalorder %s19, 1
      %s255 = scalar_select %p254, %s19, 1
      %p256 = scmp.lt.s32.totalorder %s253, 1
      %s257 = scalar_select %p256, %s253, 1
      %s258 = smul.addr %s255, 2
      %s259 = sadd.s32 %s257, %s258
      %s260 = smul.addr %s259, 4
      %s261 = scalar_lea.vmem %s1, %s260
      %s262 = smul.u32 2, %s20
      %s263 = smul.u32 2, %s20
      %p264 = scmp.lt.s32.totalorder %s19, 1
      %s265 = scalar_select %p264, %s19, 1
      %p266 = scmp.lt.s32.totalorder %s263, 1
      %s267 = scalar_select %p266, %s263, 1
      %s268 = smul.addr %s265, 4
      %s269 = sadd.s32 %s267, %s268
      %s270 = smul.addr %s269, 8
      %s271 = scalar_lea.vmem %s4, %s270
      %s272 = smul.u32 2, %s20
      %v273 = vld [vmem:[%s251] sm:$0xff]
      %v274 = vld [vmem:[%s261] sm:$0xff]
      %v275 = vadd.f32 %v273, %v274
      %v276 = vld [vmem:[%s2] sm:$0xff]
      %v277 = vld [vmem:[%s2 + $0x8] sm:$0xf]
      %v278 = vld [vmem:[%s3] sm:$0xff]
      %v279 = vld [vmem:[%s3 + $0x8] sm:$0xf]
      %281 = vset.pattern.permute.xlu0 0
      %282 = vperm.xlu0 %281, %v278
      %v283 = vpop.permute.xlu0 %282
      %286 = vset.pattern.permute.xlu0 0
      %287 = vperm.xlu0 %286, %v279
      %v288 = vpop.permute.xlu0 %287
      %291 = vst [vmem:[#allocation1] ss:$2 sm:$0xff] %v275
      %v292 = vld.sshfl [vmem:[#allocation1] sm:$0xff pattern:$0x75316420]
      %v293 = vld.sshfl [vmem:[#allocation1 + $0x8] sm:$0xff pattern:$0x75316420]
      %vm294 = vcmask 31744
      %v296 = vsel %vm294, %v276, 0
      %v299 = vsel %vm294, %v277, 0
      %vm301 = vcmask 1043456
      %v302 = vsel %vm301, %v292, 0
      %v304 = vsel %vm301, %v293, 0
      %306 = vmatpush.msra.mxu0 0.0
      %307 = vmatpush.msra.mxu0 0.0
      %308 = vmatpush.msra.mxu0 0.0
      %309 = vmatpush.msra.mxu0 0.0
      %310 = vmatpush.msra.mxu0 0.0
      %311 = vmatpush.msra.mxu0 0.0
      %312 = vmatpush.msra.mxu0 0.0
      %313 = vmatpush.msra.mxu0 0.0
      %314 = vmatpush.msra.mxu0 0.0
      %315 = vmatpush.msra.mxu0 0.0
      %316 = vmatpush.msra.mxu0 0.0
      %317 = vmatpush.msra.mxu0 0.0
      %318 = vmatpush.msra.mxu0 0.0
      %319 = vmatpush.msra.mxu0 0.0
      %320 = vmatpush.msra.mxu0 0.0
      %321 = vmatpush.msra.mxu0 %v302
      %322 = vmatmul.f32.gmra.mxu0 %v296
      %v323 = vpop.f32.mrf.mxu0
      %v324 = vadd.f32 %v283, %v323
      %325 = vmatmul.f32.gmra.mxu0 %v299
      %v326 = vpop.f32.mrf.mxu0
      %v327 = vadd.f32 %v288, %v326
      %328 = vdwg.mxu0
      %329 = vmatpush.msra.mxu0 0.0
      %330 = vmatpush.msra.mxu0 0.0
      %331 = vmatpush.msra.mxu0 0.0
      %332 = vmatpush.msra.mxu0 0.0
      %333 = vmatpush.msra.mxu0 0.0
      %334 = vmatpush.msra.mxu0 0.0
      %335 = vmatpush.msra.mxu0 0.0
      %336 = vmatpush.msra.mxu0 0.0
      %337 = vmatpush.msra.mxu0 0.0
      %338 = vmatpush.msra.mxu0 0.0
      %339 = vmatpush.msra.mxu0 0.0
      %340 = vmatpush.msra.mxu0 0.0
      %341 = vmatpush.msra.mxu0 0.0
      %342 = vmatpush.msra.mxu0 0.0
      %343 = vmatpush.msra.mxu0 0.0
      %344 = vmatpush.msra.mxu0 %v304
      %345 = vmatmul.f32.gmra.mxu0 %v296
      %v346 = vpop.f32.mrf.mxu0
      %v347 = vadd.f32 %v283, %v346
      %348 = vmatmul.f32.gmra.mxu0 %v299
      %v349 = vpop.f32.mrf.mxu0
      %v350 = vadd.f32 %v288, %v349
      %351 = vdwg.mxu0
      %352 = vst [vmem:[%s271] sm:$0xff] %v324
      %353 = vst [vmem:[%s271 + $0x8] sm:$0xff] %v347
      %354 = vst [vmem:[%s271 + $0x10] sm:$0xf] %v327
      %355 = vst [vmem:[%s271 + $0x18] sm:$0xf] %v350
      %s356 = smul.u32 2, %s20
      %p357 = scmp.lt.s32.totalorder %s19, 1
      %s358 = scalar_select %p357, %s19, 1
      %p359 = scmp.lt.s32.totalorder %s356, 1
      %s360 = scalar_select %p359, %s356, 1
      %s361 = smul.addr %s358, 4
      %s362 = sadd.s32 %s360, %s361
      %s363 = smul.addr %s362, 8
      %s364 = scalar_lea.vmem %s4, %s363
      // Predicated region
      $region37: #{transform_attention.16} parent=35 // pred_check
        %p365 = pneg %p145
      $region38: #{transform_attention.16} parent=35 // pred_check_branch
        %367 = sbr.rel (%p365) target = $region40
      $region39: #{transform_attention.16} parent=35 // pred_region
        %s368 = smul.u32 2, %s20
      $region40: #{transform_attention.16} parent=35 // pred_fallthru
        _
    $region36: #{transform_attention.16} parent=5 // pred_fallthru
      _
    %p369 = scmp.le.s32.totalorder 2, %s10
    // Predicated region
    $region41: #{transform_attention.16} parent=5 // pred_check
      %p370 = pneg %p369
    $region42: #{transform_attention.16} parent=5 // pred_check_branch
      %372 = sbr.rel (%p370) target = $region44
    $region43: #{transform_attention.16} parent=5 // pred_region
      %s373 = ssub.s32 %s10, 2
      // Predicated region
      $region45: #{transform_attention.16} parent=43 // pred_check
        %p374 = pneg %p151
      $region46: #{transform_attention.16} parent=43 // pred_check_branch
        %376 = sbr.rel (%p374) target = $region48
      $region47: #{transform_attention.16} parent=43 // pred_region
        %s377 = smul.u32 2, %s22
        %p378 = scmp.lt.s32.totalorder %s21, 1
        %s379 = scalar_select %p378, %s21, 1
        %p380 = scmp.lt.s32.totalorder %s377, 1
        %s381 = scalar_select %p380, %s377, 1
        %s382 = smul.addr %s379, 4
        %s383 = sadd.s32 %s381, %s382
        %s384 = smul.addr %s383, 8
        %s385 = scalar_lea.vmem %s4, %s384
      $region48: #{transform_attention.16} parent=43 // pred_fallthru
        _
    $region44: #{transform_attention.16} parent=5 // pred_fallthru
      _
  $region6: #{transform_attention.16} parent=0 // loop_footer
    %s14 = sadd.s32 1, %s10
  $region7: #{transform_attention.16} parent=0 // loop_footer_branch
    %9 = sbr.rel target = $region3
  $region8: #{transform_attention.16} parent=0 // loop_exit
    _

// kernel: transform_attention.19
$region0: #{transform_attention.19}
  #allocation0 [shape = 'u32[]', space=smem, size = 0x4, offset = 0x4, fixed_abs, tag = 'smem constant byte address 0x4 - core index']
  #allocation1 [shape = 'u32[72,128]{1,0:T(1,128)}', space=vmem, size = 0x9000, scoped, tag = 'internal scratch']
  #allocation2 [shape = 'f32[12,1]{1,0:T(8,128)}', space=vmem, size = 0x2000, scoped, tag = 'scratch operand']
  #allocation3 [shape = 'f32[12,1]{1,0:T(8,128)}', space=vmem, size = 0x2000, scoped, tag = 'scratch operand']
  %s0 = inlined_call_operand.vmem [shape: f32[2,12,256], index: 0, kind: input, shape index: {}]
  %s1 = inlined_call_operand.vmem [shape: f32[2,12,256], index: 1, kind: input, shape index: {}]
  %s2 = inlined_call_operand.vmem [shape: f32[12,12], index: 2, kind: input, shape index: {}]
  %s3 = inlined_call_operand.vmem [shape: f32[12,12], index: 3, kind: input, shape index: {}]
  %s4 = inlined_call_operand.vmem [shape: f32[12,1], index: 4, kind: input, shape index: {}]
  %s5 = inlined_call_operand.vmem [shape: f32[12,12], index: 5, kind: input, shape index: {}]
  %s6 = inlined_call_operand.vmem [shape: f32[12,1], index: 6, kind: input, shape index: {}]
  %s7 = inlined_call_operand.vmem [shape: f32[12,12], index: 7, kind: input, shape index: {}]
  %s8 = inlined_call_operand.vmem [shape: f32[12,1], index: 8, kind: input, shape index: {}]
  %s9 = inlined_call_operand.vmem [shape: f32[2,12,256], index: 9, kind: output, shape index: {}]
  %s10 = sld [smem:[#allocation0]]
  $region85: #{transform_attention.19} parent=0
    _
  %s12 = ssub.s32 1, %s10
  %s13 = scalar_select 0, %s12, %s10
  loop: start=0, step=1, limit=6
  $region2: #{transform_attention.19} parent=0 // loop_pre_header
    _
  $region3: #{transform_attention.19} parent=0 // loop_header
    %s15 = sphi 0, %s19
    %p16 = scmp.ge.s32.totalorder %s15, 6
    %s22 = sphi 0, %s41
    %s23 = sphi 0, %s37
    %s24 = sphi 0, %s33
    %s25 = sphi 0, %s22
    %s26 = sphi 0, %s23
    %s27 = sphi 0, %s24
    %s28 = sphi 0, %s25
    %s29 = sphi 0, %s26
    %s30 = sphi 0, %s27
    %s46 = sphi 0, %s48
    %s49 = sphi 0, %s46
    %s50 = sphi 0, %s49
    %s66 = sphi 0, %s50
    %s74 = sphi 0, %s76
    %s77 = sphi 0, %s74
    %s78 = sphi 0, %s77
    %s94 = sphi 0, %s78
    %s98 = sphi 0, %s98
    %s100 = sphi 0, %s98
    %s101 = sphi 0, %s100
    %s115 = sphi 0, %s101
    %s119 = sphi 0, %s119
    %s121 = sphi 0, %s119
    %s122 = sphi 0, %s121
    %s136 = sphi 0, %s122
    %s140 = sphi 0, %s140
    %s142 = sphi 0, %s140
    %s143 = sphi 0, %s142
    %s157 = sphi 0, %s143
    %s161 = sphi 0, %s161
    %s163 = sphi 0, %s161
    %s164 = sphi 0, %s163
    %s178 = sphi 0, %s164
    %s182 = sphi 0, %s182
    %s184 = sphi 0, %s182
    %s185 = sphi 0, %s184
    %s199 = sphi 0, %s185
    %s203 = sphi 0, %s203
    %s205 = sphi 0, %s203
    %s206 = sphi 0, %s205
    %s220 = sphi 0, %s206
    %s224 = sphi 0, %s224
    %s226 = sphi 0, %s224
    %s227 = sphi 0, %s226
    %s241 = sphi 0, %s227
    %s251 = sphi 0, %s253
    %s254 = sphi 0, %s251
    %s255 = sphi 0, %s254
    %s271 = sphi 0, %s255
  $region4: #{transform_attention.19} parent=0 // loop_header_branch
    %18 = sbr.rel (%p16) target = $region8
  $region5: #{transform_attention.19} parent=0 // loop_body
    %s20 = ssub.s32 %s15, 1
    %s21 = ssub.s32 %s15, 2
    %s31 = sadd.s32 1, %s24
    %p32 = scmp.ge.s32.totalorder %s31, 1
    %s33 = scalar_select %p32, 0, %s31
    %s34 = sadd.s32 1, %s23
    %s35 = scalar_select %p32, %s34, %s23
    %p36 = scmp.ge.s32.totalorder %s35, 2
    %s37 = scalar_select %p36, 0, %s35
    %s38 = sadd.s32 1, %s22
    %s39 = scalar_select %p36, %s38, %s22
    %p40 = scmp.ge.s32.totalorder %s39, 2
    %s41 = scalar_select %p40, 0, %s39
    %s42 = ssub.s32 %s22, %s41
    %s43 = ssub.s32 %s24, %s33
    %s44 = sor.u32 %s42, %s43
    %p45 = scmp.eq.s32.totalorder %s44, 0
    %s47 = sadd.s32 %s46, 1
    %s48 = scalar_select %p45, %s46, %s47
    %p51 = pneg %p45
    %p52 = scmp.eq.s32.totalorder %s15, 3
    %p53 = por %p51, %p52
    %p54 = scmp.ne.s32.totalorder %s46, %s49
    %p55 = scmp.eq.s32.totalorder %s15, 0
    %p56 = por %p54, %p55
    %p57 = scmp.ne.s32.totalorder %s46, %s49
    %p58 = scmp.eq.s32.totalorder %s20, 3
    %p59 = por %p57, %p58
    %p60 = scmp.ne.s32.totalorder %s49, %s50
    %p61 = scmp.eq.s32.totalorder %s20, 0
    %p62 = por %p60, %p61
    %p63 = scmp.ne.s32.totalorder %s49, %s50
    %p64 = scmp.eq.s32.totalorder %s21, 3
    %p65 = por %p63, %p64
    %p67 = scmp.ne.s32.totalorder %s50, %s66
    %p68 = scmp.eq.s32.totalorder %s21, 0
    %p69 = por %p67, %p68
    %s70 = ssub.s32 %s22, %s41
    %s71 = ssub.s32 %s24, %s33
    %s72 = sor.u32 %s70, %s71
    %p73 = scmp.eq.s32.totalorder %s72, 0
    %s75 = sadd.s32 %s74, 1
    %s76 = scalar_select %p73, %s74, %s75
    %p79 = pneg %p73
    %p80 = scmp.eq.s32.totalorder %s15, 3
    %p81 = por %p79, %p80
    %p82 = scmp.ne.s32.totalorder %s74, %s77
    %p83 = scmp.eq.s32.totalorder %s15, 0
    %p84 = por %p82, %p83
    %p85 = scmp.ne.s32.totalorder %s74, %s77
    %p86 = scmp.eq.s32.totalorder %s20, 3
    %p87 = por %p85, %p86
    %p88 = scmp.ne.s32.totalorder %s77, %s78
    %p89 = scmp.eq.s32.totalorder %s20, 0
    %p90 = por %p88, %p89
    %p91 = scmp.ne.s32.totalorder %s77, %s78
    %p92 = scmp.eq.s32.totalorder %s21, 3
    %p93 = por %p91, %p92
    %p95 = scmp.ne.s32.totalorder %s78, %s94
    %p96 = scmp.eq.s32.totalorder %s21, 0
    %p97 = por %p95, %p96
    %s99 = sadd.s32 %s98, 1
    %p102 = scmp.eq.s32.totalorder %s15, 3
    %p103 = scmp.ne.s32.totalorder %s98, %s100
    %p104 = scmp.eq.s32.totalorder %s15, 0
    %p105 = por %p103, %p104
    %p106 = scmp.ne.s32.totalorder %s98, %s100
    %p107 = scmp.eq.s32.totalorder %s20, 3
    %p108 = por %p106, %p107
    %p109 = scmp.ne.s32.totalorder %s100, %s101
    %p110 = scmp.eq.s32.totalorder %s20, 0
    %p111 = por %p109, %p110
    %p112 = scmp.ne.s32.totalorder %s100, %s101
    %p113 = scmp.eq.s32.totalorder %s21, 3
    %p114 = por %p112, %p113
    %p116 = scmp.ne.s32.totalorder %s101, %s115
    %p117 = scmp.eq.s32.totalorder %s21, 0
    %p118 = por %p116, %p117
    %s120 = sadd.s32 %s119, 1
    %p123 = scmp.eq.s32.totalorder %s15, 3
    %p124 = scmp.ne.s32.totalorder %s119, %s121
    %p125 = scmp.eq.s32.totalorder %s15, 0
    %p126 = por %p124, %p125
    %p127 = scmp.ne.s32.totalorder %s119, %s121
    %p128 = scmp.eq.s32.totalorder %s20, 3
    %p129 = por %p127, %p128
    %p130 = scmp.ne.s32.totalorder %s121, %s122
    %p131 = scmp.eq.s32.totalorder %s20, 0
    %p132 = por %p130, %p131
    %p133 = scmp.ne.s32.totalorder %s121, %s122
    %p134 = scmp.eq.s32.totalorder %s21, 3
    %p135 = por %p133, %p134
    %p137 = scmp.ne.s32.totalorder %s122, %s136
    %p138 = scmp.eq.s32.totalorder %s21, 0
    %p139 = por %p137, %p138
    %s141 = sadd.s32 %s140, 1
    %p144 = scmp.eq.s32.totalorder %s15, 3
    %p145 = scmp.ne.s32.totalorder %s140, %s142
    %p146 = scmp.eq.s32.totalorder %s15, 0
    %p147 = por %p145, %p146
    %p148 = scmp.ne.s32.totalorder %s140, %s142
    %p149 = scmp.eq.s32.totalorder %s20, 3
    %p150 = por %p148, %p149
    %p151 = scmp.ne.s32.totalorder %s142, %s143
    %p152 = scmp.eq.s32.totalorder %s20, 0
    %p153 = por %p151, %p152
    %p154 = scmp.ne.s32.totalorder %s142, %s143
    %p155 = scmp.eq.s32.totalorder %s21, 3
    %p156 = por %p154, %p155
    %p158 = scmp.ne.s32.totalorder %s143, %s157
    %p159 = scmp.eq.s32.totalorder %s21, 0
    %p160 = por %p158, %p159
    %s162 = sadd.s32 %s161, 1
    %p165 = scmp.eq.s32.totalorder %s15, 3
    %p166 = scmp.ne.s32.totalorder %s161, %s163
    %p167 = scmp.eq.s32.totalorder %s15, 0
    %p168 = por %p166, %p167
    %p169 = scmp.ne.s32.totalorder %s161, %s163
    %p170 = scmp.eq.s32.totalorder %s20, 3
    %p171 = por %p169, %p170
    %p172 = scmp.ne.s32.totalorder %s163, %s164
    %p173 = scmp.eq.s32.totalorder %s20, 0
    %p174 = por %p172, %p173
    %p175 = scmp.ne.s32.totalorder %s163, %s164
    %p176 = scmp.eq.s32.totalorder %s21, 3
    %p177 = por %p175, %p176
    %p179 = scmp.ne.s32.totalorder %s164, %s178
    %p180 = scmp.eq.s32.totalorder %s21, 0
    %p181 = por %p179, %p180
    %s183 = sadd.s32 %s182, 1
    %p186 = scmp.eq.s32.totalorder %s15, 3
    %p187 = scmp.ne.s32.totalorder %s182, %s184
    %p188 = scmp.eq.s32.totalorder %s15, 0
    %p189 = por %p187, %p188
    %p190 = scmp.ne.s32.totalorder %s182, %s184
    %p191 = scmp.eq.s32.totalorder %s20, 3
    %p192 = por %p190, %p191
    %p193 = scmp.ne.s32.totalorder %s184, %s185
    %p194 = scmp.eq.s32.totalorder %s20, 0
    %p195 = por %p193, %p194
    %p196 = scmp.ne.s32.totalorder %s184, %s185
    %p197 = scmp.eq.s32.totalorder %s21, 3
    %p198 = por %p196, %p197
    %p200 = scmp.ne.s32.totalorder %s185, %s199
    %p201 = scmp.eq.s32.totalorder %s21, 0
    %p202 = por %p200, %p201
    %s204 = sadd.s32 %s203, 1
    %p207 = scmp.eq.s32.totalorder %s15, 3
    %p208 = scmp.ne.s32.totalorder %s203, %s205
    %p209 = scmp.eq.s32.totalorder %s15, 0
    %p210 = por %p208, %p209
    %p211 = scmp.ne.s32.totalorder %s203, %s205
    %p212 = scmp.eq.s32.totalorder %s20, 3
    %p213 = por %p211, %p212
    %p214 = scmp.ne.s32.totalorder %s205, %s206
    %p215 = scmp.eq.s32.totalorder %s20, 0
    %p216 = por %p214, %p215
    %p217 = scmp.ne.s32.totalorder %s205, %s206
    %p218 = scmp.eq.s32.totalorder %s21, 3
    %p219 = por %p217, %p218
    %p221 = scmp.ne.s32.totalorder %s206, %s220
    %p222 = scmp.eq.s32.totalorder %s21, 0
    %p223 = por %p221, %p222
    %s225 = sadd.s32 %s224, 1
    %p228 = scmp.eq.s32.totalorder %s15, 3
    %p229 = scmp.ne.s32.totalorder %s224, %s226
    %p230 = scmp.eq.s32.totalorder %s15, 0
    %p231 = por %p229, %p230
    %p232 = scmp.ne.s32.totalorder %s224, %s226
    %p233 = scmp.eq.s32.totalorder %s20, 3
    %p234 = por %p232, %p233
    %p235 = scmp.ne.s32.totalorder %s226, %s227
    %p236 = scmp.eq.s32.totalorder %s20, 0
    %p237 = por %p235, %p236
    %p238 = scmp.ne.s32.totalorder %s226, %s227
    %p239 = scmp.eq.s32.totalorder %s21, 3
    %p240 = por %p238, %p239
    %p242 = scmp.ne.s32.totalorder %s227, %s241
    %p243 = scmp.eq.s32.totalorder %s21, 0
    %p244 = por %p242, %p243
    %s245 = smul.u32 %s24, %s23
    %s246 = smul.u32 %s33, %s37
    %s247 = ssub.s32 %s22, %s41
    %s248 = ssub.s32 %s245, %s246
    %s249 = sor.u32 %s247, %s248
    %p250 = scmp.eq.s32.totalorder %s249, 0
    %s252 = sadd.s32 %s251, 1
    %s253 = scalar_select %p250, %s251, %s252
    %p256 = pneg %p250
    %p257 = scmp.eq.s32.totalorder %s15, 3
    %p258 = por %p256, %p257
    %p259 = scmp.ne.s32.totalorder %s251, %s254
    %p260 = scmp.eq.s32.totalorder %s15, 0
    %p261 = por %p259, %p260
    %p262 = scmp.ne.s32.totalorder %s251, %s254
    %p263 = scmp.eq.s32.totalorder %s20, 3
    %p264 = por %p262, %p263
    %p265 = scmp.ne.s32.totalorder %s254, %s255
    %p266 = scmp.eq.s32.totalorder %s20, 0
    %p267 = por %p265, %p266
    %p268 = scmp.ne.s32.totalorder %s254, %s255
    %p269 = scmp.eq.s32.totalorder %s21, 3
    %p270 = por %p268, %p269
    %p272 = scmp.ne.s32.totalorder %s255, %s271
    %p273 = scmp.eq.s32.totalorder %s21, 0
    %p274 = por %p272, %p273
    %p275 = scmp.le.s32.totalorder 1, %s15
    %p276 = scmp.lt.s32.totalorder %s15, 5
    %p277 = pnand %p275, %p276
    %p278 = pneg %p277
    // Predicated region
    $region9: #{transform_attention.19} parent=5 // pred_check
      _
    $region10: #{transform_attention.19} parent=5 // pred_check_branch
      %280 = sbr.rel (%p277) target = $region12
    $region11: #{transform_attention.19} parent=5 // pred_region
      %s281 = ssub.s32 %s15, 1
      // Predicated region
      $region13: #{transform_attention.19} parent=11 // pred_check
        %p282 = pneg %p111
      $region14: #{transform_attention.19} parent=11 // pred_check_branch
        %284 = sbr.rel (%p282) target = $region16
      $region15: #{transform_attention.19} parent=11 // pred_region
        _
      $region16: #{transform_attention.19} parent=11 // pred_fallthru
        _
      // Predicated region
      $region17: #{transform_attention.19} parent=11 // pred_check
        %p285 = pneg %p132
      $region18: #{transform_attention.19} parent=11 // pred_check_branch
        %287 = sbr.rel (%p285) target = $region20
      $region19: #{transform_attention.19} parent=11 // pred_region
        _
      $region20: #{transform_attention.19} parent=11 // pred_fallthru
        _
      // Predicated region
      $region21: #{transform_attention.19} parent=11 // pred_check
        %p288 = pneg %p153
      $region22: #{transform_attention.19} parent=11 // pred_check_branch
        %290 = sbr.rel (%p288) target = $region24
      $region23: #{transform_attention.19} parent=11 // pred_region
        _
      $region24: #{transform_attention.19} parent=11 // pred_fallthru
        _
      // Predicated region
      $region25: #{transform_attention.19} parent=11 // pred_check
        %p291 = pneg %p174
      $region26: #{transform_attention.19} parent=11 // pred_check_branch
        %293 = sbr.rel (%p291) target = $region28
      $region27: #{transform_attention.19} parent=11 // pred_region
        _
      $region28: #{transform_attention.19} parent=11 // pred_fallthru
        _
      // Predicated region
      $region29: #{transform_attention.19} parent=11 // pred_check
        %p294 = pneg %p195
      $region30: #{transform_attention.19} parent=11 // pred_check_branch
        %296 = sbr.rel (%p294) target = $region32
      $region31: #{transform_attention.19} parent=11 // pred_region
        _
      $region32: #{transform_attention.19} parent=11 // pred_fallthru
        _
      // Predicated region
      $region33: #{transform_attention.19} parent=11 // pred_check
        %p297 = pneg %p216
      $region34: #{transform_attention.19} parent=11 // pred_check_branch
        %299 = sbr.rel (%p297) target = $region36
      $region35: #{transform_attention.19} parent=11 // pred_region
        _
      $region36: #{transform_attention.19} parent=11 // pred_fallthru
        _
      // Predicated region
      $region37: #{transform_attention.19} parent=11 // pred_check
        %p300 = pneg %p237
      $region38: #{transform_attention.19} parent=11 // pred_check_branch
        %302 = sbr.rel (%p300) target = $region40
      $region39: #{transform_attention.19} parent=11 // pred_region
        _
      $region40: #{transform_attention.19} parent=11 // pred_fallthru
        _
    $region12: #{transform_attention.19} parent=5 // pred_fallthru
      _
    %p303 = scmp.lt.s32.totalorder %s15, 4
    // Predicated region
    $region41: #{transform_attention.19} parent=5 // pred_check
      %p304 = pneg %p303
    $region42: #{transform_attention.19} parent=5 // pred_check_branch
      %306 = sbr.rel (%p304) target = $region44
    $region43: #{transform_attention.19} parent=5 // pred_region
      // Predicated region
      $region45: #{transform_attention.19} parent=43 // pred_check
        %p307 = pneg %p56
      $region46: #{transform_attention.19} parent=43 // pred_check_branch
        %309 = sbr.rel (%p307) target = $region48
      $region47: #{transform_attention.19} parent=43 // pred_region
        %s310 = smul.u32 2, %s24
        %p311 = scmp.lt.s32.totalorder %s22, 1
        %s312 = scalar_select %p311, %s22, 1
        %p313 = scmp.lt.s32.totalorder %s310, 1
        %s314 = scalar_select %p313, %s310, 1
        %s315 = smul.addr %s312, 4
        %s316 = sadd.s32 %s314, %s315
        %s317 = smul.addr %s316, 8
        %s318 = scalar_lea.vmem %s0, %s317
        %s319 = smul.u32 2, %s24
      $region48: #{transform_attention.19} parent=43 // pred_fallthru
        _
      // Predicated region
      $region49: #{transform_attention.19} parent=43 // pred_check
        %p320 = pneg %p84
      $region50: #{transform_attention.19} parent=43 // pred_check_branch
        %322 = sbr.rel (%p320) target = $region52
      $region51: #{transform_attention.19} parent=43 // pred_region
        %s323 = smul.u32 2, %s24
        %p324 = scmp.lt.s32.totalorder %s22, 1
        %s325 = scalar_select %p324, %s22, 1
        %p326 = scmp.lt.s32.totalorder %s323, 1
        %s327 = scalar_select %p326, %s323, 1
        %s328 = smul.addr %s325, 4
        %s329 = sadd.s32 %s327, %s328
        %s330 = smul.addr %s329, 8
        %s331 = scalar_lea.vmem %s1, %s330
        %s332 = smul.u32 2, %s24
      $region52: #{transform_attention.19} parent=43 // pred_fallthru
        _
    $region44: #{transform_attention.19} parent=5 // pred_fallthru
      _
    %p333 = scmp.le.s32.totalorder 1, %s15
    %p334 = scmp.lt.s32.totalorder %s15, 5
    %p335 = pnand %p333, %p334
    %p336 = pneg %p335
    // Predicated region
    $region53: #{transform_attention.19} parent=5 // pred_check
      _
    $region54: #{transform_attention.19} parent=5 // pred_check_branch
      %338 = sbr.rel (%p335) target = $region56
    $region55: #{transform_attention.19} parent=5 // pred_region
      %s339 = ssub.s32 %s15, 1
      %s340 = smul.u32 2, %s27
      %p341 = scmp.lt.s32.totalorder %s25, 1
      %s342 = scalar_select %p341, %s25, 1
      %p343 = scmp.lt.s32.totalorder %s340, 1
      %s344 = scalar_select %p343, %s340, 1
      %s345 = smul.addr %s342, 4
      %s346 = sadd.s32 %s344, %s345
      %s347 = smul.addr %s346, 8
      %s348 = scalar_lea.vmem %s0, %s347
      %p349 = pneg %p62
      %p350 = pneg %p59
      %s351 = smul.u32 2, %s27
      %p352 = scmp.lt.s32.totalorder %s25, 1
      %s353 = scalar_select %p352, %s25, 1
      %p354 = scmp.lt.s32.totalorder %s351, 1
      %s355 = scalar_select %p354, %s351, 1
      %s356 = smul.addr %s353, 4
      %s357 = sadd.s32 %s355, %s356
      %s358 = smul.addr %s357, 8
      %s359 = scalar_lea.vmem %s1, %s358
      %p360 = pneg %p90
      %p361 = pneg %p87
      %p362 = pneg %p111
      %p363 = pneg %p108
      %p364 = pneg %p132
      %p365 = pneg %p129
      %p366 = pneg %p153
      %p367 = pneg %p150
      %p368 = pneg %p174
      %p369 = pneg %p171
      %p370 = pneg %p195
      %p371 = pneg %p192
      %p372 = pneg %p216
      %p373 = pneg %p213
      %p374 = pneg %p237
      %p375 = pneg %p234
      %p376 = pneg %p267
      %p377 = pneg %p264
      %s378 = smul.u32 %s27, %s26
      %s379 = smul.u32 2, %s378
      %p380 = scmp.lt.s32.totalorder %s25, 1
      %s381 = scalar_select %p380, %s25, 1
      %p382 = scmp.lt.s32.totalorder %s379, 1
      %s383 = scalar_select %p382, %s379, 1
      %s384 = smul.addr %s381, 4
      %s385 = sadd.s32 %s383, %s384
      %s386 = smul.addr %s385, 8
      %s387 = scalar_lea.vmem %s9, %s386
      %s388 = smul.u32 2, %s27
      %p389 = scmp.lt.s32.totalorder %s25, 1
      %s390 = scalar_select %p389, %s25, 1
      %p391 = scmp.lt.s32.totalorder %s388, 1
      %s392 = scalar_select %p391, %s388, 1
      %s393 = smul.addr %s390, 4
      %s394 = sadd.s32 %s392, %s393
      %s395 = smul.addr %s394, 8
      %s396 = scalar_lea.vmem %s0, %s395
      %s397 = smul.u32 2, %s27
      %s398 = smul.u32 2, %s27
      %p399 = scmp.lt.s32.totalorder %s25, 1
      %s400 = scalar_select %p399, %s25, 1
      %p401 = scmp.lt.s32.totalorder %s398, 1
      %s402 = scalar_select %p401, %s398, 1
      %s403 = smul.addr %s400, 4
      %s404 = sadd.s32 %s402, %s403
      %s405 = smul.addr %s404, 8
      %s406 = scalar_lea.vmem %s1, %s405
      %s407 = smul.u32 2, %s27
      %s408 = smul.u32 %s27, %s26
      %s409 = smul.u32 2, %s408
      %p410 = scmp.lt.s32.totalorder %s25, 1
      %s411 = scalar_select %p410, %s25, 1
      %p412 = scmp.lt.s32.totalorder %s409, 1
      %s413 = scalar_select %p412, %s409, 1
      %s414 = smul.addr %s411, 4
      %s415 = sadd.s32 %s413, %s414
      %s416 = smul.addr %s415, 8
      %s417 = scalar_lea.vmem %s9, %s416
      %s418 = smul.u32 %s27, %s26
      %s419 = smul.u32 2, %s418
      %p420 = scmp.eq.s32.totalorder %s26, 0
      %p421 = scmp.eq.s32.totalorder %s27, 0
      %p422 = pnand %p420, %p421
      %p423 = pneg %p422
      // Predicated region
      $region57: #{transform_attention.19} parent=55 // pred_check
        _
      $region58: #{transform_attention.19} parent=55 // pred_check_branch
        %425 = sbr.rel (%p422) target = $region60
      $region59: #{transform_attention.19} parent=55 // pred_region
        %vm426 = vcmask 7168
        %427 = vst.msk [vmem:[#allocation2] sm:$0xff] %vm426, 0.0
        %vm428 = vcmask 3072
        %429 = vst.msk [vmem:[#allocation2 + $0x8] sm:$0xf] %vm428, 0.0
      $region60: #{transform_attention.19} parent=55 // pred_fallthru
        _
      // Predicated region
      $region61: #{transform_attention.19} parent=55 // pred_check
        %p430 = pneg %p420
      $region62: #{transform_attention.19} parent=55 // pred_check_branch
        %432 = sbr.rel (%p430) target = $region64
      $region63: #{transform_attention.19} parent=55 // pred_region
        %v433 = vld [vmem:[%s2] sm:$0xff]
        %v434 = vld [vmem:[%s2 + $0x8] sm:$0xf]
        %v435 = vld [vmem:[%s396] sm:$0xff]
        %v436 = vld [vmem:[%s396 + $0x8] sm:$0xff]
        %v437 = vld [vmem:[%s396 + $0x10] sm:$0xf]
        %v438 = vld [vmem:[%s396 + $0x18] sm:$0xf]
        %v439 = vld [vmem:[%s3] sm:$0xff]
        %v440 = vld [vmem:[%s3 + $0x8] sm:$0xf]
        %v441 = vld [vmem:[%s406] sm:$0xff]
        %v442 = vld [vmem:[%s406 + $0x8] sm:$0xff]
        %v443 = vld [vmem:[%s406 + $0x10] sm:$0xf]
        %v444 = vld [vmem:[%s406 + $0x18] sm:$0xf]
        %vm445 = vcmask 97280
        %v447 = vsel %vm445, %v439, 0
        %v450 = vsel %vm445, %v440, 0
        %vm452 = vcmask 1043456
        %v454 = vsel %vm452, %v443, 0
        %v457 = vsel %vm452, %v444, 0
        %459 = vmatpush.msra.mxu0 0.0
        %460 = vmatpush.msra.mxu0 0.0
        %461 = vmatpush.msra.mxu0 0.0
        %462 = vmatpush.msra.mxu0 0.0
        %463 = vmatpush.msra.mxu0 0.0
        %464 = vmatpush.msra.mxu0 0.0
        %465 = vmatpush.msra.mxu0 0.0
        %466 = vmatpush.msra.mxu0 0.0
        %467 = vmatpush.msra.mxu0 0.0
        %468 = vmatpush.msra.mxu0 0.0
        %469 = vmatpush.msra.mxu0 0.0
        %470 = vmatpush.msra.mxu0 0.0
        %471 = vmatpush.msra.mxu0 0.0
        %472 = vmatpush.msra.mxu0 0.0
        %473 = vmatpush.msra.mxu0 %v454
        %474 = vmatpush.msra.mxu0 %v441
        %475 = vmatmul.f32.gmra.mxu0 %v447
        %v476 = vpop.f32.mrf.mxu0
        %v477 = vadd.f32 0.0, %v476
        %478 = vmatmul.f32.gmra.mxu0 %v450
        %v479 = vpop.f32.mrf.mxu0
        %v480 = vadd.f32 0.0, %v479
        %481 = vdwg.mxu0
        %482 = vmatpush.msra.mxu0 0.0
        %483 = vmatpush.msra.mxu0 0.0
        %484 = vmatpush.msra.mxu0 0.0
        %485 = vmatpush.msra.mxu0 0.0
        %486 = vmatpush.msra.mxu0 0.0
        %487 = vmatpush.msra.mxu0 0.0
        %488 = vmatpush.msra.mxu0 0.0
        %489 = vmatpush.msra.mxu0 0.0
        %490 = vmatpush.msra.mxu0 0.0
        %491 = vmatpush.msra.mxu0 0.0
        %492 = vmatpush.msra.mxu0 0.0
        %493 = vmatpush.msra.mxu0 0.0
        %494 = vmatpush.msra.mxu0 0.0
        %495 = vmatpush.msra.mxu0 0.0
        %496 = vmatpush.msra.mxu0 %v457
        %497 = vmatpush.msra.mxu0 %v442
        %498 = vmatmul.f32.gmra.mxu0 %v447
        %v499 = vpop.f32.mrf.mxu0
        %v500 = vadd.f32 0.0, %v499
        %501 = vmatmul.f32.gmra.mxu0 %v450
        %v502 = vpop.f32.mrf.mxu0
        %v503 = vadd.f32 0.0, %v502
        %504 = vdwg.mxu0
        %v506 = vsel %vm445, %v433, 0
        %v509 = vsel %vm445, %v434, 0
        %v512 = vsel %vm452, %v437, 0
        %v515 = vsel %vm452, %v438, 0
        %517 = vmatpush.msra.mxu0 0.0
        %518 = vmatpush.msra.mxu0 0.0
        %519 = vmatpush.msra.mxu0 0.0
        %520 = vmatpush.msra.mxu0 0.0
        %521 = vmatpush.msra.mxu0 0.0
        %522 = vmatpush.msra.mxu0 0.0
        %523 = vmatpush.msra.mxu0 0.0
        %524 = vmatpush.msra.mxu0 0.0
        %525 = vmatpush.msra.mxu0 0.0
        %526 = vmatpush.msra.mxu0 0.0
        %527 = vmatpush.msra.mxu0 0.0
        %528 = vmatpush.msra.mxu0 0.0
        %529 = vmatpush.msra.mxu0 0.0
        %530 = vmatpush.msra.mxu0 0.0
        %531 = vmatpush.msra.mxu0 %v512
        %532 = vmatpush.msra.mxu0 %v435
        %533 = vmatmul.f32.gmra.mxu0 %v506
        %v534 = vpop.f32.mrf.mxu0
        %v535 = vadd.f32 %v477, %v534
        %536 = vmatmul.f32.gmra.mxu0 %v509
        %v537 = vpop.f32.mrf.mxu0
        %v538 = vadd.f32 %v480, %v537
        %539 = vdwg.mxu0
        %540 = vmatpush.msra.mxu0 0.0
        %541 = vmatpush.msra.mxu0 0.0
        %542 = vmatpush.msra.mxu0 0.0
        %543 = vmatpush.msra.mxu0 0.0
        %544 = vmatpush.msra.mxu0 0.0
        %545 = vmatpush.msra.mxu0 0.0
        %546 = vmatpush.msra.mxu0 0.0
        %547 = vmatpush.msra.mxu0 0.0
        %548 = vmatpush.msra.mxu0 0.0
        %549 = vmatpush.msra.mxu0 0.0
        %550 = vmatpush.msra.mxu0 0.0
        %551 = vmatpush.msra.mxu0 0.0
        %552 = vmatpush.msra.mxu0 0.0
        %553 = vmatpush.msra.mxu0 0.0
        %554 = vmatpush.msra.mxu0 %v515
        %555 = vmatpush.msra.mxu0 %v436
        %556 = vmatmul.f32.gmra.mxu0 %v506
        %v557 = vpop.f32.mrf.mxu0
        %v558 = vadd.f32 %v500, %v557
        %559 = vmatmul.f32.gmra.mxu0 %v509
        %v560 = vpop.f32.mrf.mxu0
        %v561 = vadd.f32 %v503, %v560
        %562 = vdwg.mxu0
        %v563 = vld [vmem:[%s4] sm:$0xff]
        %v564 = vld [vmem:[%s4 + $0x8] sm:$0xf]
        %566 = vset.pattern.permute.xlu0 0
        %567 = vperm.xlu0 %566, %v563
        %v568 = vpop.permute.xlu0 %567
        %571 = vset.pattern.permute.xlu0 0
        %572 = vperm.xlu0 %571, %v564
        %v573 = vpop.permute.xlu0 %572
        %v575 = vadd.f32 %v535, %v568
        %v576 = vadd.f32 %v558, %v568
        %v577 = vadd.f32 %v538, %v573
        %v578 = vadd.f32 %v561, %v573
        %s579 = smul.u32 %s27, 256
        %v580 = vlaneseq
        %v581 = vand.u32 %v580, 127
        %v582 = vadd.s32 %v581, 128
        %v583 = vstv %s579
        %v584 = vadd.s32 %v583, %v581
        %v585 = vadd.s32 %v583, %v582
        %vm586 = vcmp.lt.s32.totalorder %v584, 256
        %vm587 = vcmp.lt.s32.totalorder %v585, 256
        %v588 = vsel %vm586, %v575, 0.0
        %v589 = vsel %vm587, %v576, 0.0
        %v590 = vsel %vm586, %v577, 0.0
        %v591 = vsel %vm587, %v578, 0.0
        %v592 = vld [vmem:[#allocation2] sm:$0xff]
        %v593 = vld [vmem:[#allocation2 + $0x8] sm:$0xf]
        %v594 = vadd.f32 %v588, %v589
        %595 = vadd.xlane.f32.xlu0 %v594
        %v596 = vpop.xlane.xlu0 %595
        %v597 = vsel %vm452, %v590, 0.0
        %v598 = vsel %vm452, %v591, 0.0
        %v599 = vadd.f32 %v597, %v598
        %600 = vadd.xlane.f32.xlu0 %v599
        %v601 = vpop.xlane.xlu0 %600
        %v602 = vadd.f32 %v592, %v596
        %v603 = vadd.f32 %v593, %v601
        %vm604 = vcmask 7168
        %605 = vst.msk [vmem:[#allocation2] sm:$0xff] %vm604, %v602
        %vm606 = vcmask 3072
        %607 = vst.msk [vmem:[#allocation2 + $0x8] sm:$0xf] %vm606, %v603
      $region64: #{transform_attention.19} parent=55 // pred_fallthru
        _
      // Predicated region
      $region65: #{transform_attention.19} parent=55 // pred_check
        _
      $region66: #{transform_attention.19} parent=55 // pred_check_branch
        %609 = sbr.rel (%p422) target = $region68
      $region67: #{transform_attention.19} parent=55 // pred_region
        %v610 = vld [vmem:[#allocation2] sm:$0xff]
        %v611 = vld [vmem:[#allocation2 + $0x8] sm:$0xf]
        %v612 = vmul.f32 %v610, 0.00390625
        %v613 = vmul.f32 %v611, 0.00390625
        %v614 = vld [vmem:[%s5] sm:$0xff]
        %v615 = vld [vmem:[%s5 + $0x8] sm:$0xf]
        %v616 = vld [vmem:[%s6] sm:$0xff]
        %v617 = vld [vmem:[%s6 + $0x8] sm:$0xf]
        %vm618 = vcmask 97280
        %v620 = vsel %vm618, %v614, 0
        %v623 = vsel %vm618, %v615, 0
        %vm625 = vcmask 1043456
        %v627 = vsel %vm625, %v613, 0
        %629 = vmatpush.msra.mxu0 0.0
        %630 = vmatpush.msra.mxu0 0.0
        %631 = vmatpush.msra.mxu0 0.0
        %632 = vmatpush.msra.mxu0 0.0
        %633 = vmatpush.msra.mxu0 0.0
        %634 = vmatpush.msra.mxu0 0.0
        %635 = vmatpush.msra.mxu0 0.0
        %636 = vmatpush.msra.mxu0 0.0
        %637 = vmatpush.msra.mxu0 0.0
        %638 = vmatpush.msra.mxu0 0.0
        %639 = vmatpush.msra.mxu0 0.0
        %640 = vmatpush.msra.mxu0 0.0
        %641 = vmatpush.msra.mxu0 0.0
        %642 = vmatpush.msra.mxu0 0.0
        %643 = vmatpush.msra.mxu0 %v627
        %644 = vmatpush.msra.mxu0 %v612
        %645 = vmatmul.f32.gmra.mxu0 %v620
        %v646 = vpop.f32.mrf.mxu0
        %v647 = vadd.f32 %v616, %v646
        %648 = vmatmul.f32.gmra.mxu0 %v623
        %v649 = vpop.f32.mrf.mxu0
        %v650 = vadd.f32 %v617, %v649
        %651 = vdwg.mxu0
        %v652 = vmax.f32 %v647, 0.0
        %v653 = vmax.f32 %v650, 0.0
        %v654 = vld [vmem:[%s7] sm:$0xff]
        %v655 = vld [vmem:[%s7 + $0x8] sm:$0xf]
        %v656 = vld [vmem:[%s8] sm:$0xff]
        %v657 = vld [vmem:[%s8 + $0x8] sm:$0xf]
        %v659 = vsel %vm618, %v654, 0
        %v662 = vsel %vm618, %v655, 0
        %v665 = vsel %vm625, %v653, 0
        %667 = vmatpush.msra.mxu0 0.0
        %668 = vmatpush.msra.mxu0 0.0
        %669 = vmatpush.msra.mxu0 0.0
        %670 = vmatpush.msra.mxu0 0.0
        %671 = vmatpush.msra.mxu0 0.0
        %672 = vmatpush.msra.mxu0 0.0
        %673 = vmatpush.msra.mxu0 0.0
        %674 = vmatpush.msra.mxu0 0.0
        %675 = vmatpush.msra.mxu0 0.0
        %676 = vmatpush.msra.mxu0 0.0
        %677 = vmatpush.msra.mxu0 0.0
        %678 = vmatpush.msra.mxu0 0.0
        %679 = vmatpush.msra.mxu0 0.0
        %680 = vmatpush.msra.mxu0 0.0
        %681 = vmatpush.msra.mxu0 %v665
        %682 = vmatpush.msra.mxu0 %v652
        %683 = vmatmul.f32.gmra.mxu0 %v659
        %v684 = vpop.f32.mrf.mxu0
        %v685 = vadd.f32 %v656, %v684
        %686 = vmatmul.f32.gmra.mxu0 %v662
        %v687 = vpop.f32.mrf.mxu0
        %v688 = vadd.f32 %v657, %v687
        %689 = vdwg.mxu0
        %v690 = vsub.f32 0.0, %v685
        %v691 = vsub.f32 0.0, %v688
        %v692 = vmul.f32 %v690, 1.442695
        %v693 = vpow.pop %v692
        %v694 = vmul.f32 %v691, 1.442695
        %v695 = vpow.pop %v694
        %v696 = vadd.f32 %v693, 1.0
        %v697 = vadd.f32 %v695, 1.0
        %v698 = vrcp.pop %v696
        %v699 = vmul.f32 %v696, %v698
        %v700 = vsub.f32 1.0, %v699
        %v701 = vmul.f32 %v698, %v700
        %v702 = vadd.f32 %v698, %v701
        %vm703 = vweird.f32 %v696
        %vm704 = vweird.f32 %v698
        %vm705 = vmor %vm703, %vm704
        %v706 = vsel %vm705, %v698, %v702
        %v707 = vand.u32 2147483647, %v696
        %vm708 = vcmp.eq.f32.partialorder %v707, 8.507059e+37
        %v709 = vand.u32 %v696, 2147483648
        %v710 = vor.u32 1.1754944e-38, %v709
        %v711 = vsel %vm708, %v710, %v706
        %v712 = vmul.f32 1.0, %v711
        %v713 = vrcp.pop %v697
        %v714 = vmul.f32 %v697, %v713
        %v715 = vsub.f32 1.0, %v714
        %v716 = vmul.f32 %v713, %v715
        %v717 = vadd.f32 %v713, %v716
        %vm718 = vweird.f32 %v697
        %vm719 = vweird.f32 %v713
        %vm720 = vmor %vm718, %vm719
        %v721 = vsel %vm720, %v713, %v717
        %v722 = vand.u32 2147483647, %v697
        %vm723 = vcmp.eq.f32.partialorder %v722, 8.507059e+37
        %v724 = vand.u32 %v697, 2147483648
        %v725 = vor.u32 1.1754944e-38, %v724
        %v726 = vsel %vm723, %v725, %v721
        %v727 = vmul.f32 1.0, %v726
        %vm728 = vcmask 7168
        %729 = vst.msk [vmem:[#allocation3] sm:$0xff] %vm728, %v712
        %vm730 = vcmask 3072
        %731 = vst.msk [vmem:[#allocation3 + $0x8] sm:$0xf] %vm730, %v727
      $region68: #{transform_attention.19} parent=55 // pred_fallthru
        _
      %p732 = scmp.eq.s32.totalorder %s26, 1
      // Predicated region
      $region69: #{transform_attention.19} parent=55 // pred_check
        %p733 = pneg %p732
      $region70: #{transform_attention.19} parent=55 // pred_check_branch
        %735 = sbr.rel (%p733) target = $region72
      $region71: #{transform_attention.19} parent=55 // pred_region
        %v736 = vld [vmem:[%s2] sm:$0xff]
        %v737 = vld [vmem:[%s2 + $0x8] sm:$0xf]
        %v738 = vld [vmem:[%s396] sm:$0xff]
        %v739 = vld [vmem:[%s396 + $0x8] sm:$0xff]
        %v740 = vld [vmem:[%s396 + $0x10] sm:$0xf]
        %v741 = vld [vmem:[%s396 + $0x18] sm:$0xf]
        %v742 = vld [vmem:[%s3] sm:$0xff]
        %v743 = vld [vmem:[%s3 + $0x8] sm:$0xf]
        %v744 = vld [vmem:[%s406] sm:$0xff]
        %v745 = vld [vmem:[%s406 + $0x8] sm:$0xff]
        %v746 = vld [vmem:[%s406 + $0x10] sm:$0xf]
        %v747 = vld [vmem:[%s406 + $0x18] sm:$0xf]
        %vm748 = vcmask 97280
        %v750 = vsel %vm748, %v742, 0
        %v753 = vsel %vm748, %v743, 0
        %vm755 = vcmask 1043456
        %v757 = vsel %vm755, %v746, 0
        %v760 = vsel %vm755, %v747, 0
        %762 = vmatpush.msra.mxu0 0.0
        %763 = vmatpush.msra.mxu0 0.0
        %764 = vmatpush.msra.mxu0 0.0
        %765 = vmatpush.msra.mxu0 0.0
        %766 = vmatpush.msra.mxu0 0.0
        %767 = vmatpush.msra.mxu0 0.0
        %768 = vmatpush.msra.mxu0 0.0
        %769 = vmatpush.msra.mxu0 0.0
        %770 = vmatpush.msra.mxu0 0.0
        %771 = vmatpush.msra.mxu0 0.0
        %772 = vmatpush.msra.mxu0 0.0
        %773 = vmatpush.msra.mxu0 0.0
        %774 = vmatpush.msra.mxu0 0.0
        %775 = vmatpush.msra.mxu0 0.0
        %776 = vmatpush.msra.mxu0 %v757
        %777 = vmatpush.msra.mxu0 %v744
        %778 = vmatmul.f32.gmra.mxu0 %v750
        %v779 = vpop.f32.mrf.mxu0
        %v780 = vadd.f32 0.0, %v779
        %781 = vmatmul.f32.gmra.mxu0 %v753
        %v782 = vpop.f32.mrf.mxu0
        %v783 = vadd.f32 0.0, %v782
        %784 = vdwg.mxu0
        %785 = vmatpush.msra.mxu0 0.0
        %786 = vmatpush.msra.mxu0 0.0
        %787 = vmatpush.msra.mxu0 0.0
        %788 = vmatpush.msra.mxu0 0.0
        %789 = vmatpush.msra.mxu0 0.0
        %790 = vmatpush.msra.mxu0 0.0
        %791 = vmatpush.msra.mxu0 0.0
        %792 = vmatpush.msra.mxu0 0.0
        %793 = vmatpush.msra.mxu0 0.0
        %794 = vmatpush.msra.mxu0 0.0
        %795 = vmatpush.msra.mxu0 0.0
        %796 = vmatpush.msra.mxu0 0.0
        %797 = vmatpush.msra.mxu0 0.0
        %798 = vmatpush.msra.mxu0 0.0
        %799 = vmatpush.msra.mxu0 %v760
        %800 = vmatpush.msra.mxu0 %v745
        %801 = vmatmul.f32.gmra.mxu0 %v750
        %v802 = vpop.f32.mrf.mxu0
        %v803 = vadd.f32 0.0, %v802
        %804 = vmatmul.f32.gmra.mxu0 %v753
        %v805 = vpop.f32.mrf.mxu0
        %v806 = vadd.f32 0.0, %v805
        %807 = vdwg.mxu0
        %v809 = vsel %vm748, %v736, 0
        %v812 = vsel %vm748, %v737, 0
        %v815 = vsel %vm755, %v740, 0
        %v818 = vsel %vm755, %v741, 0
        %820 = vmatpush.msra.mxu0 0.0
        %821 = vmatpush.msra.mxu0 0.0
        %822 = vmatpush.msra.mxu0 0.0
        %823 = vmatpush.msra.mxu0 0.0
        %824 = vmatpush.msra.mxu0 0.0
        %825 = vmatpush.msra.mxu0 0.0
        %826 = vmatpush.msra.mxu0 0.0
        %827 = vmatpush.msra.mxu0 0.0
        %828 = vmatpush.msra.mxu0 0.0
        %829 = vmatpush.msra.mxu0 0.0
        %830 = vmatpush.msra.mxu0 0.0
        %831 = vmatpush.msra.mxu0 0.0
        %832 = vmatpush.msra.mxu0 0.0
        %833 = vmatpush.msra.mxu0 0.0
        %834 = vmatpush.msra.mxu0 %v815
        %835 = vmatpush.msra.mxu0 %v738
        %836 = vmatmul.f32.gmra.mxu0 %v809
        %v837 = vpop.f32.mrf.mxu0
        %v838 = vadd.f32 %v780, %v837
        %839 = vmatmul.f32.gmra.mxu0 %v812
        %v840 = vpop.f32.mrf.mxu0
        %v841 = vadd.f32 %v783, %v840
        %842 = vdwg.mxu0
        %843 = vmatpush.msra.mxu0 0.0
        %844 = vmatpush.msra.mxu0 0.0
        %845 = vmatpush.msra.mxu0 0.0
        %846 = vmatpush.msra.mxu0 0.0
        %847 = vmatpush.msra.mxu0 0.0
        %848 = vmatpush.msra.mxu0 0.0
        %849 = vmatpush.msra.mxu0 0.0
        %850 = vmatpush.msra.mxu0 0.0
        %851 = vmatpush.msra.mxu0 0.0
        %852 = vmatpush.msra.mxu0 0.0
        %853 = vmatpush.msra.mxu0 0.0
        %854 = vmatpush.msra.mxu0 0.0
        %855 = vmatpush.msra.mxu0 0.0
        %856 = vmatpush.msra.mxu0 0.0
        %857 = vmatpush.msra.mxu0 %v818
        %858 = vmatpush.msra.mxu0 %v739
        %859 = vmatmul.f32.gmra.mxu0 %v809
        %v860 = vpop.f32.mrf.mxu0
        %v861 = vadd.f32 %v803, %v860
        %862 = vmatmul.f32.gmra.mxu0 %v812
        %v863 = vpop.f32.mrf.mxu0
        %v864 = vadd.f32 %v806, %v863
        %865 = vdwg.mxu0
        %v866 = vld [vmem:[%s4] sm:$0xff]
        %v867 = vld [vmem:[%s4 + $0x8] sm:$0xf]
        %869 = vset.pattern.permute.xlu0 0
        %870 = vperm.xlu0 %869, %v866
        %v871 = vpop.permute.xlu0 %870
        %874 = vset.pattern.permute.xlu0 0
        %875 = vperm.xlu0 %874, %v867
        %v876 = vpop.permute.xlu0 %875
        %v878 = vadd.f32 %v838, %v871
        %v879 = vadd.f32 %v861, %v871
        %v880 = vadd.f32 %v841, %v876
        %v881 = vadd.f32 %v864, %v876
        %v882 = vld [vmem:[#allocation3] sm:$0xff]
        %v883 = vld [vmem:[#allocation3 + $0x8] sm:$0xf]
        %885 = vset.pattern.permute.xlu0 0
        %886 = vperm.xlu0 %885, %v882
        %v887 = vpop.permute.xlu0 %886
        %890 = vset.pattern.permute.xlu0 0
        %891 = vperm.xlu0 %890, %v883
        %v892 = vpop.permute.xlu0 %891
        %v894 = vmul.f32 %v878, %v887
        %v895 = vmul.f32 %v879, %v887
        %v896 = vmul.f32 %v880, %v892
        %v897 = vmul.f32 %v881, %v892
        %898 = vst [vmem:[%s417] sm:$0xff] %v894
        %899 = vst [vmem:[%s417 + $0x8] sm:$0xff] %v895
        %900 = vst [vmem:[%s417 + $0x10] sm:$0xf] %v896
        %901 = vst [vmem:[%s417 + $0x18] sm:$0xf] %v897
      $region72: #{transform_attention.19} parent=55 // pred_fallthru
        _
      %s902 = smul.u32 %s27, %s26
      %s903 = smul.u32 2, %s902
      %p904 = scmp.lt.s32.totalorder %s25, 1
      %s905 = scalar_select %p904, %s25, 1
      %p906 = scmp.lt.s32.totalorder %s903, 1
      %s907 = scalar_select %p906, %s903, 1
      %s908 = smul.addr %s905, 4
      %s909 = sadd.s32 %s907, %s908
      %s910 = smul.addr %s909, 8
      %s911 = scalar_lea.vmem %s9, %s910
      // Predicated region
      $region73: #{transform_attention.19} parent=55 // pred_check
        %p912 = pneg %p264
      $region74: #{transform_attention.19} parent=55 // pred_check_branch
        %914 = sbr.rel (%p912) target = $region76
      $region75: #{transform_attention.19} parent=55 // pred_region
        %s915 = smul.u32 %s27, %s26
        %s916 = smul.u32 2, %s915
      $region76: #{transform_attention.19} parent=55 // pred_fallthru
        _
    $region56: #{transform_attention.19} parent=5 // pred_fallthru
      _
    %p917 = scmp.le.s32.totalorder 2, %s15
    // Predicated region
    $region77: #{transform_attention.19} parent=5 // pred_check
      %p918 = pneg %p917
    $region78: #{transform_attention.19} parent=5 // pred_check_branch
      %920 = sbr.rel (%p918) target = $region80
    $region79: #{transform_attention.19} parent=5 // pred_region
      %s921 = ssub.s32 %s15, 2
      // Predicated region
      $region81: #{transform_attention.19} parent=79 // pred_check
        %p922 = pneg %p270
      $region82: #{transform_attention.19} parent=79 // pred_check_branch
        %924 = sbr.rel (%p922) target = $region84
      $region83: #{transform_attention.19} parent=79 // pred_region
        %s925 = smul.u32 %s30, %s29
        %s926 = smul.u32 2, %s925
        %p927 = scmp.lt.s32.totalorder %s28, 1
        %s928 = scalar_select %p927, %s28, 1
        %p929 = scmp.lt.s32.totalorder %s926, 1
        %s930 = scalar_select %p929, %s926, 1
        %s931 = smul.addr %s928, 4
        %s932 = sadd.s32 %s930, %s931
        %s933 = smul.addr %s932, 8
        %s934 = scalar_lea.vmem %s9, %s933
      $region84: #{transform_attention.19} parent=79 // pred_fallthru
        _
    $region80: #{transform_attention.19} parent=5 // pred_fallthru
      _
  $region6: #{transform_attention.19} parent=0 // loop_footer
    %s19 = sadd.s32 1, %s15
  $region7: #{transform_attention.19} parent=0 // loop_footer_branch
    %14 = sbr.rel target = $region3
  $region8: #{transform_attention.19} parent=0 // loop_exit
    _

</llo_original>
